<compile_context>
chip_gen: v7x
topology: tpu7x:2x2x1
jax: 0.10.0
libtpu: 0.0.40
codegen_flags: <defaults>
</compile_context>

<pallas_src>
import math

import jax
import jax.numpy as jnp
from jax import lax
from jax.experimental import pallas as pl
from jax.experimental.pallas import tpu as pltpu

LN_EPS = 1e-5
D_STATE = 16
D_CONV = 4
SEQ_LEN = 128          # fixed by mlp_b = nn.Linear(128, 1)  (== 2 * 8 * 8)
UNROLL = 8             # manual unroll factor of the selective-scan / prepass loops
LANE = 128             # lane block used to align the fused x_proj output segments


def _sigmoid(x):
    return 1.0 / (1.0 + jnp.exp(-x))


def _silu(x):
    return x * _sigmoid(x)


def _layernorm(x, g, b):
    mu = jnp.mean(x, axis=-1, keepdims=True)
    var = jnp.mean((x - mu) ** 2, axis=-1, keepdims=True)
    return (x - mu) * lax.rsqrt(var + LN_EPS) * g + b


def _mxu_dot(a_f32, w_bf16):
    # bf16 operands / f32 accumulation; weights arrive pre-cast from the wrapper.
    return jnp.dot(a_f32.astype(jnp.bfloat16), w_bf16,
                   preferred_element_type=jnp.float32)


# --------------------------------------------------------------------------- #
# Single fused kernel: Conv+LN+ReLU  ->  Mamba  ->  residual+LN+heads+sigmoid
# --------------------------------------------------------------------------- #
def _factor_learning_kernel(
    fts_ref,                                     # (L, D) input tokens
    wcat_ref, bcv_ref,                           # Conv1d: (D, 3D) bf16 fused taps, (1, D)
    lng_ref, lnb_ref,                            # shared LayerNorm: (1, D) each
    win_ref,                                     # Mamba in_proj.T: (D, 2*di) bf16
    dww_ref, dwb_ref,                            # depthwise conv: (K, di), (1, di)
    wx_ref,                                      # padded x_proj.T: (di, 3*LANE)
    wdt_ref, bdt_ref,                            # dt_proj: (LANE, di) zero-padded, (1, di)
    alog_ref, dprm_ref,                          # A_log.T: (ds, di), D skip: (1, di)
    wout_ref,                                    # out_proj.T: (di, D) bf16
    wa_ref, ba_ref, wb_ref, bb_ref,              # heads: (1, D), (1,1), (L,1), (1,1)
    o_ref,                                       # (1, 1) output
    dt_scr, b_scr, c_scr,                        # (L, di), (L, ds), (L, ds)
    da_scr, bu_scr, ccol_scr,                    # (L, ds, di) x2, (L/UNROLL, ds, UNROLL)
    y_scr, u_scr, z_scr, fts1_scr,               # (L, di) x3, (L, D)
):
    L, D = fts_ref.shape
    di = dprm_ref.shape[1]
    ds = alog_ref.shape[0]
    K = dww_ref.shape[0]
    laneblk = wx_ref.shape[1] // 3
    n_chunks = L // UNROLL

    # -------- stage 1: Conv1d(k=3, padding='same') + LayerNorm + ReLU --------
    x = fts_ref[...]                                             # (L, D)
    zero_row = jnp.zeros((1, D), jnp.float32)
    # one fused matmul for all 3 taps, then shift the outputs along the token axis
    tap = _mxu_dot(x, wcat_ref[...])                             # (L, 3D)
    t0 = tap[:, :D]          # x @ W0   (needed at l-1)
    t1 = tap[:, D:2 * D]     # x @ W1
    t2 = tap[:, 2 * D:]      # x @ W2   (needed at l+1)
    y1 = (jnp.concatenate([zero_row, t0[:L - 1, :]], axis=0)     # x[l-1] @ W0
          + t1
          + jnp.concatenate([t2[1:, :], zero_row], axis=0)       # x[l+1] @ W2
          + bcv_ref[...])
    fts1 = jnp.maximum(_layernorm(y1, lng_ref[...], lnb_ref[...]), 0.0)
    fts1_scr[...] = fts1

    # ---------------------- stage 2: Mamba block -----------------------------
    xz = _mxu_dot(fts1, win_ref[...])                            # (L, 2*di)
    xc = xz[:, :di]
    z_scr[...] = xz[:, di:]                                      # gate branch

    # causal depthwise conv1d (kernel K) + SiLU
    acc = jnp.broadcast_to(dwb_ref[...], (L, di))
    for k in range(K):
        s = K - 1 - k                                            # tap uses x[l - s]
        if s > 0:
            shifted = jnp.concatenate(
                [jnp.zeros((s, di), jnp.float32), xc[:L - s, :]], axis=0)
        else:
            shifted = xc
        acc = acc + shifted * dww_ref[k:k + 1, :]
    u = _silu(acc)                                               # SSM input (L, di)
    u_scr[...] = u

    # fused x_proj: every segment starts at lane 0 of its own 128-lane block, so
    # the dt / B / C slices are block-aligned (no lane-offset extraction).
    xdbc = jnp.dot(u, wx_ref[...], preferred_element_type=jnp.float32)   # (L, 3*LANE)
    dt_raw = (jnp.dot(xdbc[:, :laneblk], wdt_ref[...],
                      preferred_element_type=jnp.float32) + bdt_ref[...])
    dt = jnp.where(dt_raw > 20.0, dt_raw,
                   jnp.log(1.0 + jnp.exp(jnp.minimum(dt_raw, 20.0))))    # softplus
    dt_scr[...] = dt
    b_scr[...] = xdbc[:, laneblk:laneblk + ds]                   # (L, ds)
    c_scr[...] = xdbc[:, 2 * laneblk:2 * laneblk + ds]           # (L, ds)

    a_t = -jnp.exp(alog_ref[...])                                # (ds, di)

    # (1, ds) row -> (ds, 1) column; only used in the bulk prepass (never inside
    # the serial recurrence).
    sub_i = lax.broadcasted_iota(jnp.int32, (ds, ds), 0)
    lane_i = lax.broadcasted_iota(jnp.int32, (ds, ds), 1)
    diag = sub_i == lane_i

    def _as_col(row):                                            # (1, ds) -> (ds, 1)
        return jnp.sum(jnp.where(diag, jnp.broadcast_to(row, (ds, ds)), 0.0),
                       axis=1, keepdims=True)

    # Prepass: per UNROLL-chunk block loads (dense vregs), then materialize
    #   da[t] = exp(dt_t * A)          (EUP, off the recurrence)
    #   bu[t] = B_t^T ⊗ (dt_t * u_t)   (outer-product slab)
    #   ccol[chunk] = [C_base | ... | C_base+7]  as (ds, UNROLL) columns
    def pre_chunk(tt, carry):
        base = pl.multiple_of(tt * UNROLL, UNROLL)
        dt_blk = dt_scr[pl.ds(base, UNROLL), :]                  # (UNROLL, di)
        u_blk = u_scr[pl.ds(base, UNROLL), :]                    # (UNROLL, di)
        dtu_blk = dt_blk * u_blk                                 # dt * u, in registers
        b_blk = b_scr[pl.ds(base, UNROLL), :]                    # (UNROLL, ds)
        c_blk = c_scr[pl.ds(base, UNROLL), :]                    # (UNROLL, ds)
        c_cols = []
        for j in range(UNROLL):
            t = base + j
            da_scr[t] = jnp.exp(dt_blk[j:j + 1, :] * a_t)                   # (ds, di)
            bu_scr[t] = _as_col(b_blk[j:j + 1, :]) * dtu_blk[j:j + 1, :]    # (ds, di)
            c_cols.append(_as_col(c_blk[j:j + 1, :]))                       # (ds, 1)
        ccol_scr[tt] = jnp.concatenate(c_cols, axis=1)           # (ds, UNROLL)
        return carry

    lax.fori_loop(0, n_chunks, pre_chunk, 0)

    # Serial selective scan — the only dependent chain in the kernel:
    #   h <- da_t * h + bu_t            (pure VPU broadcast FMA, 2 vregs)
    #   y_t = sum_s C_t[s] * h[s, :]    (static lane slice of ccol + sublane reduce)
    # y rows are accumulated in registers and stored as ONE dense (UNROLL, di)
    # slab per chunk (no sublane-masked stores in the loop).
    def scan_chunk(tt, h):
        base = pl.multiple_of(tt * UNROLL, UNROLL)
        cc = ccol_scr[tt]                                        # (ds, UNROLL)
        rows = []
        for j in range(UNROLL):
            t = base + j
            h = da_scr[t] * h + bu_scr[t]                        # (ds, di)
            rows.append(jnp.sum(cc[:, j:j + 1] * h, axis=0, keepdims=True))
        y_scr[pl.ds(base, UNROLL), :] = jnp.concatenate(rows, axis=0)
        return h

    lax.fori_loop(0, n_chunks, scan_chunk, jnp.zeros((ds, di), jnp.float32))

    # epilogue (bulk): D skip connection, SiLU gating, out_proj
    y = y_scr[...] + u_scr[...] * dprm_ref[...]
    y = y * _silu(z_scr[...])
    fmam = _mxu_dot(y, wout_ref[...])                            # (L, D)

    # -------- stage 3: residual + LayerNorm + mlp_a + mlp_b + sigmoid --------
    f = _layernorm(fmam + fts1_scr[...], lng_ref[...], lnb_ref[...])
    # s = sum_l wb[l] * (f[l]·wa + ba) + bb  ==  (wb^T f)·wa + ba*sum(wb) + bb
    # (valid: the module has no nonlinearity between mlp_a and mlp_b)
    r = jnp.sum(f * wb_ref[...], axis=0, keepdims=True)          # (1, D)
    wb_sum = jnp.sum(wb_ref[...], axis=0, keepdims=True)         # (1, 1)
    s = (jnp.sum(r * wa_ref[...], axis=1, keepdims=True)
         + ba_ref[...] * wb_sum + bb_ref[...])
    o_ref[...] = _sigmoid(s)


# --------------------------------------------------------------------------- #
# Forward wrapper (glue in plain JAX, all compute in one Pallas kernel)
# --------------------------------------------------------------------------- #
def _forward(spt_fts, qry_fts, params):
    B, dim, h, w = spt_fts.shape
    L = 2 * h * w
    assert B == 1 and L == SEQ_LEN
    di = params["dprm"].shape[1]
    ds = params["alog_t"].shape[0]

    # torch .view(B, h*w, dim) of a contiguous NCHW tensor == row-major reshape
    spt = jnp.reshape(spt_fts, (B, h * w, dim)).astype(jnp.float32)
    qry = jnp.reshape(qry_fts, (B, h * w, dim)).astype(jnp.float32)
    fts = jnp.concatenate([spt, qry], axis=1)[0]                 # (L, dim)

    vmem = pl.BlockSpec(memory_space=pltpu.MemorySpace.VMEM)
    out = pl.pallas_call(
        _factor_learning_kernel,
        out_shape=jax.ShapeDtypeStruct((1, 1), jnp.float32),
        in_specs=[vmem] * 18,
        out_specs=vmem,
        scratch_shapes=[
            pltpu.VMEM((L, di), jnp.float32),                    # dt (softplus'd)
            pltpu.VMEM((L, ds), jnp.float32),                    # B rows
            pltpu.VMEM((L, ds), jnp.float32),                    # C rows
            pltpu.VMEM((L, ds, di), jnp.float32),                # exp(dt * A)
            pltpu.VMEM((L, ds, di), jnp.float32),                # B ⊗ (dt * u)
            pltpu.VMEM((L // UNROLL, ds, UNROLL), jnp.float32),  # C columns per chunk
            pltpu.VMEM((L, di), jnp.float32),                    # y (scan output)
            pltpu.VMEM((L, di), jnp.float32),                    # u (conv-activated x)
            pltpu.VMEM((L, di), jnp.float32),                    # z (gate)
            pltpu.VMEM((L, dim), jnp.float32),                   # fts1 (residual input)
        ],
    )(fts,
      params["conv_wcat"], params["conv_b"], params["ln_g"], params["ln_b"],
      params["win"], params["conv_dw_w"], params["conv_dw_b"],
      params["wx_cat"], params["wdt"], params["bdt"],
      params["alog_t"], params["dprm"], params["wout"],
      params["wa_row"], params["ba"], params["wb"], params["bb"])
    return jnp.reshape(out, (B,))


factor_learning_forward = jax.jit(_forward)


# --------------------------------------------------------------------------- #
# Parameter init (deterministic, synthetic — no checkpoint loading)
# --------------------------------------------------------------------------- #
def init_params(key, dim):
    d_inner = 2 * dim
    d_state = D_STATE
    d_conv = D_CONV
    dt_rank = math.ceil(dim / 16)
    L = SEQ_LEN
    assert dt_rank <= LANE and d_state <= LANE
    keys = jax.random.split(key, 16)

    def unif(k, shape, scale):
        return jax.random.uniform(k, shape, jnp.float32, -scale, scale)

    p = {}
    # Conv1d(dim, dim, k=3) — weight (co, ci, k); fused taps [W0 | W1 | W2], Wk = w[:,:,k].T
    w_conv = unif(keys[0], (dim, dim, 3), 1.0 / math.sqrt(dim * 3))
    p["conv_wcat"] = jnp.concatenate(
        [jnp.transpose(w_conv[:, :, 0]),
         jnp.transpose(w_conv[:, :, 1]),
         jnp.transpose(w_conv[:, :, 2])], axis=1).astype(jnp.bfloat16)       # (dim, 3*dim)
    p["conv_b"] = unif(keys[1], (1, dim), 1.0 / math.sqrt(dim * 3))
    # shared LayerNorm (applied twice with the same parameters, as in the module)
    p["ln_g"] = jnp.ones((1, dim), jnp.float32)
    p["ln_b"] = jnp.zeros((1, dim), jnp.float32)
    # Mamba parameters (bf16 for the big projections, cast once here)
    p["win"] = unif(keys[2], (dim, 2 * d_inner),
                    1.0 / math.sqrt(dim)).astype(jnp.bfloat16)               # in_proj.T
    p["conv_dw_w"] = unif(keys[3], (d_conv, d_inner), 1.0 / math.sqrt(d_conv))  # [k, c]
    p["conv_dw_b"] = unif(keys[4], (1, d_inner), 1.0 / math.sqrt(d_conv))
    # x_proj.T, laid out so dt / B / C each start at lane 0 of their own 128-lane block
    wx_dt = unif(keys[5], (d_inner, dt_rank), 1.0 / math.sqrt(d_inner))
    wx_b = unif(keys[6], (d_inner, d_state), 1.0 / math.sqrt(d_inner))
    wx_c = unif(keys[7], (d_inner, d_state), 1.0 / math.sqrt(d_inner))
    wx_pad = jnp.zeros((d_inner, 3 * LANE), jnp.float32)
    wx_pad = wx_pad.at[:, :dt_rank].set(wx_dt)
    wx_pad = wx_pad.at[:, LANE:LANE + d_state].set(wx_b)
    wx_pad = wx_pad.at[:, 2 * LANE:2 * LANE + d_state].set(wx_c)
    p["wx_cat"] = wx_pad                                                     # (d_inner, 3*LANE)
    # dt_proj, zero-padded on the dt_rank axis to LANE rows (aligned matmul)
    wdt = unif(keys[8], (dt_rank, d_inner), dt_rank ** -0.5)
    p["wdt"] = jnp.zeros((LANE, d_inner), jnp.float32).at[:dt_rank, :].set(wdt)
    dt0 = jnp.exp(jax.random.uniform(keys[9], (1, d_inner), jnp.float32,
                                     math.log(1e-3), math.log(1e-1)))
    p["bdt"] = dt0 + jnp.log(-jnp.expm1(-dt0))                   # inverse softplus
    p["alog_t"] = jnp.log(jnp.broadcast_to(
        jnp.arange(1, d_state + 1, dtype=jnp.float32)[:, None], (d_state, d_inner)))
    p["dprm"] = jnp.ones((1, d_inner), jnp.float32)
    p["wout"] = unif(keys[10], (d_inner, dim),
                     1.0 / math.sqrt(d_inner)).astype(jnp.bfloat16)          # out_proj.T
    # mlp_a: Linear(dim, 1) (weight passed as a (1, dim) row); mlp_b: Linear(128, 1)
    p["wa_row"] = unif(keys[11], (1, dim), 1.0 / math.sqrt(dim))
    p["ba"] = unif(keys[12], (1, 1), 1.0 / math.sqrt(dim))
    p["wb"] = unif(keys[13], (L, 1), 1.0 / math.sqrt(L))
    p["bb"] = unif(keys[14], (1, 1), 1.0 / math.sqrt(L))
    return p


if __name__ == "__main__":
    dim, h, w = 64, 8, 8   # 8x8 spatial is fixed by mlp_b = Linear(128, 1)
    key = jax.random.PRNGKey(0)
    kp, ks, kq = jax.random.split(key, 3)
    params = init_params(kp, dim)
    spt = jax.random.normal(ks, (1, dim, h, w), jnp.float32)
    qry = jax.random.normal(kq, (1, dim, h, w), jnp.float32)
    out = factor_learning_forward(spt, qry, params)
    jax.block_until_ready(out)
    assert out.shape == (1,)
    assert bool(jnp.all(jnp.isfinite(out)))
    print("KERNEL_OK")
</pallas_src>

<mosaic_0001>
module attributes {stable_mosaic.version = 11 : i64} {
  func.func @_factor_learning_kernel(%arg0: memref<128x64xf32, #tpu.memory_space<vmem>>, %arg1: memref<64x192xbf16, #tpu.memory_space<vmem>>, %arg2: memref<1x64xf32, #tpu.memory_space<vmem>>, %arg3: memref<1x64xf32, #tpu.memory_space<vmem>>, %arg4: memref<1x64xf32, #tpu.memory_space<vmem>>, %arg5: memref<64x256xbf16, #tpu.memory_space<vmem>>, %arg6: memref<4x128xf32, #tpu.memory_space<vmem>>, %arg7: memref<1x128xf32, #tpu.memory_space<vmem>>, %arg8: memref<128x384xf32, #tpu.memory_space<vmem>>, %arg9: memref<128x128xf32, #tpu.memory_space<vmem>>, %arg10: memref<1x128xf32, #tpu.memory_space<vmem>>, %arg11: memref<16x128xf32, #tpu.memory_space<vmem>>, %arg12: memref<1x128xf32, #tpu.memory_space<vmem>>, %arg13: memref<128x64xbf16, #tpu.memory_space<vmem>>, %arg14: memref<1x64xf32, #tpu.memory_space<vmem>>, %arg15: memref<1x1xf32, #tpu.memory_space<vmem>>, %arg16: memref<128x1xf32, #tpu.memory_space<vmem>>, %arg17: memref<1x1xf32, #tpu.memory_space<vmem>>, %arg18: memref<1x1xf32, #tpu.memory_space<vmem>>, %arg19: memref<128x128xf32, #tpu.memory_space<vmem>>, %arg20: memref<128x16xf32, #tpu.memory_space<vmem>>, %arg21: memref<128x16xf32, #tpu.memory_space<vmem>>, %arg22: memref<128x16x128xf32, #tpu.memory_space<vmem>>, %arg23: memref<128x16x128xf32, #tpu.memory_space<vmem>>, %arg24: memref<16x16x8xf32, #tpu.memory_space<vmem>>, %arg25: memref<128x128xf32, #tpu.memory_space<vmem>>, %arg26: memref<128x128xf32, #tpu.memory_space<vmem>>, %arg27: memref<128x128xf32, #tpu.memory_space<vmem>>, %arg28: memref<128x64xf32, #tpu.memory_space<vmem>>) attributes {dimension_semantics = [], scalar_prefetch = 0 : i64, scratch_operands = 10 : i64, tpu.core_type = #tpu.core_type<tc>} {
    %c0 = arith.constant 0 : index
    %c0_0 = arith.constant 0 : index
    %0 = vector.load %arg0[%c0, %c0_0] : memref<128x64xf32, #tpu.memory_space<vmem>>, vector<128x64xf32>
    %cst = arith.constant 0.000000e+00 : f32
    %1 = vector.broadcast %cst : f32 to vector<1x64xf32>
    %c0_1 = arith.constant 0 : index
    %c0_2 = arith.constant 0 : index
    %2 = vector.load %arg1[%c0_1, %c0_2] : memref<64x192xbf16, #tpu.memory_space<vmem>>, vector<64x192xbf16>
    %3 = arith.truncf %0 : vector<128x64xf32> to vector<128x64xbf16>
    %cst_3 = arith.constant dense<0.000000e+00> : vector<128x192xf32>
    %4 = tpu.matmul %3, %2, %cst_3 {dimension_numbers = #tpu.dot_dimension_numbers<[1], [0], [0], [1], [0, 0, 1, 1], [], []>} : vector<128x64xbf16>, vector<64x192xbf16>, vector<128x192xf32> -> vector<128x192xf32>
    %5 = vector.extract_strided_slice %4 {offsets = [0, 0], sizes = [128, 64], strides = [1, 1]} : vector<128x192xf32> to vector<128x64xf32>
    %6 = vector.extract_strided_slice %4 {offsets = [0, 64], sizes = [128, 64], strides = [1, 1]} : vector<128x192xf32> to vector<128x64xf32>
    %7 = vector.extract_strided_slice %4 {offsets = [0, 128], sizes = [128, 64], strides = [1, 1]} : vector<128x192xf32> to vector<128x64xf32>
    %8 = vector.extract_strided_slice %5 {offsets = [0, 0], sizes = [127, 64], strides = [1, 1]} : vector<128x64xf32> to vector<127x64xf32>
    %9 = tpu.concatenate %1, %8 in 0 : vector<1x64xf32>, vector<127x64xf32> -> vector<128x64xf32>
    %10 = arith.addf %9, %6 : vector<128x64xf32>
    %11 = vector.extract_strided_slice %7 {offsets = [1, 0], sizes = [127, 64], strides = [1, 1]} : vector<128x64xf32> to vector<127x64xf32>
    %12 = tpu.concatenate %11, %1 in 0 : vector<127x64xf32>, vector<1x64xf32> -> vector<128x64xf32>
    %13 = arith.addf %10, %12 : vector<128x64xf32>
    %c0_4 = arith.constant 0 : index
    %c0_5 = arith.constant 0 : index
    %14 = vector.load %arg2[%c0_4, %c0_5] : memref<1x64xf32, #tpu.memory_space<vmem>>, vector<1x64xf32>
    %15 = vector.broadcast %14 : vector<1x64xf32> to vector<128x64xf32>
    %16 = arith.addf %13, %15 : vector<128x64xf32>
    %c0_6 = arith.constant 0 : index
    %c0_7 = arith.constant 0 : index
    %17 = vector.load %arg3[%c0_6, %c0_7] : memref<1x64xf32, #tpu.memory_space<vmem>>, vector<1x64xf32>
    %c0_8 = arith.constant 0 : index
    %c0_9 = arith.constant 0 : index
    %18 = vector.load %arg4[%c0_8, %c0_9] : memref<1x64xf32, #tpu.memory_space<vmem>>, vector<1x64xf32>
    %cst_10 = arith.constant dense<0.000000e+00> : vector<128xf32>
    %19 = vector.multi_reduction <add>, %16, %cst_10 [1] : vector<128x64xf32> to vector<128xf32>
    %20 = vector.shape_cast %19 : vector<128xf32> to vector<128x1xf32>
    %cst_11 = arith.constant 6.400000e+01 : f32
    %21 = vector.broadcast %cst_11 : f32 to vector<128x1xf32>
    %22 = arith.divf %20, %21 : vector<128x1xf32>
    %23 = vector.broadcast %22 : vector<128x1xf32> to vector<128x64xf32>
    %24 = arith.subf %16, %23 : vector<128x64xf32>
    %25 = arith.mulf %24, %24 : vector<128x64xf32>
    %cst_12 = arith.constant dense<0.000000e+00> : vector<128xf32>
    %26 = vector.multi_reduction <add>, %25, %cst_12 [1] : vector<128x64xf32> to vector<128xf32>
    %27 = vector.shape_cast %26 : vector<128xf32> to vector<128x1xf32>
    %cst_13 = arith.constant 6.400000e+01 : f32
    %28 = vector.broadcast %cst_13 : f32 to vector<128x1xf32>
    %29 = arith.divf %27, %28 : vector<128x1xf32>
    %30 = vector.broadcast %22 : vector<128x1xf32> to vector<128x64xf32>
    %31 = arith.subf %16, %30 : vector<128x64xf32>
    %cst_14 = arith.constant 9.99999974E-6 : f32
    %32 = vector.broadcast %cst_14 : f32 to vector<128x1xf32>
    %33 = arith.addf %29, %32 : vector<128x1xf32>
    %34 = math.rsqrt %33 : vector<128x1xf32>
    %35 = vector.broadcast %34 : vector<128x1xf32> to vector<128x64xf32>
    %36 = arith.mulf %31, %35 : vector<128x64xf32>
    %37 = vector.broadcast %17 : vector<1x64xf32> to vector<128x64xf32>
    %38 = arith.mulf %36, %37 : vector<128x64xf32>
    %39 = vector.broadcast %18 : vector<1x64xf32> to vector<128x64xf32>
    %40 = arith.addf %38, %39 : vector<128x64xf32>
    %cst_15 = arith.constant 0.000000e+00 : f32
    %41 = vector.broadcast %cst_15 : f32 to vector<128x64xf32>
    %42 = arith.maximumf %40, %41 : vector<128x64xf32>
    %c0_16 = arith.constant 0 : index
    %c0_17 = arith.constant 0 : index
    %43 = vector.load %arg28[%c0_16, %c0_17] : memref<128x64xf32, #tpu.memory_space<vmem>>, vector<128x64xf32>
    tpu.vector_store %arg28[%c0_16, %c0_17], %42 {strides = array<i32>} : memref<128x64xf32, #tpu.memory_space<vmem>>, vector<128x64xf32>,
    %c0_18 = arith.constant 0 : index
    %c0_19 = arith.constant 0 : index
    %44 = vector.load %arg5[%c0_18, %c0_19] : memref<64x256xbf16, #tpu.memory_space<vmem>>, vector<64x256xbf16>
    %45 = arith.truncf %42 : vector<128x64xf32> to vector<128x64xbf16>
    %cst_20 = arith.constant dense<0.000000e+00> : vector<128x256xf32>
    %46 = tpu.matmul %45, %44, %cst_20 {dimension_numbers = #tpu.dot_dimension_numbers<[1], [0], [0], [1], [0, 0, 1, 1], [], []>} : vector<128x64xbf16>, vector<64x256xbf16>, vector<128x256xf32> -> vector<128x256xf32>
    %47 = vector.extract_strided_slice %46 {offsets = [0, 0], sizes = [128, 128], strides = [1, 1]} : vector<128x256xf32> to vector<128x128xf32>
    %48 = vector.extract_strided_slice %46 {offsets = [0, 128], sizes = [128, 128], strides = [1, 1]} : vector<128x256xf32> to vector<128x128xf32>
    %c0_21 = arith.constant 0 : index
    %c0_22 = arith.constant 0 : index
    %49 = vector.load %arg27[%c0_21, %c0_22] : memref<128x128xf32, #tpu.memory_space<vmem>>, vector<128x128xf32>
    tpu.vector_store %arg27[%c0_21, %c0_22], %48 {strides = array<i32>} : memref<128x128xf32, #tpu.memory_space<vmem>>, vector<128x128xf32>,
    %c0_23 = arith.constant 0 : index
    %c0_24 = arith.constant 0 : index
    %50 = vector.load %arg7[%c0_23, %c0_24] : memref<1x128xf32, #tpu.memory_space<vmem>>, vector<1x128xf32>
    %51 = vector.shape_cast %50 : vector<1x128xf32> to vector<1x128xf32>
    %52 = vector.broadcast %51 : vector<1x128xf32> to vector<128x128xf32>
    %cst_25 = arith.constant 0.000000e+00 : f32
    %53 = vector.broadcast %cst_25 : f32 to vector<3x128xf32>
    %54 = vector.extract_strided_slice %47 {offsets = [0, 0], sizes = [125, 128], strides = [1, 1]} : vector<128x128xf32> to vector<125x128xf32>
    %55 = tpu.concatenate %53, %54 in 0 : vector<3x128xf32>, vector<125x128xf32> -> vector<128x128xf32>
    %c0_26 = arith.constant 0 : index
    %c0_27 = arith.constant 0 : index
    %56 = vector.load %arg6[%c0_26, %c0_27] : memref<4x128xf32, #tpu.memory_space<vmem>>, vector<1x128xf32>
    %57 = vector.broadcast %56 : vector<1x128xf32> to vector<128x128xf32>
    %58 = arith.mulf %55, %57 : vector<128x128xf32>
    %59 = arith.addf %52, %58 : vector<128x128xf32>
    %cst_28 = arith.constant 0.000000e+00 : f32
    %60 = vector.broadcast %cst_28 : f32 to vector<2x128xf32>
    %61 = vector.extract_strided_slice %47 {offsets = [0, 0], sizes = [126, 128], strides = [1, 1]} : vector<128x128xf32> to vector<126x128xf32>
    %62 = tpu.concatenate %60, %61 in 0 : vector<2x128xf32>, vector<126x128xf32> -> vector<128x128xf32>
    %c1 = arith.constant 1 : index
    %c0_29 = arith.constant 0 : index
    %63 = vector.load %arg6[%c1, %c0_29] : memref<4x128xf32, #tpu.memory_space<vmem>>, vector<1x128xf32>
    %64 = vector.broadcast %63 : vector<1x128xf32> to vector<128x128xf32>
    %65 = arith.mulf %62, %64 : vector<128x128xf32>
    %66 = arith.addf %59, %65 : vector<128x128xf32>
    %cst_30 = arith.constant 0.000000e+00 : f32
    %67 = vector.broadcast %cst_30 : f32 to vector<1x128xf32>
    %68 = vector.extract_strided_slice %47 {offsets = [0, 0], sizes = [127, 128], strides = [1, 1]} : vector<128x128xf32> to vector<127x128xf32>
    %69 = tpu.concatenate %67, %68 in 0 : vector<1x128xf32>, vector<127x128xf32> -> vector<128x128xf32>
    %c2 = arith.constant 2 : index
    %c0_31 = arith.constant 0 : index
    %70 = vector.load %arg6[%c2, %c0_31] : memref<4x128xf32, #tpu.memory_space<vmem>>, vector<1x128xf32>
    %71 = vector.broadcast %70 : vector<1x128xf32> to vector<128x128xf32>
    %72 = arith.mulf %69, %71 : vector<128x128xf32>
    %73 = arith.addf %66, %72 : vector<128x128xf32>
    %c3 = arith.constant 3 : index
    %c0_32 = arith.constant 0 : index
    %74 = vector.load %arg6[%c3, %c0_32] : memref<4x128xf32, #tpu.memory_space<vmem>>, vector<1x128xf32>
    %75 = vector.broadcast %74 : vector<1x128xf32> to vector<128x128xf32>
    %76 = arith.mulf %47, %75 : vector<128x128xf32>
    %77 = arith.addf %73, %76 : vector<128x128xf32>
    %cst_33 = arith.constant 0.000000e+00 : f32
    %78 = vector.broadcast %cst_33 : f32 to vector<128x128xf32>
    %79 = arith.subf %78, %77 : vector<128x128xf32>
    %80 = math.exp %79 : vector<128x128xf32>
    %cst_34 = arith.constant 1.000000e+00 : f32
    %81 = vector.broadcast %cst_34 : f32 to vector<128x128xf32>
    %82 = arith.addf %81, %80 : vector<128x128xf32>
    %cst_35 = arith.constant 1.000000e+00 : f32
    %83 = vector.broadcast %cst_35 : f32 to vector<128x128xf32>
    %84 = arith.divf %83, %82 : vector<128x128xf32>
    %85 = arith.mulf %77, %84 : vector<128x128xf32>
    %c0_36 = arith.constant 0 : index
    %c0_37 = arith.constant 0 : index
    %86 = vector.load %arg26[%c0_36, %c0_37] : memref<128x128xf32, #tpu.memory_space<vmem>>, vector<128x128xf32>
    tpu.vector_store %arg26[%c0_36, %c0_37], %85 {strides = array<i32>} : memref<128x128xf32, #tpu.memory_space<vmem>>, vector<128x128xf32>,
    %c0_38 = arith.constant 0 : index
    %c0_39 = arith.constant 0 : index
    %87 = vector.load %arg8[%c0_38, %c0_39] : memref<128x384xf32, #tpu.memory_space<vmem>>, vector<128x384xf32>
    %cst_40 = arith.constant dense<0.000000e+00> : vector<128x384xf32>
    %88 = tpu.matmul %85, %87, %cst_40 {dimension_numbers = #tpu.dot_dimension_numbers<[1], [0], [0], [1], [0, 0, 1, 1], [], []>} : vector<128x128xf32>, vector<128x384xf32>, vector<128x384xf32> -> vector<128x384xf32>
    %89 = vector.extract_strided_slice %88 {offsets = [0, 0], sizes = [128, 128], strides = [1, 1]} : vector<128x384xf32> to vector<128x128xf32>
    %c0_41 = arith.constant 0 : index
    %c0_42 = arith.constant 0 : index
    %90 = vector.load %arg9[%c0_41, %c0_42] : memref<128x128xf32, #tpu.memory_space<vmem>>, vector<128x128xf32>
    %cst_43 = arith.constant dense<0.000000e+00> : vector<128x128xf32>
    %91 = tpu.matmul %89, %90, %cst_43 {dimension_numbers = #tpu.dot_dimension_numbers<[1], [0], [0], [1], [0, 0, 1, 1], [], []>} : vector<128x128xf32>, vector<128x128xf32>, vector<128x128xf32> -> vector<128x128xf32>
    %c0_44 = arith.constant 0 : index
    %c0_45 = arith.constant 0 : index
    %92 = vector.load %arg10[%c0_44, %c0_45] : memref<1x128xf32, #tpu.memory_space<vmem>>, vector<1x128xf32>
    %93 = vector.broadcast %92 : vector<1x128xf32> to vector<128x128xf32>
    %94 = arith.addf %91, %93 : vector<128x128xf32>
    %cst_46 = arith.constant 2.000000e+01 : f32
    %95 = vector.broadcast %cst_46 : f32 to vector<128x128xf32>
    %96 = arith.cmpf ogt, %94, %95 : vector<128x128xf32>
    %cst_47 = arith.constant 2.000000e+01 : f32
    %97 = vector.broadcast %cst_47 : f32 to vector<128x128xf32>
    %98 = arith.minimumf %94, %97 : vector<128x128xf32>
    %99 = math.exp %98 : vector<128x128xf32>
    %cst_48 = arith.constant 1.000000e+00 : f32
    %100 = vector.broadcast %cst_48 : f32 to vector<128x128xf32>
    %101 = arith.addf %100, %99 : vector<128x128xf32>
    %102 = math.log %101 : vector<128x128xf32>
    %103 = arith.select %96, %94, %102 : vector<128x128xi1>, vector<128x128xf32>
    %c0_49 = arith.constant 0 : index
    %c0_50 = arith.constant 0 : index
    %104 = vector.load %arg19[%c0_49, %c0_50] : memref<128x128xf32, #tpu.memory_space<vmem>>, vector<128x128xf32>
    tpu.vector_store %arg19[%c0_49, %c0_50], %103 {strides = array<i32>} : memref<128x128xf32, #tpu.memory_space<vmem>>, vector<128x128xf32>,
    %105 = vector.extract_strided_slice %88 {offsets = [0, 128], sizes = [128, 16], strides = [1, 1]} : vector<128x384xf32> to vector<128x16xf32>
    %c0_51 = arith.constant 0 : index
    %c0_52 = arith.constant 0 : index
    %106 = vector.load %arg20[%c0_51, %c0_52] : memref<128x16xf32, #tpu.memory_space<vmem>>, vector<128x16xf32>
    tpu.vector_store %arg20[%c0_51, %c0_52], %105 {strides = array<i32>} : memref<128x16xf32, #tpu.memory_space<vmem>>, vector<128x16xf32>,
    %107 = vector.extract_strided_slice %88 {offsets = [0, 256], sizes = [128, 16], strides = [1, 1]} : vector<128x384xf32> to vector<128x16xf32>
    %c0_53 = arith.constant 0 : index
    %c0_54 = arith.constant 0 : index
    %108 = vector.load %arg21[%c0_53, %c0_54] : memref<128x16xf32, #tpu.memory_space<vmem>>, vector<128x16xf32>
    tpu.vector_store %arg21[%c0_53, %c0_54], %107 {strides = array<i32>} : memref<128x16xf32, #tpu.memory_space<vmem>>, vector<128x16xf32>,
    %c0_55 = arith.constant 0 : index
    %c0_56 = arith.constant 0 : index
    %109 = vector.load %arg11[%c0_55, %c0_56] : memref<16x128xf32, #tpu.memory_space<vmem>>, vector<16x128xf32>
    %110 = math.exp %109 : vector<16x128xf32>
    %cst_57 = arith.constant 0.000000e+00 : f32
    %111 = vector.broadcast %cst_57 : f32 to vector<16x128xf32>
    %112 = arith.subf %111, %110 : vector<16x128xf32>
    %113 = tpu.iota {dimensions = array<i32: 0>} : vector<16x16xi32>
    %114 = tpu.iota {dimensions = array<i32: 1>} : vector<16x16xi32>
    %115 = arith.cmpi eq, %113, %114 : vector<16x16xi32>
    %c0_i32 = arith.constant 0 : i32
    %c16_i32 = arith.constant 16 : i32
    %116 = arith.addi %c0_i32, %c16_i32 : i32
    %c1_i32 = arith.constant 1 : i32
    scf.for %arg29 = %c0_i32 to %116 step %c1_i32  : i32 {
      %c8_i32 = arith.constant 8 : i32
      %190 = arith.muli %arg29, %c8_i32 : i32
      %191 = tpu.assume_multiple %190, 8 : i32
      %192 = arith.index_cast %191 : i32 to index
      %c0_107 = arith.constant 0 : index
      %193 = vector.load %arg19[%192, %c0_107] : memref<128x128xf32, #tpu.memory_space<vmem>>, vector<8x128xf32>
      %194 = arith.index_cast %191 : i32 to index
      %c0_108 = arith.constant 0 : index
      %195 = vector.load %arg26[%194, %c0_108] : memref<128x128xf32, #tpu.memory_space<vmem>>, vector<8x128xf32>
      %196 = arith.mulf %193, %195 : vector<8x128xf32>
      %197 = arith.index_cast %191 : i32 to index
      %c0_109 = arith.constant 0 : index
      %198 = vector.load %arg20[%197, %c0_109] : memref<128x16xf32, #tpu.memory_space<vmem>>, vector<8x16xf32>
      %199 = arith.index_cast %191 : i32 to index
      %c0_110 = arith.constant 0 : index
      %200 = vector.load %arg21[%199, %c0_110] : memref<128x16xf32, #tpu.memory_space<vmem>>, vector<8x16xf32>
      %c0_i32_111 = arith.constant 0 : i32
      %201 = arith.addi %191, %c0_i32_111 : i32
      %202 = vector.extract_strided_slice %193 {offsets = [0, 0], sizes = [1, 128], strides = [1, 1]} : vector<8x128xf32> to vector<1x128xf32>
      %203 = vector.broadcast %202 : vector<1x128xf32> to vector<16x128xf32>
      %204 = arith.mulf %203, %112 : vector<16x128xf32>
      %205 = math.exp %204 : vector<16x128xf32>
      %206 = arith.index_cast %201 : i32 to index
      %c0_112 = arith.constant 0 : index
      %c0_113 = arith.constant 0 : index
      %207 = vector.load %arg22[%206, %c0_112, %c0_113] : memref<128x16x128xf32, #tpu.memory_space<vmem>>, vector<1x16x128xf32>
      %208 = vector.shape_cast %207 : vector<1x16x128xf32> to vector<16x128xf32>
      %209 = vector.shape_cast %205 : vector<16x128xf32> to vector<1x16x128xf32>
      tpu.vector_store %arg22[%206, %c0_112, %c0_113], %209 {strides = array<i32>} : memref<128x16x128xf32, #tpu.memory_space<vmem>>, vector<1x16x128xf32>,
      %210 = vector.extract_strided_slice %198 {offsets = [0, 0], sizes = [1, 16], strides = [1, 1]} : vector<8x16xf32> to vector<1x16xf32>
      %211 = vector.shape_cast %210 : vector<1x16xf32> to vector<1x16xf32>
      %212 = vector.broadcast %211 : vector<1x16xf32> to vector<16x16xf32>
      %cst_114 = arith.constant 0.000000e+00 : f32
      %213 = vector.broadcast %cst_114 : f32 to vector<16x16xf32>
      %214 = arith.select %115, %212, %213 : vector<16x16xi1>, vector<16x16xf32>
      %cst_115 = arith.constant dense<0.000000e+00> : vector<16xf32>
      %215 = vector.multi_reduction <add>, %214, %cst_115 [1] : vector<16x16xf32> to vector<16xf32>
      %216 = vector.shape_cast %215 : vector<16xf32> to vector<16x1xf32>
      %217 = vector.extract_strided_slice %196 {offsets = [0, 0], sizes = [1, 128], strides = [1, 1]} : vector<8x128xf32> to vector<1x128xf32>
      %218 = vector.broadcast %216 : vector<16x1xf32> to vector<16x128xf32>
      %219 = vector.broadcast %217 : vector<1x128xf32> to vector<16x128xf32>
      %220 = arith.mulf %218, %219 : vector<16x128xf32>
      %221 = arith.index_cast %201 : i32 to index
      %c0_116 = arith.constant 0 : index
      %c0_117 = arith.constant 0 : index
      %222 = vector.load %arg23[%221, %c0_116, %c0_117] : memref<128x16x128xf32, #tpu.memory_space<vmem>>, vector<1x16x128xf32>
      %223 = vector.shape_cast %222 : vector<1x16x128xf32> to vector<16x128xf32>
      %224 = vector.shape_cast %220 : vector<16x128xf32> to vector<1x16x128xf32>
      tpu.vector_store %arg23[%221, %c0_116, %c0_117], %224 {strides = array<i32>} : memref<128x16x128xf32, #tpu.memory_space<vmem>>, vector<1x16x128xf32>,
      %225 = vector.extract_strided_slice %200 {offsets = [0, 0], sizes = [1, 16], strides = [1, 1]} : vector<8x16xf32> to vector<1x16xf32>
      %226 = vector.shape_cast %225 : vector<1x16xf32> to vector<1x16xf32>
      %227 = vector.broadcast %226 : vector<1x16xf32> to vector<16x16xf32>
      %cst_118 = arith.constant 0.000000e+00 : f32
      %228 = vector.broadcast %cst_118 : f32 to vector<16x16xf32>
      %229 = arith.select %115, %227, %228 : vector<16x16xi1>, vector<16x16xf32>
      %cst_119 = arith.constant dense<0.000000e+00> : vector<16xf32>
      %230 = vector.multi_reduction <add>, %229, %cst_119 [1] : vector<16x16xf32> to vector<16xf32>
      %231 = vector.shape_cast %230 : vector<16xf32> to vector<16x1xf32>
      %c1_i32_120 = arith.constant 1 : i32
      %232 = arith.addi %191, %c1_i32_120 : i32
      %233 = vector.extract_strided_slice %193 {offsets = [1, 0], sizes = [1, 128], strides = [1, 1]} : vector<8x128xf32> to vector<1x128xf32>
      %234 = vector.broadcast %233 : vector<1x128xf32> to vector<16x128xf32>
      %235 = arith.mulf %234, %112 : vector<16x128xf32>
      %236 = math.exp %235 : vector<16x128xf32>
      %237 = arith.index_cast %232 : i32 to index
      %c0_121 = arith.constant 0 : index
      %c0_122 = arith.constant 0 : index
      %238 = vector.load %arg22[%237, %c0_121, %c0_122] : memref<128x16x128xf32, #tpu.memory_space<vmem>>, vector<1x16x128xf32>
      %239 = vector.shape_cast %238 : vector<1x16x128xf32> to vector<16x128xf32>
      %240 = vector.shape_cast %236 : vector<16x128xf32> to vector<1x16x128xf32>
      tpu.vector_store %arg22[%237, %c0_121, %c0_122], %240 {strides = array<i32>} : memref<128x16x128xf32, #tpu.memory_space<vmem>>, vector<1x16x128xf32>,
      %241 = vector.extract_strided_slice %198 {offsets = [1, 0], sizes = [1, 16], strides = [1, 1]} : vector<8x16xf32> to vector<1x16xf32>
      %242 = vector.shape_cast %241 : vector<1x16xf32> to vector<1x16xf32>
      %243 = vector.broadcast %242 : vector<1x16xf32> to vector<16x16xf32>
      %cst_123 = arith.constant 0.000000e+00 : f32
      %244 = vector.broadcast %cst_123 : f32 to vector<16x16xf32>
      %245 = arith.select %115, %243, %244 : vector<16x16xi1>, vector<16x16xf32>
      %cst_124 = arith.constant dense<0.000000e+00> : vector<16xf32>
      %246 = vector.multi_reduction <add>, %245, %cst_124 [1] : vector<16x16xf32> to vector<16xf32>
      %247 = vector.shape_cast %246 : vector<16xf32> to vector<16x1xf32>
      %248 = vector.extract_strided_slice %196 {offsets = [1, 0], sizes = [1, 128], strides = [1, 1]} : vector<8x128xf32> to vector<1x128xf32>
      %249 = vector.broadcast %247 : vector<16x1xf32> to vector<16x128xf32>
      %250 = vector.broadcast %248 : vector<1x128xf32> to vector<16x128xf32>
      %251 = arith.mulf %249, %250 : vector<16x128xf32>
      %252 = arith.index_cast %232 : i32 to index
      %c0_125 = arith.constant 0 : index
      %c0_126 = arith.constant 0 : index
      %253 = vector.load %arg23[%252, %c0_125, %c0_126] : memref<128x16x128xf32, #tpu.memory_space<vmem>>, vector<1x16x128xf32>
      %254 = vector.shape_cast %253 : vector<1x16x128xf32> to vector<16x128xf32>
      %255 = vector.shape_cast %251 : vector<16x128xf32> to vector<1x16x128xf32>
      tpu.vector_store %arg23[%252, %c0_125, %c0_126], %255 {strides = array<i32>} : memref<128x16x128xf32, #tpu.memory_space<vmem>>, vector<1x16x128xf32>,
      %256 = vector.extract_strided_slice %200 {offsets = [1, 0], sizes = [1, 16], strides = [1, 1]} : vector<8x16xf32> to vector<1x16xf32>
      %257 = vector.shape_cast %256 : vector<1x16xf32> to vector<1x16xf32>
      %258 = vector.broadcast %257 : vector<1x16xf32> to vector<16x16xf32>
      %cst_127 = arith.constant 0.000000e+00 : f32
      %259 = vector.broadcast %cst_127 : f32 to vector<16x16xf32>
      %260 = arith.select %115, %258, %259 : vector<16x16xi1>, vector<16x16xf32>
      %cst_128 = arith.constant dense<0.000000e+00> : vector<16xf32>
      %261 = vector.multi_reduction <add>, %260, %cst_128 [1] : vector<16x16xf32> to vector<16xf32>
      %262 = vector.shape_cast %261 : vector<16xf32> to vector<16x1xf32>
      %c2_i32 = arith.constant 2 : i32
      %263 = arith.addi %191, %c2_i32 : i32
      %264 = vector.extract_strided_slice %193 {offsets = [2, 0], sizes = [1, 128], strides = [1, 1]} : vector<8x128xf32> to vector<1x128xf32>
      %265 = vector.broadcast %264 : vector<1x128xf32> to vector<16x128xf32>
      %266 = arith.mulf %265, %112 : vector<16x128xf32>
      %267 = math.exp %266 : vector<16x128xf32>
      %268 = arith.index_cast %263 : i32 to index
      %c0_129 = arith.constant 0 : index
      %c0_130 = arith.constant 0 : index
      %269 = vector.load %arg22[%268, %c0_129, %c0_130] : memref<128x16x128xf32, #tpu.memory_space<vmem>>, vector<1x16x128xf32>
      %270 = vector.shape_cast %269 : vector<1x16x128xf32> to vector<16x128xf32>
      %271 = vector.shape_cast %267 : vector<16x128xf32> to vector<1x16x128xf32>
      tpu.vector_store %arg22[%268, %c0_129, %c0_130], %271 {strides = array<i32>} : memref<128x16x128xf32, #tpu.memory_space<vmem>>, vector<1x16x128xf32>,
      %272 = vector.extract_strided_slice %198 {offsets = [2, 0], sizes = [1, 16], strides = [1, 1]} : vector<8x16xf32> to vector<1x16xf32>
      %273 = vector.shape_cast %272 : vector<1x16xf32> to vector<1x16xf32>
      %274 = vector.broadcast %273 : vector<1x16xf32> to vector<16x16xf32>
      %cst_131 = arith.constant 0.000000e+00 : f32
      %275 = vector.broadcast %cst_131 : f32 to vector<16x16xf32>
      %276 = arith.select %115, %274, %275 : vector<16x16xi1>, vector<16x16xf32>
      %cst_132 = arith.constant dense<0.000000e+00> : vector<16xf32>
      %277 = vector.multi_reduction <add>, %276, %cst_132 [1] : vector<16x16xf32> to vector<16xf32>
      %278 = vector.shape_cast %277 : vector<16xf32> to vector<16x1xf32>
      %279 = vector.extract_strided_slice %196 {offsets = [2, 0], sizes = [1, 128], strides = [1, 1]} : vector<8x128xf32> to vector<1x128xf32>
      %280 = vector.broadcast %278 : vector<16x1xf32> to vector<16x128xf32>
      %281 = vector.broadcast %279 : vector<1x128xf32> to vector<16x128xf32>
      %282 = arith.mulf %280, %281 : vector<16x128xf32>
      %283 = arith.index_cast %263 : i32 to index
      %c0_133 = arith.constant 0 : index
      %c0_134 = arith.constant 0 : index
      %284 = vector.load %arg23[%283, %c0_133, %c0_134] : memref<128x16x128xf32, #tpu.memory_space<vmem>>, vector<1x16x128xf32>
      %285 = vector.shape_cast %284 : vector<1x16x128xf32> to vector<16x128xf32>
      %286 = vector.shape_cast %282 : vector<16x128xf32> to vector<1x16x128xf32>
      tpu.vector_store %arg23[%283, %c0_133, %c0_134], %286 {strides = array<i32>} : memref<128x16x128xf32, #tpu.memory_space<vmem>>, vector<1x16x128xf32>,
      %287 = vector.extract_strided_slice %200 {offsets = [2, 0], sizes = [1, 16], strides = [1, 1]} : vector<8x16xf32> to vector<1x16xf32>
      %288 = vector.shape_cast %287 : vector<1x16xf32> to vector<1x16xf32>
      %289 = vector.broadcast %288 : vector<1x16xf32> to vector<16x16xf32>
      %cst_135 = arith.constant 0.000000e+00 : f32
      %290 = vector.broadcast %cst_135 : f32 to vector<16x16xf32>
      %291 = arith.select %115, %289, %290 : vector<16x16xi1>, vector<16x16xf32>
      %cst_136 = arith.constant dense<0.000000e+00> : vector<16xf32>
      %292 = vector.multi_reduction <add>, %291, %cst_136 [1] : vector<16x16xf32> to vector<16xf32>
      %293 = vector.shape_cast %292 : vector<16xf32> to vector<16x1xf32>
      %c3_i32 = arith.constant 3 : i32
      %294 = arith.addi %191, %c3_i32 : i32
      %295 = vector.extract_strided_slice %193 {offsets = [3, 0], sizes = [1, 128], strides = [1, 1]} : vector<8x128xf32> to vector<1x128xf32>
      %296 = vector.broadcast %295 : vector<1x128xf32> to vector<16x128xf32>
      %297 = arith.mulf %296, %112 : vector<16x128xf32>
      %298 = math.exp %297 : vector<16x128xf32>
      %299 = arith.index_cast %294 : i32 to index
      %c0_137 = arith.constant 0 : index
      %c0_138 = arith.constant 0 : index
      %300 = vector.load %arg22[%299, %c0_137, %c0_138] : memref<128x16x128xf32, #tpu.memory_space<vmem>>, vector<1x16x128xf32>
      %301 = vector.shape_cast %300 : vector<1x16x128xf32> to vector<16x128xf32>
      %302 = vector.shape_cast %298 : vector<16x128xf32> to vector<1x16x128xf32>
      tpu.vector_store %arg22[%299, %c0_137, %c0_138], %302 {strides = array<i32>} : memref<128x16x128xf32, #tpu.memory_space<vmem>>, vector<1x16x128xf32>,
      %303 = vector.extract_strided_slice %198 {offsets = [3, 0], sizes = [1, 16], strides = [1, 1]} : vector<8x16xf32> to vector<1x16xf32>
      %304 = vector.shape_cast %303 : vector<1x16xf32> to vector<1x16xf32>
      %305 = vector.broadcast %304 : vector<1x16xf32> to vector<16x16xf32>
      %cst_139 = arith.constant 0.000000e+00 : f32
      %306 = vector.broadcast %cst_139 : f32 to vector<16x16xf32>
      %307 = arith.select %115, %305, %306 : vector<16x16xi1>, vector<16x16xf32>
      %cst_140 = arith.constant dense<0.000000e+00> : vector<16xf32>
      %308 = vector.multi_reduction <add>, %307, %cst_140 [1] : vector<16x16xf32> to vector<16xf32>
      %309 = vector.shape_cast %308 : vector<16xf32> to vector<16x1xf32>
      %310 = vector.extract_strided_slice %196 {offsets = [3, 0], sizes = [1, 128], strides = [1, 1]} : vector<8x128xf32> to vector<1x128xf32>
      %311 = vector.broadcast %309 : vector<16x1xf32> to vector<16x128xf32>
      %312 = vector.broadcast %310 : vector<1x128xf32> to vector<16x128xf32>
      %313 = arith.mulf %311, %312 : vector<16x128xf32>
      %314 = arith.index_cast %294 : i32 to index
      %c0_141 = arith.constant 0 : index
      %c0_142 = arith.constant 0 : index
      %315 = vector.load %arg23[%314, %c0_141, %c0_142] : memref<128x16x128xf32, #tpu.memory_space<vmem>>, vector<1x16x128xf32>
      %316 = vector.shape_cast %315 : vector<1x16x128xf32> to vector<16x128xf32>
      %317 = vector.shape_cast %313 : vector<16x128xf32> to vector<1x16x128xf32>
      tpu.vector_store %arg23[%314, %c0_141, %c0_142], %317 {strides = array<i32>} : memref<128x16x128xf32, #tpu.memory_space<vmem>>, vector<1x16x128xf32>,
      %318 = vector.extract_strided_slice %200 {offsets = [3, 0], sizes = [1, 16], strides = [1, 1]} : vector<8x16xf32> to vector<1x16xf32>
      %319 = vector.shape_cast %318 : vector<1x16xf32> to vector<1x16xf32>
      %320 = vector.broadcast %319 : vector<1x16xf32> to vector<16x16xf32>
      %cst_143 = arith.constant 0.000000e+00 : f32
      %321 = vector.broadcast %cst_143 : f32 to vector<16x16xf32>
      %322 = arith.select %115, %320, %321 : vector<16x16xi1>, vector<16x16xf32>
      %cst_144 = arith.constant dense<0.000000e+00> : vector<16xf32>
      %323 = vector.multi_reduction <add>, %322, %cst_144 [1] : vector<16x16xf32> to vector<16xf32>
      %324 = vector.shape_cast %323 : vector<16xf32> to vector<16x1xf32>
      %c4_i32 = arith.constant 4 : i32
      %325 = arith.addi %191, %c4_i32 : i32
      %326 = vector.extract_strided_slice %193 {offsets = [4, 0], sizes = [1, 128], strides = [1, 1]} : vector<8x128xf32> to vector<1x128xf32>
      %327 = vector.broadcast %326 : vector<1x128xf32> to vector<16x128xf32>
      %328 = arith.mulf %327, %112 : vector<16x128xf32>
      %329 = math.exp %328 : vector<16x128xf32>
      %330 = arith.index_cast %325 : i32 to index
      %c0_145 = arith.constant 0 : index
      %c0_146 = arith.constant 0 : index
      %331 = vector.load %arg22[%330, %c0_145, %c0_146] : memref<128x16x128xf32, #tpu.memory_space<vmem>>, vector<1x16x128xf32>
      %332 = vector.shape_cast %331 : vector<1x16x128xf32> to vector<16x128xf32>
      %333 = vector.shape_cast %329 : vector<16x128xf32> to vector<1x16x128xf32>
      tpu.vector_store %arg22[%330, %c0_145, %c0_146], %333 {strides = array<i32>} : memref<128x16x128xf32, #tpu.memory_space<vmem>>, vector<1x16x128xf32>,
      %334 = vector.extract_strided_slice %198 {offsets = [4, 0], sizes = [1, 16], strides = [1, 1]} : vector<8x16xf32> to vector<1x16xf32>
      %335 = vector.shape_cast %334 : vector<1x16xf32> to vector<1x16xf32>
      %336 = vector.broadcast %335 : vector<1x16xf32> to vector<16x16xf32>
      %cst_147 = arith.constant 0.000000e+00 : f32
      %337 = vector.broadcast %cst_147 : f32 to vector<16x16xf32>
      %338 = arith.select %115, %336, %337 : vector<16x16xi1>, vector<16x16xf32>
      %cst_148 = arith.constant dense<0.000000e+00> : vector<16xf32>
      %339 = vector.multi_reduction <add>, %338, %cst_148 [1] : vector<16x16xf32> to vector<16xf32>
      %340 = vector.shape_cast %339 : vector<16xf32> to vector<16x1xf32>
      %341 = vector.extract_strided_slice %196 {offsets = [4, 0], sizes = [1, 128], strides = [1, 1]} : vector<8x128xf32> to vector<1x128xf32>
      %342 = vector.broadcast %340 : vector<16x1xf32> to vector<16x128xf32>
      %343 = vector.broadcast %341 : vector<1x128xf32> to vector<16x128xf32>
      %344 = arith.mulf %342, %343 : vector<16x128xf32>
      %345 = arith.index_cast %325 : i32 to index
      %c0_149 = arith.constant 0 : index
      %c0_150 = arith.constant 0 : index
      %346 = vector.load %arg23[%345, %c0_149, %c0_150] : memref<128x16x128xf32, #tpu.memory_space<vmem>>, vector<1x16x128xf32>
      %347 = vector.shape_cast %346 : vector<1x16x128xf32> to vector<16x128xf32>
      %348 = vector.shape_cast %344 : vector<16x128xf32> to vector<1x16x128xf32>
      tpu.vector_store %arg23[%345, %c0_149, %c0_150], %348 {strides = array<i32>} : memref<128x16x128xf32, #tpu.memory_space<vmem>>, vector<1x16x128xf32>,
      %349 = vector.extract_strided_slice %200 {offsets = [4, 0], sizes = [1, 16], strides = [1, 1]} : vector<8x16xf32> to vector<1x16xf32>
      %350 = vector.shape_cast %349 : vector<1x16xf32> to vector<1x16xf32>
      %351 = vector.broadcast %350 : vector<1x16xf32> to vector<16x16xf32>
      %cst_151 = arith.constant 0.000000e+00 : f32
      %352 = vector.broadcast %cst_151 : f32 to vector<16x16xf32>
      %353 = arith.select %115, %351, %352 : vector<16x16xi1>, vector<16x16xf32>
      %cst_152 = arith.constant dense<0.000000e+00> : vector<16xf32>
      %354 = vector.multi_reduction <add>, %353, %cst_152 [1] : vector<16x16xf32> to vector<16xf32>
      %355 = vector.shape_cast %354 : vector<16xf32> to vector<16x1xf32>
      %c5_i32 = arith.constant 5 : i32
      %356 = arith.addi %191, %c5_i32 : i32
      %357 = vector.extract_strided_slice %193 {offsets = [5, 0], sizes = [1, 128], strides = [1, 1]} : vector<8x128xf32> to vector<1x128xf32>
      %358 = vector.broadcast %357 : vector<1x128xf32> to vector<16x128xf32>
      %359 = arith.mulf %358, %112 : vector<16x128xf32>
      %360 = math.exp %359 : vector<16x128xf32>
      %361 = arith.index_cast %356 : i32 to index
      %c0_153 = arith.constant 0 : index
      %c0_154 = arith.constant 0 : index
      %362 = vector.load %arg22[%361, %c0_153, %c0_154] : memref<128x16x128xf32, #tpu.memory_space<vmem>>, vector<1x16x128xf32>
      %363 = vector.shape_cast %362 : vector<1x16x128xf32> to vector<16x128xf32>
      %364 = vector.shape_cast %360 : vector<16x128xf32> to vector<1x16x128xf32>
      tpu.vector_store %arg22[%361, %c0_153, %c0_154], %364 {strides = array<i32>} : memref<128x16x128xf32, #tpu.memory_space<vmem>>, vector<1x16x128xf32>,
      %365 = vector.extract_strided_slice %198 {offsets = [5, 0], sizes = [1, 16], strides = [1, 1]} : vector<8x16xf32> to vector<1x16xf32>
      %366 = vector.shape_cast %365 : vector<1x16xf32> to vector<1x16xf32>
      %367 = vector.broadcast %366 : vector<1x16xf32> to vector<16x16xf32>
      %cst_155 = arith.constant 0.000000e+00 : f32
      %368 = vector.broadcast %cst_155 : f32 to vector<16x16xf32>
      %369 = arith.select %115, %367, %368 : vector<16x16xi1>, vector<16x16xf32>
      %cst_156 = arith.constant dense<0.000000e+00> : vector<16xf32>
      %370 = vector.multi_reduction <add>, %369, %cst_156 [1] : vector<16x16xf32> to vector<16xf32>
      %371 = vector.shape_cast %370 : vector<16xf32> to vector<16x1xf32>
      %372 = vector.extract_strided_slice %196 {offsets = [5, 0], sizes = [1, 128], strides = [1, 1]} : vector<8x128xf32> to vector<1x128xf32>
      %373 = vector.broadcast %371 : vector<16x1xf32> to vector<16x128xf32>
      %374 = vector.broadcast %372 : vector<1x128xf32> to vector<16x128xf32>
      %375 = arith.mulf %373, %374 : vector<16x128xf32>
      %376 = arith.index_cast %356 : i32 to index
      %c0_157 = arith.constant 0 : index
      %c0_158 = arith.constant 0 : index
      %377 = vector.load %arg23[%376, %c0_157, %c0_158] : memref<128x16x128xf32, #tpu.memory_space<vmem>>, vector<1x16x128xf32>
      %378 = vector.shape_cast %377 : vector<1x16x128xf32> to vector<16x128xf32>
      %379 = vector.shape_cast %375 : vector<16x128xf32> to vector<1x16x128xf32>
      tpu.vector_store %arg23[%376, %c0_157, %c0_158], %379 {strides = array<i32>} : memref<128x16x128xf32, #tpu.memory_space<vmem>>, vector<1x16x128xf32>,
      %380 = vector.extract_strided_slice %200 {offsets = [5, 0], sizes = [1, 16], strides = [1, 1]} : vector<8x16xf32> to vector<1x16xf32>
      %381 = vector.shape_cast %380 : vector<1x16xf32> to vector<1x16xf32>
      %382 = vector.broadcast %381 : vector<1x16xf32> to vector<16x16xf32>
      %cst_159 = arith.constant 0.000000e+00 : f32
      %383 = vector.broadcast %cst_159 : f32 to vector<16x16xf32>
      %384 = arith.select %115, %382, %383 : vector<16x16xi1>, vector<16x16xf32>
      %cst_160 = arith.constant dense<0.000000e+00> : vector<16xf32>
      %385 = vector.multi_reduction <add>, %384, %cst_160 [1] : vector<16x16xf32> to vector<16xf32>
      %386 = vector.shape_cast %385 : vector<16xf32> to vector<16x1xf32>
      %c6_i32 = arith.constant 6 : i32
      %387 = arith.addi %191, %c6_i32 : i32
      %388 = vector.extract_strided_slice %193 {offsets = [6, 0], sizes = [1, 128], strides = [1, 1]} : vector<8x128xf32> to vector<1x128xf32>
      %389 = vector.broadcast %388 : vector<1x128xf32> to vector<16x128xf32>
      %390 = arith.mulf %389, %112 : vector<16x128xf32>
      %391 = math.exp %390 : vector<16x128xf32>
      %392 = arith.index_cast %387 : i32 to index
      %c0_161 = arith.constant 0 : index
      %c0_162 = arith.constant 0 : index
      %393 = vector.load %arg22[%392, %c0_161, %c0_162] : memref<128x16x128xf32, #tpu.memory_space<vmem>>, vector<1x16x128xf32>
      %394 = vector.shape_cast %393 : vector<1x16x128xf32> to vector<16x128xf32>
      %395 = vector.shape_cast %391 : vector<16x128xf32> to vector<1x16x128xf32>
      tpu.vector_store %arg22[%392, %c0_161, %c0_162], %395 {strides = array<i32>} : memref<128x16x128xf32, #tpu.memory_space<vmem>>, vector<1x16x128xf32>,
      %396 = vector.extract_strided_slice %198 {offsets = [6, 0], sizes = [1, 16], strides = [1, 1]} : vector<8x16xf32> to vector<1x16xf32>
      %397 = vector.shape_cast %396 : vector<1x16xf32> to vector<1x16xf32>
      %398 = vector.broadcast %397 : vector<1x16xf32> to vector<16x16xf32>
      %cst_163 = arith.constant 0.000000e+00 : f32
      %399 = vector.broadcast %cst_163 : f32 to vector<16x16xf32>
      %400 = arith.select %115, %398, %399 : vector<16x16xi1>, vector<16x16xf32>
      %cst_164 = arith.constant dense<0.000000e+00> : vector<16xf32>
      %401 = vector.multi_reduction <add>, %400, %cst_164 [1] : vector<16x16xf32> to vector<16xf32>
      %402 = vector.shape_cast %401 : vector<16xf32> to vector<16x1xf32>
      %403 = vector.extract_strided_slice %196 {offsets = [6, 0], sizes = [1, 128], strides = [1, 1]} : vector<8x128xf32> to vector<1x128xf32>
      %404 = vector.broadcast %402 : vector<16x1xf32> to vector<16x128xf32>
      %405 = vector.broadcast %403 : vector<1x128xf32> to vector<16x128xf32>
      %406 = arith.mulf %404, %405 : vector<16x128xf32>
      %407 = arith.index_cast %387 : i32 to index
      %c0_165 = arith.constant 0 : index
      %c0_166 = arith.constant 0 : index
      %408 = vector.load %arg23[%407, %c0_165, %c0_166] : memref<128x16x128xf32, #tpu.memory_space<vmem>>, vector<1x16x128xf32>
      %409 = vector.shape_cast %408 : vector<1x16x128xf32> to vector<16x128xf32>
      %410 = vector.shape_cast %406 : vector<16x128xf32> to vector<1x16x128xf32>
      tpu.vector_store %arg23[%407, %c0_165, %c0_166], %410 {strides = array<i32>} : memref<128x16x128xf32, #tpu.memory_space<vmem>>, vector<1x16x128xf32>,
      %411 = vector.extract_strided_slice %200 {offsets = [6, 0], sizes = [1, 16], strides = [1, 1]} : vector<8x16xf32> to vector<1x16xf32>
      %412 = vector.shape_cast %411 : vector<1x16xf32> to vector<1x16xf32>
      %413 = vector.broadcast %412 : vector<1x16xf32> to vector<16x16xf32>
      %cst_167 = arith.constant 0.000000e+00 : f32
      %414 = vector.broadcast %cst_167 : f32 to vector<16x16xf32>
      %415 = arith.select %115, %413, %414 : vector<16x16xi1>, vector<16x16xf32>
      %cst_168 = arith.constant dense<0.000000e+00> : vector<16xf32>
      %416 = vector.multi_reduction <add>, %415, %cst_168 [1] : vector<16x16xf32> to vector<16xf32>
      %417 = vector.shape_cast %416 : vector<16xf32> to vector<16x1xf32>
      %c7_i32 = arith.constant 7 : i32
      %418 = arith.addi %191, %c7_i32 : i32
      %419 = vector.extract_strided_slice %193 {offsets = [7, 0], sizes = [1, 128], strides = [1, 1]} : vector<8x128xf32> to vector<1x128xf32>
      %420 = vector.broadcast %419 : vector<1x128xf32> to vector<16x128xf32>
      %421 = arith.mulf %420, %112 : vector<16x128xf32>
      %422 = math.exp %421 : vector<16x128xf32>
      %423 = arith.index_cast %418 : i32 to index
      %c0_169 = arith.constant 0 : index
      %c0_170 = arith.constant 0 : index
      %424 = vector.load %arg22[%423, %c0_169, %c0_170] : memref<128x16x128xf32, #tpu.memory_space<vmem>>, vector<1x16x128xf32>
      %425 = vector.shape_cast %424 : vector<1x16x128xf32> to vector<16x128xf32>
      %426 = vector.shape_cast %422 : vector<16x128xf32> to vector<1x16x128xf32>
      tpu.vector_store %arg22[%423, %c0_169, %c0_170], %426 {strides = array<i32>} : memref<128x16x128xf32, #tpu.memory_space<vmem>>, vector<1x16x128xf32>,
      %427 = vector.extract_strided_slice %198 {offsets = [7, 0], sizes = [1, 16], strides = [1, 1]} : vector<8x16xf32> to vector<1x16xf32>
      %428 = vector.shape_cast %427 : vector<1x16xf32> to vector<1x16xf32>
      %429 = vector.broadcast %428 : vector<1x16xf32> to vector<16x16xf32>
      %cst_171 = arith.constant 0.000000e+00 : f32
      %430 = vector.broadcast %cst_171 : f32 to vector<16x16xf32>
      %431 = arith.select %115, %429, %430 : vector<16x16xi1>, vector<16x16xf32>
      %cst_172 = arith.constant dense<0.000000e+00> : vector<16xf32>
      %432 = vector.multi_reduction <add>, %431, %cst_172 [1] : vector<16x16xf32> to vector<16xf32>
      %433 = vector.shape_cast %432 : vector<16xf32> to vector<16x1xf32>
      %434 = vector.extract_strided_slice %196 {offsets = [7, 0], sizes = [1, 128], strides = [1, 1]} : vector<8x128xf32> to vector<1x128xf32>
      %435 = vector.broadcast %433 : vector<16x1xf32> to vector<16x128xf32>
      %436 = vector.broadcast %434 : vector<1x128xf32> to vector<16x128xf32>
      %437 = arith.mulf %435, %436 : vector<16x128xf32>
      %438 = arith.index_cast %418 : i32 to index
      %c0_173 = arith.constant 0 : index
      %c0_174 = arith.constant 0 : index
      %439 = vector.load %arg23[%438, %c0_173, %c0_174] : memref<128x16x128xf32, #tpu.memory_space<vmem>>, vector<1x16x128xf32>
      %440 = vector.shape_cast %439 : vector<1x16x128xf32> to vector<16x128xf32>
      %441 = vector.shape_cast %437 : vector<16x128xf32> to vector<1x16x128xf32>
      tpu.vector_store %arg23[%438, %c0_173, %c0_174], %441 {strides = array<i32>} : memref<128x16x128xf32, #tpu.memory_space<vmem>>, vector<1x16x128xf32>,
      %442 = vector.extract_strided_slice %200 {offsets = [7, 0], sizes = [1, 16], strides = [1, 1]} : vector<8x16xf32> to vector<1x16xf32>
      %443 = vector.shape_cast %442 : vector<1x16xf32> to vector<1x16xf32>
      %444 = vector.broadcast %443 : vector<1x16xf32> to vector<16x16xf32>
      %cst_175 = arith.constant 0.000000e+00 : f32
      %445 = vector.broadcast %cst_175 : f32 to vector<16x16xf32>
      %446 = arith.select %115, %444, %445 : vector<16x16xi1>, vector<16x16xf32>
      %cst_176 = arith.constant dense<0.000000e+00> : vector<16xf32>
      %447 = vector.multi_reduction <add>, %446, %cst_176 [1] : vector<16x16xf32> to vector<16xf32>
      %448 = vector.shape_cast %447 : vector<16xf32> to vector<16x1xf32>
      %449 = tpu.concatenate %231, %262, %293, %324, %355, %386, %417, %448 in 1 : vector<16x1xf32>, vector<16x1xf32>, vector<16x1xf32>, vector<16x1xf32>, vector<16x1xf32>, vector<16x1xf32>, vector<16x1xf32>, vector<16x1xf32> -> vector<16x8xf32>
      %450 = arith.index_cast %arg29 : i32 to index
      %c0_177 = arith.constant 0 : index
      %c0_178 = arith.constant 0 : index
      %451 = vector.load %arg24[%450, %c0_177, %c0_178] : memref<16x16x8xf32, #tpu.memory_space<vmem>>, vector<1x16x8xf32>
      %452 = vector.shape_cast %451 : vector<1x16x8xf32> to vector<16x8xf32>
      %453 = vector.shape_cast %449 : vector<16x8xf32> to vector<1x16x8xf32>
      tpu.vector_store %arg24[%450, %c0_177, %c0_178], %453 {strides = array<i32>} : memref<16x16x8xf32, #tpu.memory_space<vmem>>, vector<1x16x8xf32>,
    }
    %c16_i32_58 = arith.constant 16 : i32
    %cst_59 = arith.constant 0.000000e+00 : f32
    %117 = vector.broadcast %cst_59 : f32 to vector<16x128xf32>
    %c0_i32_60 = arith.constant 0 : i32
    %c16_i32_61 = arith.constant 16 : i32
    %118 = arith.addi %c0_i32_60, %c16_i32_61 : i32
    %c1_i32_62 = arith.constant 1 : i32
    %119 = scf.for %arg29 = %c0_i32_60 to %118 step %c1_i32_62 iter_args(%arg30 = %117) -> (vector<16x128xf32>)  : i32 {
      %c8_i32 = arith.constant 8 : i32
      %190 = arith.muli %arg29, %c8_i32 : i32
      %191 = tpu.assume_multiple %190, 8 : i32
      %192 = arith.index_cast %arg29 : i32 to index
      %c0_107 = arith.constant 0 : index
      %c0_108 = arith.constant 0 : index
      %193 = vector.load %arg24[%192, %c0_107, %c0_108] : memref<16x16x8xf32, #tpu.memory_space<vmem>>, vector<1x16x8xf32>
      %194 = vector.shape_cast %193 : vector<1x16x8xf32> to vector<16x8xf32>
      %c0_i32_109 = arith.constant 0 : i32
      %195 = arith.addi %191, %c0_i32_109 : i32
      %196 = arith.index_cast %195 : i32 to index
      %c0_110 = arith.constant 0 : index
      %c0_111 = arith.constant 0 : index
      %197 = vector.load %arg22[%196, %c0_110, %c0_111] : memref<128x16x128xf32, #tpu.memory_space<vmem>>, vector<1x16x128xf32>
      %198 = vector.shape_cast %197 : vector<1x16x128xf32> to vector<16x128xf32>
      %199 = arith.mulf %198, %arg30 : vector<16x128xf32>
      %200 = arith.index_cast %195 : i32 to index
      %c0_112 = arith.constant 0 : index
      %c0_113 = arith.constant 0 : index
      %201 = vector.load %arg23[%200, %c0_112, %c0_113] : memref<128x16x128xf32, #tpu.memory_space<vmem>>, vector<1x16x128xf32>
      %202 = vector.shape_cast %201 : vector<1x16x128xf32> to vector<16x128xf32>
      %203 = arith.addf %199, %202 : vector<16x128xf32>
      %204 = vector.extract_strided_slice %194 {offsets = [0, 0], sizes = [16, 1], strides = [1, 1]} : vector<16x8xf32> to vector<16x1xf32>
      %205 = vector.broadcast %204 : vector<16x1xf32> to vector<16x128xf32>
      %206 = arith.mulf %205, %203 : vector<16x128xf32>
      %cst_114 = arith.constant dense<0.000000e+00> : vector<128xf32>
      %207 = vector.multi_reduction <add>, %206, %cst_114 [0] : vector<16x128xf32> to vector<128xf32>
      %208 = vector.shape_cast %207 : vector<128xf32> to vector<1x128xf32>
      %c1_i32_115 = arith.constant 1 : i32
      %209 = arith.addi %191, %c1_i32_115 : i32
      %210 = arith.index_cast %209 : i32 to index
      %c0_116 = arith.constant 0 : index
      %c0_117 = arith.constant 0 : index
      %211 = vector.load %arg22[%210, %c0_116, %c0_117] : memref<128x16x128xf32, #tpu.memory_space<vmem>>, vector<1x16x128xf32>
      %212 = vector.shape_cast %211 : vector<1x16x128xf32> to vector<16x128xf32>
      %213 = arith.mulf %212, %203 : vector<16x128xf32>
      %214 = arith.index_cast %209 : i32 to index
      %c0_118 = arith.constant 0 : index
      %c0_119 = arith.constant 0 : index
      %215 = vector.load %arg23[%214, %c0_118, %c0_119] : memref<128x16x128xf32, #tpu.memory_space<vmem>>, vector<1x16x128xf32>
      %216 = vector.shape_cast %215 : vector<1x16x128xf32> to vector<16x128xf32>
      %217 = arith.addf %213, %216 : vector<16x128xf32>
      %218 = vector.extract_strided_slice %194 {offsets = [0, 1], sizes = [16, 1], strides = [1, 1]} : vector<16x8xf32> to vector<16x1xf32>
      %219 = vector.broadcast %218 : vector<16x1xf32> to vector<16x128xf32>
      %220 = arith.mulf %219, %217 : vector<16x128xf32>
      %cst_120 = arith.constant dense<0.000000e+00> : vector<128xf32>
      %221 = vector.multi_reduction <add>, %220, %cst_120 [0] : vector<16x128xf32> to vector<128xf32>
      %222 = vector.shape_cast %221 : vector<128xf32> to vector<1x128xf32>
      %c2_i32 = arith.constant 2 : i32
      %223 = arith.addi %191, %c2_i32 : i32
      %224 = arith.index_cast %223 : i32 to index
      %c0_121 = arith.constant 0 : index
      %c0_122 = arith.constant 0 : index
      %225 = vector.load %arg22[%224, %c0_121, %c0_122] : memref<128x16x128xf32, #tpu.memory_space<vmem>>, vector<1x16x128xf32>
      %226 = vector.shape_cast %225 : vector<1x16x128xf32> to vector<16x128xf32>
      %227 = arith.mulf %226, %217 : vector<16x128xf32>
      %228 = arith.index_cast %223 : i32 to index
      %c0_123 = arith.constant 0 : index
      %c0_124 = arith.constant 0 : index
      %229 = vector.load %arg23[%228, %c0_123, %c0_124] : memref<128x16x128xf32, #tpu.memory_space<vmem>>, vector<1x16x128xf32>
      %230 = vector.shape_cast %229 : vector<1x16x128xf32> to vector<16x128xf32>
      %231 = arith.addf %227, %230 : vector<16x128xf32>
      %232 = vector.extract_strided_slice %194 {offsets = [0, 2], sizes = [16, 1], strides = [1, 1]} : vector<16x8xf32> to vector<16x1xf32>
      %233 = vector.broadcast %232 : vector<16x1xf32> to vector<16x128xf32>
      %234 = arith.mulf %233, %231 : vector<16x128xf32>
      %cst_125 = arith.constant dense<0.000000e+00> : vector<128xf32>
      %235 = vector.multi_reduction <add>, %234, %cst_125 [0] : vector<16x128xf32> to vector<128xf32>
      %236 = vector.shape_cast %235 : vector<128xf32> to vector<1x128xf32>
      %c3_i32 = arith.constant 3 : i32
      %237 = arith.addi %191, %c3_i32 : i32
      %238 = arith.index_cast %237 : i32 to index
      %c0_126 = arith.constant 0 : index
      %c0_127 = arith.constant 0 : index
      %239 = vector.load %arg22[%238, %c0_126, %c0_127] : memref<128x16x128xf32, #tpu.memory_space<vmem>>, vector<1x16x128xf32>
      %240 = vector.shape_cast %239 : vector<1x16x128xf32> to vector<16x128xf32>
      %241 = arith.mulf %240, %231 : vector<16x128xf32>
      %242 = arith.index_cast %237 : i32 to index
      %c0_128 = arith.constant 0 : index
      %c0_129 = arith.constant 0 : index
      %243 = vector.load %arg23[%242, %c0_128, %c0_129] : memref<128x16x128xf32, #tpu.memory_space<vmem>>, vector<1x16x128xf32>
      %244 = vector.shape_cast %243 : vector<1x16x128xf32> to vector<16x128xf32>
      %245 = arith.addf %241, %244 : vector<16x128xf32>
      %246 = vector.extract_strided_slice %194 {offsets = [0, 3], sizes = [16, 1], strides = [1, 1]} : vector<16x8xf32> to vector<16x1xf32>
      %247 = vector.broadcast %246 : vector<16x1xf32> to vector<16x128xf32>
      %248 = arith.mulf %247, %245 : vector<16x128xf32>
      %cst_130 = arith.constant dense<0.000000e+00> : vector<128xf32>
      %249 = vector.multi_reduction <add>, %248, %cst_130 [0] : vector<16x128xf32> to vector<128xf32>
      %250 = vector.shape_cast %249 : vector<128xf32> to vector<1x128xf32>
      %c4_i32 = arith.constant 4 : i32
      %251 = arith.addi %191, %c4_i32 : i32
      %252 = arith.index_cast %251 : i32 to index
      %c0_131 = arith.constant 0 : index
      %c0_132 = arith.constant 0 : index
      %253 = vector.load %arg22[%252, %c0_131, %c0_132] : memref<128x16x128xf32, #tpu.memory_space<vmem>>, vector<1x16x128xf32>
      %254 = vector.shape_cast %253 : vector<1x16x128xf32> to vector<16x128xf32>
      %255 = arith.mulf %254, %245 : vector<16x128xf32>
      %256 = arith.index_cast %251 : i32 to index
      %c0_133 = arith.constant 0 : index
      %c0_134 = arith.constant 0 : index
      %257 = vector.load %arg23[%256, %c0_133, %c0_134] : memref<128x16x128xf32, #tpu.memory_space<vmem>>, vector<1x16x128xf32>
      %258 = vector.shape_cast %257 : vector<1x16x128xf32> to vector<16x128xf32>
      %259 = arith.addf %255, %258 : vector<16x128xf32>
      %260 = vector.extract_strided_slice %194 {offsets = [0, 4], sizes = [16, 1], strides = [1, 1]} : vector<16x8xf32> to vector<16x1xf32>
      %261 = vector.broadcast %260 : vector<16x1xf32> to vector<16x128xf32>
      %262 = arith.mulf %261, %259 : vector<16x128xf32>
      %cst_135 = arith.constant dense<0.000000e+00> : vector<128xf32>
      %263 = vector.multi_reduction <add>, %262, %cst_135 [0] : vector<16x128xf32> to vector<128xf32>
      %264 = vector.shape_cast %263 : vector<128xf32> to vector<1x128xf32>
      %c5_i32 = arith.constant 5 : i32
      %265 = arith.addi %191, %c5_i32 : i32
      %266 = arith.index_cast %265 : i32 to index
      %c0_136 = arith.constant 0 : index
      %c0_137 = arith.constant 0 : index
      %267 = vector.load %arg22[%266, %c0_136, %c0_137] : memref<128x16x128xf32, #tpu.memory_space<vmem>>, vector<1x16x128xf32>
      %268 = vector.shape_cast %267 : vector<1x16x128xf32> to vector<16x128xf32>
      %269 = arith.mulf %268, %259 : vector<16x128xf32>
      %270 = arith.index_cast %265 : i32 to index
      %c0_138 = arith.constant 0 : index
      %c0_139 = arith.constant 0 : index
      %271 = vector.load %arg23[%270, %c0_138, %c0_139] : memref<128x16x128xf32, #tpu.memory_space<vmem>>, vector<1x16x128xf32>
      %272 = vector.shape_cast %271 : vector<1x16x128xf32> to vector<16x128xf32>
      %273 = arith.addf %269, %272 : vector<16x128xf32>
      %274 = vector.extract_strided_slice %194 {offsets = [0, 5], sizes = [16, 1], strides = [1, 1]} : vector<16x8xf32> to vector<16x1xf32>
      %275 = vector.broadcast %274 : vector<16x1xf32> to vector<16x128xf32>
      %276 = arith.mulf %275, %273 : vector<16x128xf32>
      %cst_140 = arith.constant dense<0.000000e+00> : vector<128xf32>
      %277 = vector.multi_reduction <add>, %276, %cst_140 [0] : vector<16x128xf32> to vector<128xf32>
      %278 = vector.shape_cast %277 : vector<128xf32> to vector<1x128xf32>
      %c6_i32 = arith.constant 6 : i32
      %279 = arith.addi %191, %c6_i32 : i32
      %280 = arith.index_cast %279 : i32 to index
      %c0_141 = arith.constant 0 : index
      %c0_142 = arith.constant 0 : index
      %281 = vector.load %arg22[%280, %c0_141, %c0_142] : memref<128x16x128xf32, #tpu.memory_space<vmem>>, vector<1x16x128xf32>
      %282 = vector.shape_cast %281 : vector<1x16x128xf32> to vector<16x128xf32>
      %283 = arith.mulf %282, %273 : vector<16x128xf32>
      %284 = arith.index_cast %279 : i32 to index
      %c0_143 = arith.constant 0 : index
      %c0_144 = arith.constant 0 : index
      %285 = vector.load %arg23[%284, %c0_143, %c0_144] : memref<128x16x128xf32, #tpu.memory_space<vmem>>, vector<1x16x128xf32>
      %286 = vector.shape_cast %285 : vector<1x16x128xf32> to vector<16x128xf32>
      %287 = arith.addf %283, %286 : vector<16x128xf32>
      %288 = vector.extract_strided_slice %194 {offsets = [0, 6], sizes = [16, 1], strides = [1, 1]} : vector<16x8xf32> to vector<16x1xf32>
      %289 = vector.broadcast %288 : vector<16x1xf32> to vector<16x128xf32>
      %290 = arith.mulf %289, %287 : vector<16x128xf32>
      %cst_145 = arith.constant dense<0.000000e+00> : vector<128xf32>
      %291 = vector.multi_reduction <add>, %290, %cst_145 [0] : vector<16x128xf32> to vector<128xf32>
      %292 = vector.shape_cast %291 : vector<128xf32> to vector<1x128xf32>
      %c7_i32 = arith.constant 7 : i32
      %293 = arith.addi %191, %c7_i32 : i32
      %294 = arith.index_cast %293 : i32 to index
      %c0_146 = arith.constant 0 : index
      %c0_147 = arith.constant 0 : index
      %295 = vector.load %arg22[%294, %c0_146, %c0_147] : memref<128x16x128xf32, #tpu.memory_space<vmem>>, vector<1x16x128xf32>
      %296 = vector.shape_cast %295 : vector<1x16x128xf32> to vector<16x128xf32>
      %297 = arith.mulf %296, %287 : vector<16x128xf32>
      %298 = arith.index_cast %293 : i32 to index
      %c0_148 = arith.constant 0 : index
      %c0_149 = arith.constant 0 : index
      %299 = vector.load %arg23[%298, %c0_148, %c0_149] : memref<128x16x128xf32, #tpu.memory_space<vmem>>, vector<1x16x128xf32>
      %300 = vector.shape_cast %299 : vector<1x16x128xf32> to vector<16x128xf32>
      %301 = arith.addf %297, %300 : vector<16x128xf32>
      %302 = vector.extract_strided_slice %194 {offsets = [0, 7], sizes = [16, 1], strides = [1, 1]} : vector<16x8xf32> to vector<16x1xf32>
      %303 = vector.broadcast %302 : vector<16x1xf32> to vector<16x128xf32>
      %304 = arith.mulf %303, %301 : vector<16x128xf32>
      %cst_150 = arith.constant dense<0.000000e+00> : vector<128xf32>
      %305 = vector.multi_reduction <add>, %304, %cst_150 [0] : vector<16x128xf32> to vector<128xf32>
      %306 = vector.shape_cast %305 : vector<128xf32> to vector<1x128xf32>
      %307 = tpu.concatenate %208, %222, %236, %250, %264, %278, %292, %306 in 0 : vector<1x128xf32>, vector<1x128xf32>, vector<1x128xf32>, vector<1x128xf32>, vector<1x128xf32>, vector<1x128xf32>, vector<1x128xf32>, vector<1x128xf32> -> vector<8x128xf32>
      %308 = arith.index_cast %191 : i32 to index
      %c0_151 = arith.constant 0 : index
      %309 = vector.load %arg25[%308, %c0_151] : memref<128x128xf32, #tpu.memory_space<vmem>>, vector<8x128xf32>
      tpu.vector_store %arg25[%308, %c0_151], %307 {strides = array<i32>} : memref<128x128xf32, #tpu.memory_space<vmem>>, vector<8x128xf32>,
      scf.yield %301 : vector<16x128xf32>
    }
    %c16_i32_63 = arith.constant 16 : i32
    %c0_64 = arith.constant 0 : index
    %c0_65 = arith.constant 0 : index
    %120 = vector.load %arg25[%c0_64, %c0_65] : memref<128x128xf32, #tpu.memory_space<vmem>>, vector<128x128xf32>
    %c0_66 = arith.constant 0 : index
    %c0_67 = arith.constant 0 : index
    %121 = vector.load %arg26[%c0_66, %c0_67] : memref<128x128xf32, #tpu.memory_space<vmem>>, vector<128x128xf32>
    %c0_68 = arith.constant 0 : index
    %c0_69 = arith.constant 0 : index
    %122 = vector.load %arg12[%c0_68, %c0_69] : memref<1x128xf32, #tpu.memory_space<vmem>>, vector<1x128xf32>
    %123 = vector.broadcast %122 : vector<1x128xf32> to vector<128x128xf32>
    %124 = arith.mulf %121, %123 : vector<128x128xf32>
    %125 = arith.addf %120, %124 : vector<128x128xf32>
    %c0_70 = arith.constant 0 : index
    %c0_71 = arith.constant 0 : index
    %126 = vector.load %arg27[%c0_70, %c0_71] : memref<128x128xf32, #tpu.memory_space<vmem>>, vector<128x128xf32>
    %cst_72 = arith.constant 0.000000e+00 : f32
    %127 = vector.broadcast %cst_72 : f32 to vector<128x128xf32>
    %128 = arith.subf %127, %126 : vector<128x128xf32>
    %129 = math.exp %128 : vector<128x128xf32>
    %cst_73 = arith.constant 1.000000e+00 : f32
    %130 = vector.broadcast %cst_73 : f32 to vector<128x128xf32>
    %131 = arith.addf %130, %129 : vector<128x128xf32>
    %cst_74 = arith.constant 1.000000e+00 : f32
    %132 = vector.broadcast %cst_74 : f32 to vector<128x128xf32>
    %133 = arith.divf %132, %131 : vector<128x128xf32>
    %134 = arith.mulf %126, %133 : vector<128x128xf32>
    %135 = arith.mulf %125, %134 : vector<128x128xf32>
    %c0_75 = arith.constant 0 : index
    %c0_76 = arith.constant 0 : index
    %136 = vector.load %arg13[%c0_75, %c0_76] : memref<128x64xbf16, #tpu.memory_space<vmem>>, vector<128x64xbf16>
    %137 = arith.truncf %135 : vector<128x128xf32> to vector<128x128xbf16>
    %cst_77 = arith.constant dense<0.000000e+00> : vector<128x64xf32>
    %138 = tpu.matmul %137, %136, %cst_77 {dimension_numbers = #tpu.dot_dimension_numbers<[1], [0], [0], [1], [0, 0, 1, 1], [], []>} : vector<128x128xbf16>, vector<128x64xbf16>, vector<128x64xf32> -> vector<128x64xf32>
    %c0_78 = arith.constant 0 : index
    %c0_79 = arith.constant 0 : index
    %139 = vector.load %arg28[%c0_78, %c0_79] : memref<128x64xf32, #tpu.memory_space<vmem>>, vector<128x64xf32>
    %140 = arith.addf %138, %139 : vector<128x64xf32>
    %c0_80 = arith.constant 0 : index
    %c0_81 = arith.constant 0 : index
    %141 = vector.load %arg3[%c0_80, %c0_81] : memref<1x64xf32, #tpu.memory_space<vmem>>, vector<1x64xf32>
    %c0_82 = arith.constant 0 : index
    %c0_83 = arith.constant 0 : index
    %142 = vector.load %arg4[%c0_82, %c0_83] : memref<1x64xf32, #tpu.memory_space<vmem>>, vector<1x64xf32>
    %cst_84 = arith.constant dense<0.000000e+00> : vector<128xf32>
    %143 = vector.multi_reduction <add>, %140, %cst_84 [1] : vector<128x64xf32> to vector<128xf32>
    %144 = vector.shape_cast %143 : vector<128xf32> to vector<128x1xf32>
    %cst_85 = arith.constant 6.400000e+01 : f32
    %145 = vector.broadcast %cst_85 : f32 to vector<128x1xf32>
    %146 = arith.divf %144, %145 : vector<128x1xf32>
    %147 = vector.broadcast %146 : vector<128x1xf32> to vector<128x64xf32>
    %148 = arith.subf %140, %147 : vector<128x64xf32>
    %149 = arith.mulf %148, %148 : vector<128x64xf32>
    %cst_86 = arith.constant dense<0.000000e+00> : vector<128xf32>
    %150 = vector.multi_reduction <add>, %149, %cst_86 [1] : vector<128x64xf32> to vector<128xf32>
    %151 = vector.shape_cast %150 : vector<128xf32> to vector<128x1xf32>
    %cst_87 = arith.constant 6.400000e+01 : f32
    %152 = vector.broadcast %cst_87 : f32 to vector<128x1xf32>
    %153 = arith.divf %151, %152 : vector<128x1xf32>
    %154 = vector.broadcast %146 : vector<128x1xf32> to vector<128x64xf32>
    %155 = arith.subf %140, %154 : vector<128x64xf32>
    %cst_88 = arith.constant 9.99999974E-6 : f32
    %156 = vector.broadcast %cst_88 : f32 to vector<128x1xf32>
    %157 = arith.addf %153, %156 : vector<128x1xf32>
    %158 = math.rsqrt %157 : vector<128x1xf32>
    %159 = vector.broadcast %158 : vector<128x1xf32> to vector<128x64xf32>
    %160 = arith.mulf %155, %159 : vector<128x64xf32>
    %161 = vector.broadcast %141 : vector<1x64xf32> to vector<128x64xf32>
    %162 = arith.mulf %160, %161 : vector<128x64xf32>
    %163 = vector.broadcast %142 : vector<1x64xf32> to vector<128x64xf32>
    %164 = arith.addf %162, %163 : vector<128x64xf32>
    %c0_89 = arith.constant 0 : index
    %c0_90 = arith.constant 0 : index
    %165 = vector.load %arg16[%c0_89, %c0_90] : memref<128x1xf32, #tpu.memory_space<vmem>>, vector<128x1xf32>
    %166 = vector.broadcast %165 : vector<128x1xf32> to vector<128x64xf32>
    %167 = arith.mulf %164, %166 : vector<128x64xf32>
    %cst_91 = arith.constant dense<0.000000e+00> : vector<64xf32>
    %168 = vector.multi_reduction <add>, %167, %cst_91 [0] : vector<128x64xf32> to vector<64xf32>
    %169 = vector.shape_cast %168 : vector<64xf32> to vector<1x64xf32>
    %c0_92 = arith.constant 0 : index
    %c0_93 = arith.constant 0 : index
    %170 = vector.load %arg16[%c0_92, %c0_93] : memref<128x1xf32, #tpu.memory_space<vmem>>, vector<128x1xf32>
    %cst_94 = arith.constant dense<0.000000e+00> : vector<1xf32>
    %171 = vector.multi_reduction <add>, %170, %cst_94 [0] : vector<128x1xf32> to vector<1xf32>
    %172 = vector.shape_cast %171 : vector<1xf32> to vector<1x1xf32>
    %c0_95 = arith.constant 0 : index
    %c0_96 = arith.constant 0 : index
    %173 = vector.load %arg14[%c0_95, %c0_96] : memref<1x64xf32, #tpu.memory_space<vmem>>, vector<1x64xf32>
    %174 = arith.mulf %169, %173 : vector<1x64xf32>
    %cst_97 = arith.constant dense<0.000000e+00> : vector<1xf32>
    %175 = vector.multi_reduction <add>, %174, %cst_97 [1] : vector<1x64xf32> to vector<1xf32>
    %176 = vector.shape_cast %175 : vector<1xf32> to vector<1x1xf32>
    %c0_98 = arith.constant 0 : index
    %c0_99 = arith.constant 0 : index
    %177 = vector.load %arg15[%c0_98, %c0_99] : memref<1x1xf32, #tpu.memory_space<vmem>>, vector<1x1xf32>
    %178 = arith.mulf %177, %172 : vector<1x1xf32>
    %179 = arith.addf %176, %178 : vector<1x1xf32>
    %c0_100 = arith.constant 0 : index
    %c0_101 = arith.constant 0 : index
    %180 = vector.load %arg17[%c0_100, %c0_101] : memref<1x1xf32, #tpu.memory_space<vmem>>, vector<1x1xf32>
    %181 = arith.addf %179, %180 : vector<1x1xf32>
    %cst_102 = arith.constant 0.000000e+00 : f32
    %182 = vector.broadcast %cst_102 : f32 to vector<1x1xf32>
    %183 = arith.subf %182, %181 : vector<1x1xf32>
    %184 = math.exp %183 : vector<1x1xf32>
    %cst_103 = arith.constant 1.000000e+00 : f32
    %185 = vector.broadcast %cst_103 : f32 to vector<1x1xf32>
    %186 = arith.addf %185, %184 : vector<1x1xf32>
    %cst_104 = arith.constant 1.000000e+00 : f32
    %187 = vector.broadcast %cst_104 : f32 to vector<1x1xf32>
    %188 = arith.divf %187, %186 : vector<1x1xf32>
    %c0_105 = arith.constant 0 : index
    %c0_106 = arith.constant 0 : index
    %189 = vector.load %arg18[%c0_105, %c0_106] : memref<1x1xf32, #tpu.memory_space<vmem>>, vector<1x1xf32>
    tpu.vector_store %arg18[%c0_105, %c0_106], %188 {strides = array<i32>} : memref<1x1xf32, #tpu.memory_space<vmem>>, vector<1x1xf32>,
    return
  }
}

</mosaic_0001>

<llo_original>
// kernel: _forward.1
$region0: #{_forward.1}
  #allocation0 [shape = 'u32[]', space=smem, size = 0x4, offset = 0x4, fixed_abs, tag = 'smem constant byte address 0x4 - core index']
  #allocation1 [shape = 'u32[144,128]{1,0:T(1,128)}', space=vmem, size = 0x12000, scoped, tag = 'internal scratch']
  #allocation2 [shape = 'f32[128,128]{1,0:T(8,128)}', space=vmem, size = 0x10000, scoped, tag = 'scratch operand']
  #allocation3 [shape = 'f32[128,16]{1,0:T(8,128)}', space=vmem, size = 0x10000, scoped, tag = 'scratch operand']
  #allocation4 [shape = 'f32[128,16]{1,0:T(8,128)}', space=vmem, size = 0x10000, scoped, tag = 'scratch operand']
  #allocation5 [shape = 'f32[128,16,128]{2,1,0:T(8,128)}', space=vmem, size = 0x100000, scoped, tag = 'scratch operand']
  #allocation6 [shape = 'f32[128,16,128]{2,1,0:T(8,128)}', space=vmem, size = 0x100000, scoped, tag = 'scratch operand']
  #allocation7 [shape = 'f32[16,16,8]{2,1,0:T(8,128)}', space=vmem, size = 0x20000, scoped, tag = 'scratch operand']
  #allocation8 [shape = 'f32[128,128]{1,0:T(8,128)}', space=vmem, size = 0x10000, scoped, tag = 'scratch operand']
  #allocation9 [shape = 'f32[128,128]{1,0:T(8,128)}', space=vmem, size = 0x10000, scoped, tag = 'scratch operand']
  #allocation10 [shape = 'f32[128,128]{1,0:T(8,128)}', space=vmem, size = 0x10000, scoped, tag = 'scratch operand']
  #allocation11 [shape = 'f32[128,64]{1,0:T(8,128)}', space=vmem, size = 0x10000, scoped, tag = 'scratch operand']
  #allocation12 [shape = 'f32[1,1]{1,0:T(1,128)S(1)}', space=vmem, size = 0x200, scoped, tag = 'scoped memory for _forward.1']
  #allocation13 [shape = 'f32[1,1]{1,0:T(1,128)S(1)}', space=vmem, size = 0x200, scoped, tag = 'scoped memory for _forward.1']
  %s0 = inlined_call_operand.vmem [shape: f32[128,64], index: 0, kind: input, shape index: {}]
  %s1 = inlined_call_operand.vmem [shape: bf16[64,192], index: 1, kind: input, shape index: {}]
  %s2 = inlined_call_operand.vmem [shape: f32[1,64], index: 2, kind: input, shape index: {}]
  %s3 = inlined_call_operand.vmem [shape: f32[1,64], index: 3, kind: input, shape index: {}]
  %s4 = inlined_call_operand.vmem [shape: f32[1,64], index: 4, kind: input, shape index: {}]
  %s5 = inlined_call_operand.vmem [shape: bf16[64,256], index: 5, kind: input, shape index: {}]
  %s6 = inlined_call_operand.vmem [shape: f32[4,128], index: 6, kind: input, shape index: {}]
  %s7 = inlined_call_operand.vmem [shape: f32[1,128], index: 7, kind: input, shape index: {}]
  %s8 = inlined_call_operand.vmem [shape: f32[128,384], index: 8, kind: input, shape index: {}]
  %s9 = inlined_call_operand.vmem [shape: f32[128,128], index: 9, kind: input, shape index: {}]
  %s10 = inlined_call_operand.vmem [shape: f32[1,128], index: 10, kind: input, shape index: {}]
  %s11 = inlined_call_operand.vmem [shape: f32[16,128], index: 11, kind: input, shape index: {}]
  %s12 = inlined_call_operand.vmem [shape: f32[1,128], index: 12, kind: input, shape index: {}]
  %s13 = inlined_call_operand.vmem [shape: bf16[128,64], index: 13, kind: input, shape index: {}]
  %s14 = inlined_call_operand.vmem [shape: f32[1,64], index: 14, kind: input, shape index: {}]
  %s15 = inlined_call_operand.<no memory space> [shape: f32[1,1], index: 15, kind: input, shape index: {}]
  %s16 = inlined_call_operand.vmem [shape: f32[128,1], index: 16, kind: input, shape index: {}]
  %s17 = inlined_call_operand.<no memory space> [shape: f32[1,1], index: 17, kind: input, shape index: {}]
  %s18 = inlined_call_operand.hbm [shape: f32[1,1], index: 18, kind: output, shape index: {}]
  %s19 = sld [smem:[#allocation0]]
  $region96: #{_forward.1} parent=0
    _
  %s21 = ssub.s32 1, %s19
  %s22 = scalar_select 0, %s21, %s19
  %v23 = vstv %s15
  %24 = vst [vmem:[#allocation12] sm:$0x1] %v23
  %v25 = vstv %s17
  %26 = vst [vmem:[#allocation13] sm:$0x1] %v25
  $region1: #{_forward.1} parent=0
    #allocation14 [shape = 'u8[512]{0}', space=vmem, size = 0x400, scoped, tag = 'output window, operand 0, single buffered']
    #allocation15 [shape = 's32[1]{0}', space=sflag, size = 0x4, scoped, tag = 'scoped memory for _forward.1']
    %27 = vsyncpa [#allocation15], 0
    // Predicated region
    $region2: #{_forward.1} parent=1 // pred_check
      _
    $region3: #{_forward.1} parent=1 // pred_check_branch
      %29 = sbr.rel (0) target = $region5
    $region4: #{_forward.1} parent=1 // pred_region
      _
    $region5: #{_forward.1} parent=1 // pred_fallthru
      _
    // Predicated region
    $region6: #{_forward.1} parent=1 // pred_check
      _
    $region7: #{_forward.1} parent=1 // pred_check_branch
      %31 = sbr.rel (0) target = $region9
    $region8: #{_forward.1} parent=1 // pred_region
      _
    $region9: #{_forward.1} parent=1 // pred_fallthru
      _
    // Predicated region
    $region10: #{_forward.1} parent=1 // pred_check
      _
    $region11: #{_forward.1} parent=1 // pred_check_branch
      %33 = sbr.rel (0) target = $region13
    $region12: #{_forward.1} parent=1 // pred_region
      _
    $region13: #{_forward.1} parent=1 // pred_fallthru
      _
    // Predicated region
    $region14: #{_forward.1} parent=1 // pred_check
      _
    $region15: #{_forward.1} parent=1 // pred_check_branch
      %35 = sbr.rel (0) target = $region17
    $region16: #{_forward.1} parent=1 // pred_region
      _
    $region17: #{_forward.1} parent=1 // pred_fallthru
      _
    // Predicated region
    $region18: #{_forward.1} parent=1 // pred_check
      _
    $region19: #{_forward.1} parent=1 // pred_check_branch
      %37 = sbr.rel (0) target = $region21
    $region20: #{_forward.1} parent=1 // pred_region
      _
    $region21: #{_forward.1} parent=1 // pred_fallthru
      _
    // Predicated region
    $region22: #{_forward.1} parent=1 // pred_check
      _
    $region23: #{_forward.1} parent=1 // pred_check_branch
      %39 = sbr.rel (0) target = $region25
    $region24: #{_forward.1} parent=1 // pred_region
      _
    $region25: #{_forward.1} parent=1 // pred_fallthru
      _
    // Predicated region
    $region26: #{_forward.1} parent=1 // pred_check
      _
    $region27: #{_forward.1} parent=1 // pred_check_branch
      %41 = sbr.rel (0) target = $region29
    $region28: #{_forward.1} parent=1 // pred_region
      _
    $region29: #{_forward.1} parent=1 // pred_fallthru
      _
    // Predicated region
    $region30: #{_forward.1} parent=1 // pred_check
      _
    $region31: #{_forward.1} parent=1 // pred_check_branch
      %43 = sbr.rel (0) target = $region33
    $region32: #{_forward.1} parent=1 // pred_region
      _
    $region33: #{_forward.1} parent=1 // pred_fallthru
      _
    // Predicated region
    $region34: #{_forward.1} parent=1 // pred_check
      _
    $region35: #{_forward.1} parent=1 // pred_check_branch
      %45 = sbr.rel (0) target = $region37
    $region36: #{_forward.1} parent=1 // pred_region
      _
    $region37: #{_forward.1} parent=1 // pred_fallthru
      _
    // Predicated region
    $region38: #{_forward.1} parent=1 // pred_check
      _
    $region39: #{_forward.1} parent=1 // pred_check_branch
      %47 = sbr.rel (0) target = $region41
    $region40: #{_forward.1} parent=1 // pred_region
      _
    $region41: #{_forward.1} parent=1 // pred_fallthru
      _
    // Predicated region
    $region42: #{_forward.1} parent=1 // pred_check
      _
    $region43: #{_forward.1} parent=1 // pred_check_branch
      %49 = sbr.rel (0) target = $region45
    $region44: #{_forward.1} parent=1 // pred_region
      _
    $region45: #{_forward.1} parent=1 // pred_fallthru
      _
    // Predicated region
    $region46: #{_forward.1} parent=1 // pred_check
      _
    $region47: #{_forward.1} parent=1 // pred_check_branch
      %51 = sbr.rel (0) target = $region49
    $region48: #{_forward.1} parent=1 // pred_region
      _
    $region49: #{_forward.1} parent=1 // pred_fallthru
      _
    // Predicated region
    $region50: #{_forward.1} parent=1 // pred_check
      _
    $region51: #{_forward.1} parent=1 // pred_check_branch
      %53 = sbr.rel (0) target = $region53
    $region52: #{_forward.1} parent=1 // pred_region
      _
    $region53: #{_forward.1} parent=1 // pred_fallthru
      _
    // Predicated region
    $region54: #{_forward.1} parent=1 // pred_check
      _
    $region55: #{_forward.1} parent=1 // pred_check_branch
      %55 = sbr.rel (0) target = $region57
    $region56: #{_forward.1} parent=1 // pred_region
      _
    $region57: #{_forward.1} parent=1 // pred_fallthru
      _
    // Predicated region
    $region58: #{_forward.1} parent=1 // pred_check
      _
    $region59: #{_forward.1} parent=1 // pred_check_branch
      %57 = sbr.rel (0) target = $region61
    $region60: #{_forward.1} parent=1 // pred_region
      _
    $region61: #{_forward.1} parent=1 // pred_fallthru
      _
    // Predicated region
    $region62: #{_forward.1} parent=1 // pred_check
      _
    $region63: #{_forward.1} parent=1 // pred_check_branch
      %59 = sbr.rel (0) target = $region65
    $region64: #{_forward.1} parent=1 // pred_region
      _
    $region65: #{_forward.1} parent=1 // pred_fallthru
      _
    // Predicated region
    $region66: #{_forward.1} parent=1 // pred_check
      _
    $region67: #{_forward.1} parent=1 // pred_check_branch
      %61 = sbr.rel (0) target = $region69
    $region68: #{_forward.1} parent=1 // pred_region
      _
    $region69: #{_forward.1} parent=1 // pred_fallthru
      _
    // Predicated region
    $region70: #{_forward.1} parent=1 // pred_check
      _
    $region71: #{_forward.1} parent=1 // pred_check_branch
      %63 = sbr.rel (0) target = $region73
    $region72: #{_forward.1} parent=1 // pred_region
      _
    $region73: #{_forward.1} parent=1 // pred_fallthru
      _
    %v65 = vld [vmem:[%s0] sm:$0xff]
    %v66 = vld [vmem:[%s0 + $0x8] sm:$0xff]
    %v67 = vld [vmem:[%s0 + $0x10] sm:$0xff]
    %v68 = vld [vmem:[%s0 + $0x18] sm:$0xff]
    %v69 = vld [vmem:[%s0 + $0x20] sm:$0xff]
    %v70 = vld [vmem:[%s0 + $0x28] sm:$0xff]
    %v71 = vld [vmem:[%s0 + $0x30] sm:$0xff]
    %v72 = vld [vmem:[%s0 + $0x38] sm:$0xff]
    %v73 = vld [vmem:[%s0 + $0x40] sm:$0xff]
    %v74 = vld [vmem:[%s0 + $0x48] sm:$0xff]
    %v75 = vld [vmem:[%s0 + $0x50] sm:$0xff]
    %v76 = vld [vmem:[%s0 + $0x58] sm:$0xff]
    %v77 = vld [vmem:[%s0 + $0x60] sm:$0xff]
    %v78 = vld [vmem:[%s0 + $0x68] sm:$0xff]
    %v79 = vld [vmem:[%s0 + $0x70] sm:$0xff]
    %v80 = vld [vmem:[%s0 + $0x78] sm:$0xff]
    %v81 = vld [vmem:[%s1] sm:$0xff]
    %v82 = vld [vmem:[%s1 + $0x8] sm:$0xff]
    %v83 = vld [vmem:[%s1 + $0x10] sm:$0xff]
    %v84 = vld [vmem:[%s1 + $0x18] sm:$0xff]
    %v85 = vld [vmem:[%s1 + $0x20] sm:$0xff]
    %v86 = vld [vmem:[%s1 + $0x28] sm:$0xff]
    %v87 = vld [vmem:[%s1 + $0x30] sm:$0xff]
    %v88 = vld [vmem:[%s1 + $0x38] sm:$0xff]
    %v89 = vpack.c.bf16 %v66, %v65
    %v90 = vpack.c.bf16 %v68, %v67
    %v91 = vpack.c.bf16 %v70, %v69
    %v92 = vpack.c.bf16 %v72, %v71
    %v93 = vpack.c.bf16 %v74, %v73
    %v94 = vpack.c.bf16 %v76, %v75
    %v95 = vpack.c.bf16 %v78, %v77
    %v96 = vpack.c.bf16 %v80, %v79
    %v105 = vunpack.c.l.b16 %v81
    %v106 = vunpack.c.h.b16 %v81
    %v107 = vunpack.c.l.b16 %v82
    %v108 = vunpack.c.h.b16 %v82
    %v109 = vunpack.c.l.b16 %v83
    %v110 = vunpack.c.h.b16 %v83
    %v111 = vunpack.c.l.b16 %v84
    %v112 = vunpack.c.h.b16 %v84
    %v113 = vunpack.c.l.b16 %v85
    %v114 = vunpack.c.h.b16 %v85
    %v115 = vunpack.c.l.b16 %v86
    %v116 = vunpack.c.h.b16 %v86
    %v117 = vunpack.c.l.b16 %v87
    %v118 = vunpack.c.h.b16 %v87
    %v119 = vunpack.c.l.b16 %v88
    %v120 = vunpack.c.h.b16 %v88
    %v121 = vpack.c.b16 %v107, %v105
    %v122 = vpack.c.b16 %v108, %v106
    %v123 = vpack.c.b16 %v111, %v109
    %v124 = vpack.c.b16 %v112, %v110
    %v125 = vpack.c.b16 %v115, %v113
    %v126 = vpack.c.b16 %v116, %v114
    %v127 = vpack.c.b16 %v119, %v117
    %v128 = vpack.c.b16 %v120, %v118
    %vm137 = vcmask 523264
    %v139 = vsel %vm137, %v89, 0
    %v142 = vsel %vm137, %v90, 0
    %v145 = vsel %vm137, %v91, 0
    %v148 = vsel %vm137, %v92, 0
    %v151 = vsel %vm137, %v93, 0
    %v154 = vsel %vm137, %v94, 0
    %v157 = vsel %vm137, %v95, 0
    %v160 = vsel %vm137, %v96, 0
    %162 = vmatprep.subr.bf16.mxu0 %v122
    %163 = vmatpush1.bf16.msra.mxu0 %v121
    %164 = vmatprep.subr.bf16.mxu0 %v124
    %165 = vmatpush1.bf16.msra.mxu0 %v123
    %166 = vmatprep.subr.bf16.mxu0 %v126
    %167 = vmatpush1.bf16.msra.mxu0 %v125
    %168 = vmatprep.subr.bf16.mxu0 %v128
    %169 = vmatpush1.bf16.msra.mxu0 %v127
    %170 = vmatprep.subr.bf16.mxu0 0
    %171 = vmatpush1.bf16.msra.mxu0 0
    %172 = vmatprep.subr.bf16.mxu0 0
    %173 = vmatpush1.bf16.msra.mxu0 0
    %174 = vmatprep.subr.bf16.mxu0 0
    %175 = vmatpush1.bf16.msra.mxu0 0
    %176 = vmatprep.subr.bf16.mxu0 0
    %177 = vmatpush1.bf16.msra.mxu0 0
    %178 = vmatprep.subr.bf16.mxu0 0
    %179 = vmatpush1.bf16.msra.mxu0 0
    %180 = vmatprep.subr.bf16.mxu0 0
    %181 = vmatpush1.bf16.msra.mxu0 0
    %182 = vmatprep.subr.bf16.mxu0 0
    %183 = vmatpush1.bf16.msra.mxu0 0
    %184 = vmatprep.subr.bf16.mxu0 0
    %185 = vmatpush1.bf16.msra.mxu0 0
    %186 = vmatprep.subr.bf16.mxu0 0
    %187 = vmatpush1.bf16.msra.mxu0 0
    %188 = vmatprep.subr.bf16.mxu0 0
    %189 = vmatpush1.bf16.msra.mxu0 0
    %190 = vmatprep.subr.bf16.mxu0 0
    %191 = vmatpush1.bf16.msra.mxu0 0
    %192 = vmatprep.subr.bf16.mxu0 0
    %193 = vmatpush1.bf16.msra.mxu0 0
    %194 = vmatprep.mubr.bf16.mxu0 0
    %195 = vmatmul.mubr.bf16.gmra.mrb[0].mxu0 %v139
    %v196 = vpop.f32.mrb[0].mxu0
    %v197 = vadd.f32 0.0, %v196
    %v198 = vpop.f32.mrb[0].mxu0
    %v199 = vadd.f32 0.0, %v198
    %v200 = vpop.f32.mrb[0].mxu0
    %v201 = vadd.f32 0.0, %v200
    %v202 = vpop.f32.mrb[0].mxu0
    %v203 = vadd.f32 0.0, %v202
    %204 = vmatprep.mubr.bf16.mxu0 0
    %205 = vmatmul.mubr.bf16.gmra.mrb[0].mxu0 %v142
    %v206 = vpop.f32.mrb[0].mxu0
    %v207 = vadd.f32 0.0, %v206
    %v208 = vpop.f32.mrb[0].mxu0
    %v209 = vadd.f32 0.0, %v208
    %v210 = vpop.f32.mrb[0].mxu0
    %v211 = vadd.f32 0.0, %v210
    %v212 = vpop.f32.mrb[0].mxu0
    %v213 = vadd.f32 0.0, %v212
    %214 = vmatprep.mubr.bf16.mxu0 0
    %215 = vmatmul.mubr.bf16.gmra.mrb[0].mxu0 %v145
    %v216 = vpop.f32.mrb[0].mxu0
    %v217 = vadd.f32 0.0, %v216
    %v218 = vpop.f32.mrb[0].mxu0
    %v219 = vadd.f32 0.0, %v218
    %v220 = vpop.f32.mrb[0].mxu0
    %v221 = vadd.f32 0.0, %v220
    %v222 = vpop.f32.mrb[0].mxu0
    %v223 = vadd.f32 0.0, %v222
    %224 = vmatprep.mubr.bf16.mxu0 0
    %225 = vmatmul.mubr.bf16.gmra.mrb[0].mxu0 %v148
    %v226 = vpop.f32.mrb[0].mxu0
    %v227 = vadd.f32 0.0, %v226
    %v228 = vpop.f32.mrb[0].mxu0
    %v229 = vadd.f32 0.0, %v228
    %v230 = vpop.f32.mrb[0].mxu0
    %v231 = vadd.f32 0.0, %v230
    %v232 = vpop.f32.mrb[0].mxu0
    %v233 = vadd.f32 0.0, %v232
    %234 = vmatprep.mubr.bf16.mxu0 0
    %235 = vmatmul.mubr.bf16.gmra.mrb[0].mxu0 %v151
    %v236 = vpop.f32.mrb[0].mxu0
    %v237 = vadd.f32 0.0, %v236
    %v238 = vpop.f32.mrb[0].mxu0
    %v239 = vadd.f32 0.0, %v238
    %v240 = vpop.f32.mrb[0].mxu0
    %v241 = vadd.f32 0.0, %v240
    %v242 = vpop.f32.mrb[0].mxu0
    %v243 = vadd.f32 0.0, %v242
    %244 = vmatprep.mubr.bf16.mxu0 0
    %245 = vmatmul.mubr.bf16.gmra.mrb[0].mxu0 %v154
    %v246 = vpop.f32.mrb[0].mxu0
    %v247 = vadd.f32 0.0, %v246
    %v248 = vpop.f32.mrb[0].mxu0
    %v249 = vadd.f32 0.0, %v248
    %v250 = vpop.f32.mrb[0].mxu0
    %v251 = vadd.f32 0.0, %v250
    %v252 = vpop.f32.mrb[0].mxu0
    %v253 = vadd.f32 0.0, %v252
    %254 = vmatprep.mubr.bf16.mxu0 0
    %255 = vmatmul.mubr.bf16.gmra.mrb[0].mxu0 %v157
    %v256 = vpop.f32.mrb[0].mxu0
    %v257 = vadd.f32 0.0, %v256
    %v258 = vpop.f32.mrb[0].mxu0
    %v259 = vadd.f32 0.0, %v258
    %v260 = vpop.f32.mrb[0].mxu0
    %v261 = vadd.f32 0.0, %v260
    %v262 = vpop.f32.mrb[0].mxu0
    %v263 = vadd.f32 0.0, %v262
    %264 = vmatprep.mubr.bf16.mxu0 0
    %265 = vmatmul.mubr.bf16.gmra.mrb[0].mxu0 %v160
    %v266 = vpop.f32.mrb[0].mxu0
    %v267 = vadd.f32 0.0, %v266
    %v268 = vpop.f32.mrb[0].mxu0
    %v269 = vadd.f32 0.0, %v268
    %v270 = vpop.f32.mrb[0].mxu0
    %v271 = vadd.f32 0.0, %v270
    %v272 = vpop.f32.mrb[0].mxu0
    %v273 = vadd.f32 0.0, %v272
    %274 = vdwg.mxu0
    %vm291 = vcmask 1040384
    %v292 = vrot.slane %v197, 7
    %v293 = vrot.slane %v201, 7
    %v294 = vsel %vm291, %v292, %v293
    %v295 = vrot.slane %v207, 7
    %v296 = vsel %vm291, %v293, %v295
    %v297 = vrot.slane %v211, 7
    %v298 = vsel %vm291, %v295, %v297
    %v299 = vrot.slane %v217, 7
    %v300 = vsel %vm291, %v297, %v299
    %v301 = vrot.slane %v221, 7
    %v302 = vsel %vm291, %v299, %v301
    %v303 = vrot.slane %v227, 7
    %v304 = vsel %vm291, %v301, %v303
    %v305 = vrot.slane %v231, 7
    %v306 = vsel %vm291, %v303, %v305
    %v307 = vrot.slane %v237, 7
    %v308 = vsel %vm291, %v305, %v307
    %v309 = vrot.slane %v241, 7
    %v310 = vsel %vm291, %v307, %v309
    %v311 = vrot.slane %v247, 7
    %v312 = vsel %vm291, %v309, %v311
    %v313 = vrot.slane %v251, 7
    %v314 = vsel %vm291, %v311, %v313
    %v315 = vrot.slane %v257, 7
    %v316 = vsel %vm291, %v313, %v315
    %v317 = vrot.slane %v261, 7
    %v318 = vsel %vm291, %v315, %v317
    %v319 = vrot.slane %v267, 7
    %v320 = vsel %vm291, %v317, %v319
    %v321 = vrot.slane %v271, 7
    %v322 = vsel %vm291, %v319, %v321
    %v339 = vsel %vm291, 0.0, %v292
    %340 = vrot.lane.b32.xlu0 %v197, 64
    %v341 = vpop.permute.xlu0 %340
    %342 = vrot.lane.b32.xlu0 %v201, 64
    %v343 = vpop.permute.xlu0 %342
    %344 = vrot.lane.b32.xlu0 %v207, 64
    %v345 = vpop.permute.xlu0 %344
    %346 = vrot.lane.b32.xlu0 %v211, 64
    %v347 = vpop.permute.xlu0 %346
    %348 = vrot.lane.b32.xlu0 %v217, 64
    %v349 = vpop.permute.xlu0 %348
    %350 = vrot.lane.b32.xlu0 %v221, 64
    %v351 = vpop.permute.xlu0 %350
    %352 = vrot.lane.b32.xlu0 %v227, 64
    %v353 = vpop.permute.xlu0 %352
    %354 = vrot.lane.b32.xlu0 %v231, 64
    %v355 = vpop.permute.xlu0 %354
    %356 = vrot.lane.b32.xlu0 %v237, 64
    %v357 = vpop.permute.xlu0 %356
    %358 = vrot.lane.b32.xlu0 %v241, 64
    %v359 = vpop.permute.xlu0 %358
    %360 = vrot.lane.b32.xlu0 %v247, 64
    %v361 = vpop.permute.xlu0 %360
    %362 = vrot.lane.b32.xlu0 %v251, 64
    %v363 = vpop.permute.xlu0 %362
    %364 = vrot.lane.b32.xlu0 %v257, 64
    %v365 = vpop.permute.xlu0 %364
    %366 = vrot.lane.b32.xlu0 %v261, 64
    %v367 = vpop.permute.xlu0 %366
    %368 = vrot.lane.b32.xlu0 %v267, 64
    %v369 = vpop.permute.xlu0 %368
    %370 = vrot.lane.b32.xlu0 %v271, 64
    %v371 = vpop.permute.xlu0 %370
    %v388 = vadd.f32 %v339, %v341
    %v389 = vadd.f32 %v294, %v343
    %v390 = vadd.f32 %v296, %v345
    %v391 = vadd.f32 %v298, %v347
    %v392 = vadd.f32 %v300, %v349
    %v393 = vadd.f32 %v302, %v351
    %v394 = vadd.f32 %v304, %v353
    %v395 = vadd.f32 %v306, %v355
    %v396 = vadd.f32 %v308, %v357
    %v397 = vadd.f32 %v310, %v359
    %v398 = vadd.f32 %v312, %v361
    %v399 = vadd.f32 %v314, %v363
    %v400 = vadd.f32 %v316, %v365
    %v401 = vadd.f32 %v318, %v367
    %v402 = vadd.f32 %v320, %v369
    %v403 = vadd.f32 %v322, %v371
    %vm420 = vcmask 1046528
    %v421 = vrot.slane %v199, 1
    %v422 = vrot.slane %v203, 1
    %v423 = vsel %vm420, %v421, %v422
    %v424 = vrot.slane %v209, 1
    %v425 = vsel %vm420, %v422, %v424
    %v426 = vrot.slane %v213, 1
    %v427 = vsel %vm420, %v424, %v426
    %v428 = vrot.slane %v219, 1
    %v429 = vsel %vm420, %v426, %v428
    %v430 = vrot.slane %v223, 1
    %v431 = vsel %vm420, %v428, %v430
    %v432 = vrot.slane %v229, 1
    %v433 = vsel %vm420, %v430, %v432
    %v434 = vrot.slane %v233, 1
    %v435 = vsel %vm420, %v432, %v434
    %v436 = vrot.slane %v239, 1
    %v437 = vsel %vm420, %v434, %v436
    %v438 = vrot.slane %v243, 1
    %v439 = vsel %vm420, %v436, %v438
    %v440 = vrot.slane %v249, 1
    %v441 = vsel %vm420, %v438, %v440
    %v442 = vrot.slane %v253, 1
    %v443 = vsel %vm420, %v440, %v442
    %v444 = vrot.slane %v259, 1
    %v445 = vsel %vm420, %v442, %v444
    %v446 = vrot.slane %v263, 1
    %v447 = vsel %vm420, %v444, %v446
    %v448 = vrot.slane %v269, 1
    %v449 = vsel %vm420, %v446, %v448
    %v450 = vrot.slane %v273, 1
    %v451 = vsel %vm420, %v448, %v450
    %v468 = vsel %vm420, %v450, 0.0
    %v469 = vadd.f32 %v388, %v423
    %v470 = vadd.f32 %v389, %v425
    %v471 = vadd.f32 %v390, %v427
    %v472 = vadd.f32 %v391, %v429
    %v473 = vadd.f32 %v392, %v431
    %v474 = vadd.f32 %v393, %v433
    %v475 = vadd.f32 %v394, %v435
    %v476 = vadd.f32 %v395, %v437
    %v477 = vadd.f32 %v396, %v439
    %v478 = vadd.f32 %v397, %v441
    %v479 = vadd.f32 %v398, %v443
    %v480 = vadd.f32 %v399, %v445
    %v481 = vadd.f32 %v400, %v447
    %v482 = vadd.f32 %v401, %v449
    %v483 = vadd.f32 %v402, %v451
    %v484 = vadd.f32 %v403, %v468
    %v485 = vld [vmem:[%s2] sm:$0x1]
    %v487 = vlaneseq
    %v488 = vshrl.u32 %v487, 7
    %v489 = vsub.s32 0, %v488
    %v490 = vrot.slane %v485, %v489
    %v492 = vadd.f32 %v469, %v490
    %v493 = vadd.f32 %v470, %v490
    %v494 = vadd.f32 %v471, %v490
    %v495 = vadd.f32 %v472, %v490
    %v496 = vadd.f32 %v473, %v490
    %v497 = vadd.f32 %v474, %v490
    %v498 = vadd.f32 %v475, %v490
    %v499 = vadd.f32 %v476, %v490
    %v500 = vadd.f32 %v477, %v490
    %v501 = vadd.f32 %v478, %v490
    %v502 = vadd.f32 %v479, %v490
    %v503 = vadd.f32 %v480, %v490
    %v504 = vadd.f32 %v481, %v490
    %v505 = vadd.f32 %v482, %v490
    %v506 = vadd.f32 %v483, %v490
    %v507 = vadd.f32 %v484, %v490
    %v508 = vld [vmem:[%s3] sm:$0x1]
    %v509 = vld [vmem:[%s4] sm:$0x1]
    %v510 = vsel %vm137, %v492, 0.0
    %511 = vadd.xlane.f32.xlu0 %v510
    %v512 = vpop.xlane.xlu0 %511
    %v513 = vsel %vm137, %v493, 0.0
    %514 = vadd.xlane.f32.xlu0 %v513
    %v515 = vpop.xlane.xlu0 %514
    %v516 = vsel %vm137, %v494, 0.0
    %517 = vadd.xlane.f32.xlu0 %v516
    %v518 = vpop.xlane.xlu0 %517
    %v519 = vsel %vm137, %v495, 0.0
    %520 = vadd.xlane.f32.xlu0 %v519
    %v521 = vpop.xlane.xlu0 %520
    %v522 = vsel %vm137, %v496, 0.0
    %523 = vadd.xlane.f32.xlu0 %v522
    %v524 = vpop.xlane.xlu0 %523
    %v525 = vsel %vm137, %v497, 0.0
    %526 = vadd.xlane.f32.xlu0 %v525
    %v527 = vpop.xlane.xlu0 %526
    %v528 = vsel %vm137, %v498, 0.0
    %529 = vadd.xlane.f32.xlu0 %v528
    %v530 = vpop.xlane.xlu0 %529
    %v531 = vsel %vm137, %v499, 0.0
    %532 = vadd.xlane.f32.xlu0 %v531
    %v533 = vpop.xlane.xlu0 %532
    %v534 = vsel %vm137, %v500, 0.0
    %535 = vadd.xlane.f32.xlu0 %v534
    %v536 = vpop.xlane.xlu0 %535
    %v537 = vsel %vm137, %v501, 0.0
    %538 = vadd.xlane.f32.xlu0 %v537
    %v539 = vpop.xlane.xlu0 %538
    %v540 = vsel %vm137, %v502, 0.0
    %541 = vadd.xlane.f32.xlu0 %v540
    %v542 = vpop.xlane.xlu0 %541
    %v543 = vsel %vm137, %v503, 0.0
    %544 = vadd.xlane.f32.xlu0 %v543
    %v545 = vpop.xlane.xlu0 %544
    %v546 = vsel %vm137, %v504, 0.0
    %547 = vadd.xlane.f32.xlu0 %v546
    %v548 = vpop.xlane.xlu0 %547
    %v549 = vsel %vm137, %v505, 0.0
    %550 = vadd.xlane.f32.xlu0 %v549
    %v551 = vpop.xlane.xlu0 %550
    %v552 = vsel %vm137, %v506, 0.0
    %553 = vadd.xlane.f32.xlu0 %v552
    %v554 = vpop.xlane.xlu0 %553
    %v555 = vsel %vm137, %v507, 0.0
    %556 = vadd.xlane.f32.xlu0 %v555
    %v557 = vpop.xlane.xlu0 %556
    %v558 = vrcp.pop 64.0
    %v559 = vmul.f32 %v512, %v558
    %v560 = vmul.f32 %v515, %v558
    %v561 = vmul.f32 %v518, %v558
    %v562 = vmul.f32 %v521, %v558
    %v563 = vmul.f32 %v524, %v558
    %v564 = vmul.f32 %v527, %v558
    %v565 = vmul.f32 %v530, %v558
    %v566 = vmul.f32 %v533, %v558
    %v567 = vmul.f32 %v536, %v558
    %v568 = vmul.f32 %v539, %v558
    %v569 = vmul.f32 %v542, %v558
    %v570 = vmul.f32 %v545, %v558
    %v571 = vmul.f32 %v548, %v558
    %v572 = vmul.f32 %v551, %v558
    %v573 = vmul.f32 %v554, %v558
    %v574 = vmul.f32 %v557, %v558
    %v575 = vsub.f32 %v492, %v559
    %v576 = vsub.f32 %v493, %v560
    %v577 = vsub.f32 %v494, %v561
    %v578 = vsub.f32 %v495, %v562
    %v579 = vsub.f32 %v496, %v563
    %v580 = vsub.f32 %v497, %v564
    %v581 = vsub.f32 %v498, %v565
    %v582 = vsub.f32 %v499, %v566
    %v583 = vsub.f32 %v500, %v567
    %v584 = vsub.f32 %v501, %v568
    %v585 = vsub.f32 %v502, %v569
    %v586 = vsub.f32 %v503, %v570
    %v587 = vsub.f32 %v504, %v571
    %v588 = vsub.f32 %v505, %v572
    %v589 = vsub.f32 %v506, %v573
    %v590 = vsub.f32 %v507, %v574
    %v591 = vmul.f32 %v575, %v575
    %v592 = vmul.f32 %v576, %v576
    %v593 = vmul.f32 %v577, %v577
    %v594 = vmul.f32 %v578, %v578
    %v595 = vmul.f32 %v579, %v579
    %v596 = vmul.f32 %v580, %v580
    %v597 = vmul.f32 %v581, %v581
    %v598 = vmul.f32 %v582, %v582
    %v599 = vmul.f32 %v583, %v583
    %v600 = vmul.f32 %v584, %v584
    %v601 = vmul.f32 %v585, %v585
    %v602 = vmul.f32 %v586, %v586
    %v603 = vmul.f32 %v587, %v587
    %v604 = vmul.f32 %v588, %v588
    %v605 = vmul.f32 %v589, %v589
    %v606 = vmul.f32 %v590, %v590
    %v607 = vsel %vm137, %v591, 0.0
    %608 = vadd.xlane.f32.xlu0 %v607
    %v609 = vpop.xlane.xlu0 %608
    %v610 = vsel %vm137, %v592, 0.0
    %611 = vadd.xlane.f32.xlu0 %v610
    %v612 = vpop.xlane.xlu0 %611
    %v613 = vsel %vm137, %v593, 0.0
    %614 = vadd.xlane.f32.xlu0 %v613
    %v615 = vpop.xlane.xlu0 %614
    %v616 = vsel %vm137, %v594, 0.0
    %617 = vadd.xlane.f32.xlu0 %v616
    %v618 = vpop.xlane.xlu0 %617
    %v619 = vsel %vm137, %v595, 0.0
    %620 = vadd.xlane.f32.xlu0 %v619
    %v621 = vpop.xlane.xlu0 %620
    %v622 = vsel %vm137, %v596, 0.0
    %623 = vadd.xlane.f32.xlu0 %v622
    %v624 = vpop.xlane.xlu0 %623
    %v625 = vsel %vm137, %v597, 0.0
    %626 = vadd.xlane.f32.xlu0 %v625
    %v627 = vpop.xlane.xlu0 %626
    %v628 = vsel %vm137, %v598, 0.0
    %629 = vadd.xlane.f32.xlu0 %v628
    %v630 = vpop.xlane.xlu0 %629
    %v631 = vsel %vm137, %v599, 0.0
    %632 = vadd.xlane.f32.xlu0 %v631
    %v633 = vpop.xlane.xlu0 %632
    %v634 = vsel %vm137, %v600, 0.0
    %635 = vadd.xlane.f32.xlu0 %v634
    %v636 = vpop.xlane.xlu0 %635
    %v637 = vsel %vm137, %v601, 0.0
    %638 = vadd.xlane.f32.xlu0 %v637
    %v639 = vpop.xlane.xlu0 %638
    %v640 = vsel %vm137, %v602, 0.0
    %641 = vadd.xlane.f32.xlu0 %v640
    %v642 = vpop.xlane.xlu0 %641
    %v643 = vsel %vm137, %v603, 0.0
    %644 = vadd.xlane.f32.xlu0 %v643
    %v645 = vpop.xlane.xlu0 %644
    %v646 = vsel %vm137, %v604, 0.0
    %647 = vadd.xlane.f32.xlu0 %v646
    %v648 = vpop.xlane.xlu0 %647
    %v649 = vsel %vm137, %v605, 0.0
    %650 = vadd.xlane.f32.xlu0 %v649
    %v651 = vpop.xlane.xlu0 %650
    %v652 = vsel %vm137, %v606, 0.0
    %653 = vadd.xlane.f32.xlu0 %v652
    %v654 = vpop.xlane.xlu0 %653
    %v655 = vmul.f32 %v609, %v558
    %v656 = vmul.f32 %v612, %v558
    %v657 = vmul.f32 %v615, %v558
    %v658 = vmul.f32 %v618, %v558
    %v659 = vmul.f32 %v621, %v558
    %v660 = vmul.f32 %v624, %v558
    %v661 = vmul.f32 %v627, %v558
    %v662 = vmul.f32 %v630, %v558
    %v663 = vmul.f32 %v633, %v558
    %v664 = vmul.f32 %v636, %v558
    %v665 = vmul.f32 %v639, %v558
    %v666 = vmul.f32 %v642, %v558
    %v667 = vmul.f32 %v645, %v558
    %v668 = vmul.f32 %v648, %v558
    %v669 = vmul.f32 %v651, %v558
    %v670 = vmul.f32 %v654, %v558
    %v671 = vadd.f32 %v655, 1e-05
    %v672 = vadd.f32 %v656, 1e-05
    %v673 = vadd.f32 %v657, 1e-05
    %v674 = vadd.f32 %v658, 1e-05
    %v675 = vadd.f32 %v659, 1e-05
    %v676 = vadd.f32 %v660, 1e-05
    %v677 = vadd.f32 %v661, 1e-05
    %v678 = vadd.f32 %v662, 1e-05
    %v679 = vadd.f32 %v663, 1e-05
    %v680 = vadd.f32 %v664, 1e-05
    %v681 = vadd.f32 %v665, 1e-05
    %v682 = vadd.f32 %v666, 1e-05
    %v683 = vadd.f32 %v667, 1e-05
    %v684 = vadd.f32 %v668, 1e-05
    %v685 = vadd.f32 %v669, 1e-05
    %v686 = vadd.f32 %v670, 1e-05
    %v687 = vrsqrt.pop %v671
    %v688 = vrsqrt.pop %v672
    %v689 = vrsqrt.pop %v673
    %v690 = vrsqrt.pop %v674
    %v691 = vrsqrt.pop %v675
    %v692 = vrsqrt.pop %v676
    %v693 = vrsqrt.pop %v677
    %v694 = vrsqrt.pop %v678
    %v695 = vrsqrt.pop %v679
    %v696 = vrsqrt.pop %v680
    %v697 = vrsqrt.pop %v681
    %v698 = vrsqrt.pop %v682
    %v699 = vrsqrt.pop %v683
    %v700 = vrsqrt.pop %v684
    %v701 = vrsqrt.pop %v685
    %v702 = vrsqrt.pop %v686
    %v703 = vmul.f32 %v575, %v687
    %v704 = vmul.f32 %v576, %v688
    %v705 = vmul.f32 %v577, %v689
    %v706 = vmul.f32 %v578, %v690
    %v707 = vmul.f32 %v579, %v691
    %v708 = vmul.f32 %v580, %v692
    %v709 = vmul.f32 %v581, %v693
    %v710 = vmul.f32 %v582, %v694
    %v711 = vmul.f32 %v583, %v695
    %v712 = vmul.f32 %v584, %v696
    %v713 = vmul.f32 %v585, %v697
    %v714 = vmul.f32 %v586, %v698
    %v715 = vmul.f32 %v587, %v699
    %v716 = vmul.f32 %v588, %v700
    %v717 = vmul.f32 %v589, %v701
    %v718 = vmul.f32 %v590, %v702
    %v720 = vlaneseq
    %v721 = vshrl.u32 %v720, 7
    %v722 = vsub.s32 0, %v721
    %v723 = vrot.slane %v508, %v722
    %v725 = vmul.f32 %v703, %v723
    %v726 = vmul.f32 %v704, %v723
    %v727 = vmul.f32 %v705, %v723
    %v728 = vmul.f32 %v706, %v723
    %v729 = vmul.f32 %v707, %v723
    %v730 = vmul.f32 %v708, %v723
    %v731 = vmul.f32 %v709, %v723
    %v732 = vmul.f32 %v710, %v723
    %v733 = vmul.f32 %v711, %v723
    %v734 = vmul.f32 %v712, %v723
    %v735 = vmul.f32 %v713, %v723
    %v736 = vmul.f32 %v714, %v723
    %v737 = vmul.f32 %v715, %v723
    %v738 = vmul.f32 %v716, %v723
    %v739 = vmul.f32 %v717, %v723
    %v740 = vmul.f32 %v718, %v723
    %v742 = vlaneseq
    %v743 = vshrl.u32 %v742, 7
    %v744 = vsub.s32 0, %v743
    %v745 = vrot.slane %v509, %v744
    %v747 = vadd.f32 %v725, %v745
    %v748 = vadd.f32 %v726, %v745
    %v749 = vadd.f32 %v727, %v745
    %v750 = vadd.f32 %v728, %v745
    %v751 = vadd.f32 %v729, %v745
    %v752 = vadd.f32 %v730, %v745
    %v753 = vadd.f32 %v731, %v745
    %v754 = vadd.f32 %v732, %v745
    %v755 = vadd.f32 %v733, %v745
    %v756 = vadd.f32 %v734, %v745
    %v757 = vadd.f32 %v735, %v745
    %v758 = vadd.f32 %v736, %v745
    %v759 = vadd.f32 %v737, %v745
    %v760 = vadd.f32 %v738, %v745
    %v761 = vadd.f32 %v739, %v745
    %v762 = vadd.f32 %v740, %v745
    %v763 = vmax.f32 %v747, 0.0
    %v764 = vmax.f32 %v748, 0.0
    %v765 = vmax.f32 %v749, 0.0
    %v766 = vmax.f32 %v750, 0.0
    %v767 = vmax.f32 %v751, 0.0
    %v768 = vmax.f32 %v752, 0.0
    %v769 = vmax.f32 %v753, 0.0
    %v770 = vmax.f32 %v754, 0.0
    %v771 = vmax.f32 %v755, 0.0
    %v772 = vmax.f32 %v756, 0.0
    %v773 = vmax.f32 %v757, 0.0
    %v774 = vmax.f32 %v758, 0.0
    %v775 = vmax.f32 %v759, 0.0
    %v776 = vmax.f32 %v760, 0.0
    %v777 = vmax.f32 %v761, 0.0
    %v778 = vmax.f32 %v762, 0.0
    %779 = vst.msk [vmem:[#allocation11] sm:$0xff] %vm137, %v763
    %780 = vst.msk [vmem:[#allocation11 + $0x8] sm:$0xff] %vm137, %v764
    %781 = vst.msk [vmem:[#allocation11 + $0x10] sm:$0xff] %vm137, %v765
    %782 = vst.msk [vmem:[#allocation11 + $0x18] sm:$0xff] %vm137, %v766
    %783 = vst.msk [vmem:[#allocation11 + $0x20] sm:$0xff] %vm137, %v767
    %784 = vst.msk [vmem:[#allocation11 + $0x28] sm:$0xff] %vm137, %v768
    %785 = vst.msk [vmem:[#allocation11 + $0x30] sm:$0xff] %vm137, %v769
    %786 = vst.msk [vmem:[#allocation11 + $0x38] sm:$0xff] %vm137, %v770
    %787 = vst.msk [vmem:[#allocation11 + $0x40] sm:$0xff] %vm137, %v771
    %788 = vst.msk [vmem:[#allocation11 + $0x48] sm:$0xff] %vm137, %v772
    %789 = vst.msk [vmem:[#allocation11 + $0x50] sm:$0xff] %vm137, %v773
    %790 = vst.msk [vmem:[#allocation11 + $0x58] sm:$0xff] %vm137, %v774
    %791 = vst.msk [vmem:[#allocation11 + $0x60] sm:$0xff] %vm137, %v775
    %792 = vst.msk [vmem:[#allocation11 + $0x68] sm:$0xff] %vm137, %v776
    %793 = vst.msk [vmem:[#allocation11 + $0x70] sm:$0xff] %vm137, %v777
    %794 = vst.msk [vmem:[#allocation11 + $0x78] sm:$0xff] %vm137, %v778
    %v795 = vld [vmem:[%s5] sm:$0xff]
    %v796 = vld [vmem:[%s5 + $0x8] sm:$0xff]
    %v797 = vld [vmem:[%s5 + $0x10] sm:$0xff]
    %v798 = vld [vmem:[%s5 + $0x18] sm:$0xff]
    %v799 = vld [vmem:[%s5 + $0x20] sm:$0xff]
    %v800 = vld [vmem:[%s5 + $0x28] sm:$0xff]
    %v801 = vld [vmem:[%s5 + $0x30] sm:$0xff]
    %v802 = vld [vmem:[%s5 + $0x38] sm:$0xff]
    %v803 = vpack.c.bf16 %v764, %v763
    %v804 = vpack.c.bf16 %v766, %v765
    %v805 = vpack.c.bf16 %v768, %v767
    %v806 = vpack.c.bf16 %v770, %v769
    %v807 = vpack.c.bf16 %v772, %v771
    %v808 = vpack.c.bf16 %v774, %v773
    %v809 = vpack.c.bf16 %v776, %v775
    %v810 = vpack.c.bf16 %v778, %v777
    %v819 = vunpack.c.l.b16 %v795
    %v820 = vunpack.c.h.b16 %v795
    %v821 = vunpack.c.l.b16 %v796
    %v822 = vunpack.c.h.b16 %v796
    %v823 = vunpack.c.l.b16 %v797
    %v824 = vunpack.c.h.b16 %v797
    %v825 = vunpack.c.l.b16 %v798
    %v826 = vunpack.c.h.b16 %v798
    %v827 = vunpack.c.l.b16 %v799
    %v828 = vunpack.c.h.b16 %v799
    %v829 = vunpack.c.l.b16 %v800
    %v830 = vunpack.c.h.b16 %v800
    %v831 = vunpack.c.l.b16 %v801
    %v832 = vunpack.c.h.b16 %v801
    %v833 = vunpack.c.l.b16 %v802
    %v834 = vunpack.c.h.b16 %v802
    %v835 = vpack.c.b16 %v821, %v819
    %v836 = vpack.c.b16 %v822, %v820
    %v837 = vpack.c.b16 %v825, %v823
    %v838 = vpack.c.b16 %v826, %v824
    %v839 = vpack.c.b16 %v829, %v827
    %v840 = vpack.c.b16 %v830, %v828
    %v841 = vpack.c.b16 %v833, %v831
    %v842 = vpack.c.b16 %v834, %v832
    %v852 = vsel %vm137, %v803, 0
    %v855 = vsel %vm137, %v804, 0
    %v858 = vsel %vm137, %v805, 0
    %v861 = vsel %vm137, %v806, 0
    %v864 = vsel %vm137, %v807, 0
    %v867 = vsel %vm137, %v808, 0
    %v870 = vsel %vm137, %v809, 0
    %v873 = vsel %vm137, %v810, 0
    %875 = vmatprep.subr.bf16.mxu0 %v836
    %876 = vmatpush1.bf16.msra.mxu0 %v835
    %877 = vmatprep.subr.bf16.mxu0 %v838
    %878 = vmatpush1.bf16.msra.mxu0 %v837
    %879 = vmatprep.subr.bf16.mxu0 %v840
    %880 = vmatpush1.bf16.msra.mxu0 %v839
    %881 = vmatprep.subr.bf16.mxu0 %v842
    %882 = vmatpush1.bf16.msra.mxu0 %v841
    %883 = vmatprep.subr.bf16.mxu0 0
    %884 = vmatpush1.bf16.msra.mxu0 0
    %885 = vmatprep.subr.bf16.mxu0 0
    %886 = vmatpush1.bf16.msra.mxu0 0
    %887 = vmatprep.subr.bf16.mxu0 0
    %888 = vmatpush1.bf16.msra.mxu0 0
    %889 = vmatprep.subr.bf16.mxu0 0
    %890 = vmatpush1.bf16.msra.mxu0 0
    %891 = vmatprep.subr.bf16.mxu0 0
    %892 = vmatpush1.bf16.msra.mxu0 0
    %893 = vmatprep.subr.bf16.mxu0 0
    %894 = vmatpush1.bf16.msra.mxu0 0
    %895 = vmatprep.subr.bf16.mxu0 0
    %896 = vmatpush1.bf16.msra.mxu0 0
    %897 = vmatprep.subr.bf16.mxu0 0
    %898 = vmatpush1.bf16.msra.mxu0 0
    %899 = vmatprep.subr.bf16.mxu0 0
    %900 = vmatpush1.bf16.msra.mxu0 0
    %901 = vmatprep.subr.bf16.mxu0 0
    %902 = vmatpush1.bf16.msra.mxu0 0
    %903 = vmatprep.subr.bf16.mxu0 0
    %904 = vmatpush1.bf16.msra.mxu0 0
    %905 = vmatprep.subr.bf16.mxu0 0
    %906 = vmatpush1.bf16.msra.mxu0 0
    %907 = vmatprep.mubr.bf16.mxu0 0
    %908 = vmatmul.mubr.bf16.gmra.mrb[0].mxu0 %v852
    %v909 = vpop.f32.mrb[0].mxu0
    %v910 = vadd.f32 0.0, %v909
    %v911 = vpop.f32.mrb[0].mxu0
    %v912 = vadd.f32 0.0, %v911
    %v913 = vpop.f32.mrb[0].mxu0
    %v914 = vadd.f32 0.0, %v913
    %v915 = vpop.f32.mrb[0].mxu0
    %v916 = vadd.f32 0.0, %v915
    %917 = vmatprep.mubr.bf16.mxu0 0
    %918 = vmatmul.mubr.bf16.gmra.mrb[0].mxu0 %v855
    %v919 = vpop.f32.mrb[0].mxu0
    %v920 = vadd.f32 0.0, %v919
    %v921 = vpop.f32.mrb[0].mxu0
    %v922 = vadd.f32 0.0, %v921
    %v923 = vpop.f32.mrb[0].mxu0
    %v924 = vadd.f32 0.0, %v923
    %v925 = vpop.f32.mrb[0].mxu0
    %v926 = vadd.f32 0.0, %v925
    %927 = vmatprep.mubr.bf16.mxu0 0
    %928 = vmatmul.mubr.bf16.gmra.mrb[0].mxu0 %v858
    %v929 = vpop.f32.mrb[0].mxu0
    %v930 = vadd.f32 0.0, %v929
    %v931 = vpop.f32.mrb[0].mxu0
    %v932 = vadd.f32 0.0, %v931
    %v933 = vpop.f32.mrb[0].mxu0
    %v934 = vadd.f32 0.0, %v933
    %v935 = vpop.f32.mrb[0].mxu0
    %v936 = vadd.f32 0.0, %v935
    %937 = vmatprep.mubr.bf16.mxu0 0
    %938 = vmatmul.mubr.bf16.gmra.mrb[0].mxu0 %v861
    %v939 = vpop.f32.mrb[0].mxu0
    %v940 = vadd.f32 0.0, %v939
    %v941 = vpop.f32.mrb[0].mxu0
    %v942 = vadd.f32 0.0, %v941
    %v943 = vpop.f32.mrb[0].mxu0
    %v944 = vadd.f32 0.0, %v943
    %v945 = vpop.f32.mrb[0].mxu0
    %v946 = vadd.f32 0.0, %v945
    %947 = vmatprep.mubr.bf16.mxu0 0
    %948 = vmatmul.mubr.bf16.gmra.mrb[0].mxu0 %v864
    %v949 = vpop.f32.mrb[0].mxu0
    %v950 = vadd.f32 0.0, %v949
    %v951 = vpop.f32.mrb[0].mxu0
    %v952 = vadd.f32 0.0, %v951
    %v953 = vpop.f32.mrb[0].mxu0
    %v954 = vadd.f32 0.0, %v953
    %v955 = vpop.f32.mrb[0].mxu0
    %v956 = vadd.f32 0.0, %v955
    %957 = vmatprep.mubr.bf16.mxu0 0
    %958 = vmatmul.mubr.bf16.gmra.mrb[0].mxu0 %v867
    %v959 = vpop.f32.mrb[0].mxu0
    %v960 = vadd.f32 0.0, %v959
    %v961 = vpop.f32.mrb[0].mxu0
    %v962 = vadd.f32 0.0, %v961
    %v963 = vpop.f32.mrb[0].mxu0
    %v964 = vadd.f32 0.0, %v963
    %v965 = vpop.f32.mrb[0].mxu0
    %v966 = vadd.f32 0.0, %v965
    %967 = vmatprep.mubr.bf16.mxu0 0
    %968 = vmatmul.mubr.bf16.gmra.mrb[0].mxu0 %v870
    %v969 = vpop.f32.mrb[0].mxu0
    %v970 = vadd.f32 0.0, %v969
    %v971 = vpop.f32.mrb[0].mxu0
    %v972 = vadd.f32 0.0, %v971
    %v973 = vpop.f32.mrb[0].mxu0
    %v974 = vadd.f32 0.0, %v973
    %v975 = vpop.f32.mrb[0].mxu0
    %v976 = vadd.f32 0.0, %v975
    %977 = vmatprep.mubr.bf16.mxu0 0
    %978 = vmatmul.mubr.bf16.gmra.mrb[0].mxu0 %v873
    %v979 = vpop.f32.mrb[0].mxu0
    %v980 = vadd.f32 0.0, %v979
    %v981 = vpop.f32.mrb[0].mxu0
    %v982 = vadd.f32 0.0, %v981
    %v983 = vpop.f32.mrb[0].mxu0
    %v984 = vadd.f32 0.0, %v983
    %v985 = vpop.f32.mrb[0].mxu0
    %v986 = vadd.f32 0.0, %v985
    %987 = vdwg.mxu0
    %988 = vst [vmem:[#allocation10] sm:$0xff] %v912
    %989 = vst [vmem:[#allocation10 + $0x8] sm:$0xff] %v916
    %990 = vst [vmem:[#allocation10 + $0x10] sm:$0xff] %v922
    %991 = vst [vmem:[#allocation10 + $0x18] sm:$0xff] %v926
    %992 = vst [vmem:[#allocation10 + $0x20] sm:$0xff] %v932
    %993 = vst [vmem:[#allocation10 + $0x28] sm:$0xff] %v936
    %994 = vst [vmem:[#allocation10 + $0x30] sm:$0xff] %v942
    %995 = vst [vmem:[#allocation10 + $0x38] sm:$0xff] %v946
    %996 = vst [vmem:[#allocation10 + $0x40] sm:$0xff] %v952
    %997 = vst [vmem:[#allocation10 + $0x48] sm:$0xff] %v956
    %998 = vst [vmem:[#allocation10 + $0x50] sm:$0xff] %v962
    %999 = vst [vmem:[#allocation10 + $0x58] sm:$0xff] %v966
    %1000 = vst [vmem:[#allocation10 + $0x60] sm:$0xff] %v972
    %1001 = vst [vmem:[#allocation10 + $0x68] sm:$0xff] %v976
    %1002 = vst [vmem:[#allocation10 + $0x70] sm:$0xff] %v982
    %1003 = vst [vmem:[#allocation10 + $0x78] sm:$0xff] %v986
    %v1004 = vld [vmem:[%s7] sm:$0x1]
    %v1006 = vlaneseq
    %v1007 = vshrl.u32 %v1006, 7
    %v1008 = vsub.s32 0, %v1007
    %v1009 = vrot.slane %v1004, %v1008
    %vm1027 = vcmask 1042432
    %v1028 = vrot.slane %v910, 5
    %v1029 = vrot.slane %v914, 5
    %v1030 = vsel %vm1027, %v1028, %v1029
    %v1031 = vrot.slane %v920, 5
    %v1032 = vsel %vm1027, %v1029, %v1031
    %v1033 = vrot.slane %v924, 5
    %v1034 = vsel %vm1027, %v1031, %v1033
    %v1035 = vrot.slane %v930, 5
    %v1036 = vsel %vm1027, %v1033, %v1035
    %v1037 = vrot.slane %v934, 5
    %v1038 = vsel %vm1027, %v1035, %v1037
    %v1039 = vrot.slane %v940, 5
    %v1040 = vsel %vm1027, %v1037, %v1039
    %v1041 = vrot.slane %v944, 5
    %v1042 = vsel %vm1027, %v1039, %v1041
    %v1043 = vrot.slane %v950, 5
    %v1044 = vsel %vm1027, %v1041, %v1043
    %v1045 = vrot.slane %v954, 5
    %v1046 = vsel %vm1027, %v1043, %v1045
    %v1047 = vrot.slane %v960, 5
    %v1048 = vsel %vm1027, %v1045, %v1047
    %v1049 = vrot.slane %v964, 5
    %v1050 = vsel %vm1027, %v1047, %v1049
    %v1051 = vrot.slane %v970, 5
    %v1052 = vsel %vm1027, %v1049, %v1051
    %v1053 = vrot.slane %v974, 5
    %v1054 = vsel %vm1027, %v1051, %v1053
    %v1055 = vrot.slane %v980, 5
    %v1056 = vsel %vm1027, %v1053, %v1055
    %v1057 = vrot.slane %v984, 5
    %v1058 = vsel %vm1027, %v1055, %v1057
    %v1075 = vsel %vm1027, 0.0, %v1028
    %v1076 = vld [vmem:[%s6] sm:$0x1]
    %v1077 = vlaneseq
    %v1078 = vshrl.u32 %v1077, 7
    %v1079 = vsub.s32 0, %v1078
    %v1080 = vrot.slane %v1076, %v1079
    %v1081 = vmul.f32 %v1075, %v1080
    %v1082 = vmul.f32 %v1030, %v1080
    %v1083 = vmul.f32 %v1032, %v1080
    %v1084 = vmul.f32 %v1034, %v1080
    %v1085 = vmul.f32 %v1036, %v1080
    %v1086 = vmul.f32 %v1038, %v1080
    %v1087 = vmul.f32 %v1040, %v1080
    %v1088 = vmul.f32 %v1042, %v1080
    %v1089 = vmul.f32 %v1044, %v1080
    %v1090 = vmul.f32 %v1046, %v1080
    %v1091 = vmul.f32 %v1048, %v1080
    %v1092 = vmul.f32 %v1050, %v1080
    %v1093 = vmul.f32 %v1052, %v1080
    %v1094 = vmul.f32 %v1054, %v1080
    %v1095 = vmul.f32 %v1056, %v1080
    %v1096 = vmul.f32 %v1058, %v1080
    %v1097 = vadd.f32 %v1009, %v1081
    %v1098 = vadd.f32 %v1009, %v1082
    %v1099 = vadd.f32 %v1009, %v1083
    %v1100 = vadd.f32 %v1009, %v1084
    %v1101 = vadd.f32 %v1009, %v1085
    %v1102 = vadd.f32 %v1009, %v1086
    %v1103 = vadd.f32 %v1009, %v1087
    %v1104 = vadd.f32 %v1009, %v1088
    %v1105 = vadd.f32 %v1009, %v1089
    %v1106 = vadd.f32 %v1009, %v1090
    %v1107 = vadd.f32 %v1009, %v1091
    %v1108 = vadd.f32 %v1009, %v1092
    %v1109 = vadd.f32 %v1009, %v1093
    %v1110 = vadd.f32 %v1009, %v1094
    %v1111 = vadd.f32 %v1009, %v1095
    %v1112 = vadd.f32 %v1009, %v1096
    %vm1113 = vcmask 1041408
    %v1114 = vrot.slane %v910, 6
    %v1115 = vrot.slane %v914, 6
    %v1116 = vsel %vm1113, %v1114, %v1115
    %v1117 = vrot.slane %v920, 6
    %v1118 = vsel %vm1113, %v1115, %v1117
    %v1119 = vrot.slane %v924, 6
    %v1120 = vsel %vm1113, %v1117, %v1119
    %v1121 = vrot.slane %v930, 6
    %v1122 = vsel %vm1113, %v1119, %v1121
    %v1123 = vrot.slane %v934, 6
    %v1124 = vsel %vm1113, %v1121, %v1123
    %v1125 = vrot.slane %v940, 6
    %v1126 = vsel %vm1113, %v1123, %v1125
    %v1127 = vrot.slane %v944, 6
    %v1128 = vsel %vm1113, %v1125, %v1127
    %v1129 = vrot.slane %v950, 6
    %v1130 = vsel %vm1113, %v1127, %v1129
    %v1131 = vrot.slane %v954, 6
    %v1132 = vsel %vm1113, %v1129, %v1131
    %v1133 = vrot.slane %v960, 6
    %v1134 = vsel %vm1113, %v1131, %v1133
    %v1135 = vrot.slane %v964, 6
    %v1136 = vsel %vm1113, %v1133, %v1135
    %v1137 = vrot.slane %v970, 6
    %v1138 = vsel %vm1113, %v1135, %v1137
    %v1139 = vrot.slane %v974, 6
    %v1140 = vsel %vm1113, %v1137, %v1139
    %v1141 = vrot.slane %v980, 6
    %v1142 = vsel %vm1113, %v1139, %v1141
    %v1143 = vrot.slane %v984, 6
    %v1144 = vsel %vm1113, %v1141, %v1143
    %v1161 = vsel %vm1113, 0.0, %v1114
    %v1162 = vld [vmem:[%s6 + $0x1] sm:$0x1]
    %v1163 = vlaneseq
    %v1164 = vshrl.u32 %v1163, 7
    %v1165 = vsub.s32 0, %v1164
    %v1166 = vrot.slane %v1162, %v1165
    %v1167 = vmul.f32 %v1161, %v1166
    %v1168 = vmul.f32 %v1116, %v1166
    %v1169 = vmul.f32 %v1118, %v1166
    %v1170 = vmul.f32 %v1120, %v1166
    %v1171 = vmul.f32 %v1122, %v1166
    %v1172 = vmul.f32 %v1124, %v1166
    %v1173 = vmul.f32 %v1126, %v1166
    %v1174 = vmul.f32 %v1128, %v1166
    %v1175 = vmul.f32 %v1130, %v1166
    %v1176 = vmul.f32 %v1132, %v1166
    %v1177 = vmul.f32 %v1134, %v1166
    %v1178 = vmul.f32 %v1136, %v1166
    %v1179 = vmul.f32 %v1138, %v1166
    %v1180 = vmul.f32 %v1140, %v1166
    %v1181 = vmul.f32 %v1142, %v1166
    %v1182 = vmul.f32 %v1144, %v1166
    %v1183 = vadd.f32 %v1097, %v1167
    %v1184 = vadd.f32 %v1098, %v1168
    %v1185 = vadd.f32 %v1099, %v1169
    %v1186 = vadd.f32 %v1100, %v1170
    %v1187 = vadd.f32 %v1101, %v1171
    %v1188 = vadd.f32 %v1102, %v1172
    %v1189 = vadd.f32 %v1103, %v1173
    %v1190 = vadd.f32 %v1104, %v1174
    %v1191 = vadd.f32 %v1105, %v1175
    %v1192 = vadd.f32 %v1106, %v1176
    %v1193 = vadd.f32 %v1107, %v1177
    %v1194 = vadd.f32 %v1108, %v1178
    %v1195 = vadd.f32 %v1109, %v1179
    %v1196 = vadd.f32 %v1110, %v1180
    %v1197 = vadd.f32 %v1111, %v1181
    %v1198 = vadd.f32 %v1112, %v1182
    %v1199 = vrot.slane %v910, 7
    %v1200 = vrot.slane %v914, 7
    %v1201 = vsel %vm291, %v1199, %v1200
    %v1202 = vrot.slane %v920, 7
    %v1203 = vsel %vm291, %v1200, %v1202
    %v1204 = vrot.slane %v924, 7
    %v1205 = vsel %vm291, %v1202, %v1204
    %v1206 = vrot.slane %v930, 7
    %v1207 = vsel %vm291, %v1204, %v1206
    %v1208 = vrot.slane %v934, 7
    %v1209 = vsel %vm291, %v1206, %v1208
    %v1210 = vrot.slane %v940, 7
    %v1211 = vsel %vm291, %v1208, %v1210
    %v1212 = vrot.slane %v944, 7
    %v1213 = vsel %vm291, %v1210, %v1212
    %v1214 = vrot.slane %v950, 7
    %v1215 = vsel %vm291, %v1212, %v1214
    %v1216 = vrot.slane %v954, 7
    %v1217 = vsel %vm291, %v1214, %v1216
    %v1218 = vrot.slane %v960, 7
    %v1219 = vsel %vm291, %v1216, %v1218
    %v1220 = vrot.slane %v964, 7
    %v1221 = vsel %vm291, %v1218, %v1220
    %v1222 = vrot.slane %v970, 7
    %v1223 = vsel %vm291, %v1220, %v1222
    %v1224 = vrot.slane %v974, 7
    %v1225 = vsel %vm291, %v1222, %v1224
    %v1226 = vrot.slane %v980, 7
    %v1227 = vsel %vm291, %v1224, %v1226
    %v1228 = vrot.slane %v984, 7
    %v1229 = vsel %vm291, %v1226, %v1228
    %v1246 = vsel %vm291, 0.0, %v1199
    %v1247 = vld [vmem:[%s6 + $0x2] sm:$0x1]
    %v1248 = vlaneseq
    %v1249 = vshrl.u32 %v1248, 7
    %v1250 = vsub.s32 0, %v1249
    %v1251 = vrot.slane %v1247, %v1250
    %v1252 = vmul.f32 %v1246, %v1251
    %v1253 = vmul.f32 %v1201, %v1251
    %v1254 = vmul.f32 %v1203, %v1251
    %v1255 = vmul.f32 %v1205, %v1251
    %v1256 = vmul.f32 %v1207, %v1251
    %v1257 = vmul.f32 %v1209, %v1251
    %v1258 = vmul.f32 %v1211, %v1251
    %v1259 = vmul.f32 %v1213, %v1251
    %v1260 = vmul.f32 %v1215, %v1251
    %v1261 = vmul.f32 %v1217, %v1251
    %v1262 = vmul.f32 %v1219, %v1251
    %v1263 = vmul.f32 %v1221, %v1251
    %v1264 = vmul.f32 %v1223, %v1251
    %v1265 = vmul.f32 %v1225, %v1251
    %v1266 = vmul.f32 %v1227, %v1251
    %v1267 = vmul.f32 %v1229, %v1251
    %v1268 = vadd.f32 %v1183, %v1252
    %v1269 = vadd.f32 %v1184, %v1253
    %v1270 = vadd.f32 %v1185, %v1254
    %v1271 = vadd.f32 %v1186, %v1255
    %v1272 = vadd.f32 %v1187, %v1256
    %v1273 = vadd.f32 %v1188, %v1257
    %v1274 = vadd.f32 %v1189, %v1258
    %v1275 = vadd.f32 %v1190, %v1259
    %v1276 = vadd.f32 %v1191, %v1260
    %v1277 = vadd.f32 %v1192, %v1261
    %v1278 = vadd.f32 %v1193, %v1262
    %v1279 = vadd.f32 %v1194, %v1263
    %v1280 = vadd.f32 %v1195, %v1264
    %v1281 = vadd.f32 %v1196, %v1265
    %v1282 = vadd.f32 %v1197, %v1266
    %v1283 = vadd.f32 %v1198, %v1267
    %v1284 = vld [vmem:[%s6 + $0x3] sm:$0x1]
    %v1285 = vlaneseq
    %v1286 = vshrl.u32 %v1285, 7
    %v1287 = vsub.s32 0, %v1286
    %v1288 = vrot.slane %v1284, %v1287
    %v1289 = vmul.f32 %v910, %v1288
    %v1290 = vmul.f32 %v914, %v1288
    %v1291 = vmul.f32 %v920, %v1288
    %v1292 = vmul.f32 %v924, %v1288
    %v1293 = vmul.f32 %v930, %v1288
    %v1294 = vmul.f32 %v934, %v1288
    %v1295 = vmul.f32 %v940, %v1288
    %v1296 = vmul.f32 %v944, %v1288
    %v1297 = vmul.f32 %v950, %v1288
    %v1298 = vmul.f32 %v954, %v1288
    %v1299 = vmul.f32 %v960, %v1288
    %v1300 = vmul.f32 %v964, %v1288
    %v1301 = vmul.f32 %v970, %v1288
    %v1302 = vmul.f32 %v974, %v1288
    %v1303 = vmul.f32 %v980, %v1288
    %v1304 = vmul.f32 %v984, %v1288
    %v1305 = vadd.f32 %v1268, %v1289
    %v1306 = vadd.f32 %v1269, %v1290
    %v1307 = vadd.f32 %v1270, %v1291
    %v1308 = vadd.f32 %v1271, %v1292
    %v1309 = vadd.f32 %v1272, %v1293
    %v1310 = vadd.f32 %v1273, %v1294
    %v1311 = vadd.f32 %v1274, %v1295
    %v1312 = vadd.f32 %v1275, %v1296
    %v1313 = vadd.f32 %v1276, %v1297
    %v1314 = vadd.f32 %v1277, %v1298
    %v1315 = vadd.f32 %v1278, %v1299
    %v1316 = vadd.f32 %v1279, %v1300
    %v1317 = vadd.f32 %v1280, %v1301
    %v1318 = vadd.f32 %v1281, %v1302
    %v1319 = vadd.f32 %v1282, %v1303
    %v1320 = vadd.f32 %v1283, %v1304
    %v1321 = vsub.f32 0.0, %v1305
    %v1322 = vsub.f32 0.0, %v1306
    %v1323 = vsub.f32 0.0, %v1307
    %v1324 = vsub.f32 0.0, %v1308
    %v1325 = vsub.f32 0.0, %v1309
    %v1326 = vsub.f32 0.0, %v1310
    %v1327 = vsub.f32 0.0, %v1311
    %v1328 = vsub.f32 0.0, %v1312
    %v1329 = vsub.f32 0.0, %v1313
    %v1330 = vsub.f32 0.0, %v1314
    %v1331 = vsub.f32 0.0, %v1315
    %v1332 = vsub.f32 0.0, %v1316
    %v1333 = vsub.f32 0.0, %v1317
    %v1334 = vsub.f32 0.0, %v1318
    %v1335 = vsub.f32 0.0, %v1319
    %v1336 = vsub.f32 0.0, %v1320
    %v1337 = vmul.f32 %v1321, 1.442695
    %v1338 = vpow.pop %v1337
    %v1339 = vmul.f32 %v1322, 1.442695
    %v1340 = vpow.pop %v1339
    %v1341 = vmul.f32 %v1323, 1.442695
    %v1342 = vpow.pop %v1341
    %v1343 = vmul.f32 %v1324, 1.442695
    %v1344 = vpow.pop %v1343
    %v1345 = vmul.f32 %v1325, 1.442695
    %v1346 = vpow.pop %v1345
    %v1347 = vmul.f32 %v1326, 1.442695
    %v1348 = vpow.pop %v1347
    %v1349 = vmul.f32 %v1327, 1.442695
    %v1350 = vpow.pop %v1349
    %v1351 = vmul.f32 %v1328, 1.442695
    %v1352 = vpow.pop %v1351
    %v1353 = vmul.f32 %v1329, 1.442695
    %v1354 = vpow.pop %v1353
    %v1355 = vmul.f32 %v1330, 1.442695
    %v1356 = vpow.pop %v1355
    %v1357 = vmul.f32 %v1331, 1.442695
    %v1358 = vpow.pop %v1357
    %v1359 = vmul.f32 %v1332, 1.442695
    %v1360 = vpow.pop %v1359
    %v1361 = vmul.f32 %v1333, 1.442695
    %v1362 = vpow.pop %v1361
    %v1363 = vmul.f32 %v1334, 1.442695
    %v1364 = vpow.pop %v1363
    %v1365 = vmul.f32 %v1335, 1.442695
    %v1366 = vpow.pop %v1365
    %v1367 = vmul.f32 %v1336, 1.442695
    %v1368 = vpow.pop %v1367
    %v1369 = vadd.f32 %v1338, 1.0
    %v1370 = vadd.f32 %v1340, 1.0
    %v1371 = vadd.f32 %v1342, 1.0
    %v1372 = vadd.f32 %v1344, 1.0
    %v1373 = vadd.f32 %v1346, 1.0
    %v1374 = vadd.f32 %v1348, 1.0
    %v1375 = vadd.f32 %v1350, 1.0
    %v1376 = vadd.f32 %v1352, 1.0
    %v1377 = vadd.f32 %v1354, 1.0
    %v1378 = vadd.f32 %v1356, 1.0
    %v1379 = vadd.f32 %v1358, 1.0
    %v1380 = vadd.f32 %v1360, 1.0
    %v1381 = vadd.f32 %v1362, 1.0
    %v1382 = vadd.f32 %v1364, 1.0
    %v1383 = vadd.f32 %v1366, 1.0
    %v1384 = vadd.f32 %v1368, 1.0
    %v1385 = vrcp.pop %v1369
    %v1386 = vmul.f32 1.0, %v1385
    %v1387 = vrcp.pop %v1370
    %v1388 = vmul.f32 1.0, %v1387
    %v1389 = vrcp.pop %v1371
    %v1390 = vmul.f32 1.0, %v1389
    %v1391 = vrcp.pop %v1372
    %v1392 = vmul.f32 1.0, %v1391
    %v1393 = vrcp.pop %v1373
    %v1394 = vmul.f32 1.0, %v1393
    %v1395 = vrcp.pop %v1374
    %v1396 = vmul.f32 1.0, %v1395
    %v1397 = vrcp.pop %v1375
    %v1398 = vmul.f32 1.0, %v1397
    %v1399 = vrcp.pop %v1376
    %v1400 = vmul.f32 1.0, %v1399
    %v1401 = vrcp.pop %v1377
    %v1402 = vmul.f32 1.0, %v1401
    %v1403 = vrcp.pop %v1378
    %v1404 = vmul.f32 1.0, %v1403
    %v1405 = vrcp.pop %v1379
    %v1406 = vmul.f32 1.0, %v1405
    %v1407 = vrcp.pop %v1380
    %v1408 = vmul.f32 1.0, %v1407
    %v1409 = vrcp.pop %v1381
    %v1410 = vmul.f32 1.0, %v1409
    %v1411 = vrcp.pop %v1382
    %v1412 = vmul.f32 1.0, %v1411
    %v1413 = vrcp.pop %v1383
    %v1414 = vmul.f32 1.0, %v1413
    %v1415 = vrcp.pop %v1384
    %v1416 = vmul.f32 1.0, %v1415
    %v1417 = vmul.f32 %v1305, %v1386
    %v1418 = vmul.f32 %v1306, %v1388
    %v1419 = vmul.f32 %v1307, %v1390
    %v1420 = vmul.f32 %v1308, %v1392
    %v1421 = vmul.f32 %v1309, %v1394
    %v1422 = vmul.f32 %v1310, %v1396
    %v1423 = vmul.f32 %v1311, %v1398
    %v1424 = vmul.f32 %v1312, %v1400
    %v1425 = vmul.f32 %v1313, %v1402
    %v1426 = vmul.f32 %v1314, %v1404
    %v1427 = vmul.f32 %v1315, %v1406
    %v1428 = vmul.f32 %v1316, %v1408
    %v1429 = vmul.f32 %v1317, %v1410
    %v1430 = vmul.f32 %v1318, %v1412
    %v1431 = vmul.f32 %v1319, %v1414
    %v1432 = vmul.f32 %v1320, %v1416
    %1433 = vst [vmem:[#allocation9] sm:$0xff] %v1417
    %1434 = vst [vmem:[#allocation9 + $0x8] sm:$0xff] %v1418
    %1435 = vst [vmem:[#allocation9 + $0x10] sm:$0xff] %v1419
    %1436 = vst [vmem:[#allocation9 + $0x18] sm:$0xff] %v1420
    %1437 = vst [vmem:[#allocation9 + $0x20] sm:$0xff] %v1421
    %1438 = vst [vmem:[#allocation9 + $0x28] sm:$0xff] %v1422
    %1439 = vst [vmem:[#allocation9 + $0x30] sm:$0xff] %v1423
    %1440 = vst [vmem:[#allocation9 + $0x38] sm:$0xff] %v1424
    %1441 = vst [vmem:[#allocation9 + $0x40] sm:$0xff] %v1425
    %1442 = vst [vmem:[#allocation9 + $0x48] sm:$0xff] %v1426
    %1443 = vst [vmem:[#allocation9 + $0x50] sm:$0xff] %v1427
    %1444 = vst [vmem:[#allocation9 + $0x58] sm:$0xff] %v1428
    %1445 = vst [vmem:[#allocation9 + $0x60] sm:$0xff] %v1429
    %1446 = vst [vmem:[#allocation9 + $0x68] sm:$0xff] %v1430
    %1447 = vst [vmem:[#allocation9 + $0x70] sm:$0xff] %v1431
    %1448 = vst [vmem:[#allocation9 + $0x78] sm:$0xff] %v1432
    %v1449 = vld [vmem:[%s8] sm:$0xff]
    %v1450 = vld [vmem:[%s8 + $0x8] sm:$0xff]
    %v1451 = vld [vmem:[%s8 + $0x10] sm:$0xff]
    %v1452 = vld [vmem:[%s8 + $0x18] sm:$0xff]
    %v1453 = vld [vmem:[%s8 + $0x20] sm:$0xff]
    %v1454 = vld [vmem:[%s8 + $0x28] sm:$0xff]
    %v1455 = vld [vmem:[%s8 + $0x30] sm:$0xff]
    %v1456 = vld [vmem:[%s8 + $0x38] sm:$0xff]
    %v1457 = vld [vmem:[%s8 + $0x40] sm:$0xff]
    %v1458 = vld [vmem:[%s8 + $0x48] sm:$0xff]
    %v1459 = vld [vmem:[%s8 + $0x50] sm:$0xff]
    %v1460 = vld [vmem:[%s8 + $0x58] sm:$0xff]
    %v1461 = vld [vmem:[%s8 + $0x60] sm:$0xff]
    %v1462 = vld [vmem:[%s8 + $0x68] sm:$0xff]
    %v1463 = vld [vmem:[%s8 + $0x70] sm:$0xff]
    %v1464 = vld [vmem:[%s8 + $0x78] sm:$0xff]
    %v1465 = vld [vmem:[%s8 + $0x80] sm:$0xff]
    %v1466 = vld [vmem:[%s8 + $0x88] sm:$0xff]
    %v1467 = vld [vmem:[%s8 + $0x90] sm:$0xff]
    %v1468 = vld [vmem:[%s8 + $0x98] sm:$0xff]
    %v1469 = vld [vmem:[%s8 + $0xa0] sm:$0xff]
    %v1470 = vld [vmem:[%s8 + $0xa8] sm:$0xff]
    %v1471 = vld [vmem:[%s8 + $0xb0] sm:$0xff]
    %v1472 = vld [vmem:[%s8 + $0xb8] sm:$0xff]
    %v1473 = vld [vmem:[%s8 + $0xc0] sm:$0xff]
    %v1474 = vld [vmem:[%s8 + $0xc8] sm:$0xff]
    %v1475 = vld [vmem:[%s8 + $0xd0] sm:$0xff]
    %v1476 = vld [vmem:[%s8 + $0xd8] sm:$0xff]
    %v1477 = vld [vmem:[%s8 + $0xe0] sm:$0xff]
    %v1478 = vld [vmem:[%s8 + $0xe8] sm:$0xff]
    %v1479 = vld [vmem:[%s8 + $0xf0] sm:$0xff]
    %v1480 = vld [vmem:[%s8 + $0xf8] sm:$0xff]
    %v1481 = vld [vmem:[%s8 + $0x100] sm:$0xff]
    %v1482 = vld [vmem:[%s8 + $0x108] sm:$0xff]
    %v1483 = vld [vmem:[%s8 + $0x110] sm:$0xff]
    %v1484 = vld [vmem:[%s8 + $0x118] sm:$0xff]
    %v1485 = vld [vmem:[%s8 + $0x120] sm:$0xff]
    %v1486 = vld [vmem:[%s8 + $0x128] sm:$0xff]
    %v1487 = vld [vmem:[%s8 + $0x130] sm:$0xff]
    %v1488 = vld [vmem:[%s8 + $0x138] sm:$0xff]
    %v1489 = vld [vmem:[%s8 + $0x140] sm:$0xff]
    %v1490 = vld [vmem:[%s8 + $0x148] sm:$0xff]
    %v1491 = vld [vmem:[%s8 + $0x150] sm:$0xff]
    %v1492 = vld [vmem:[%s8 + $0x158] sm:$0xff]
    %v1493 = vld [vmem:[%s8 + $0x160] sm:$0xff]
    %v1494 = vld [vmem:[%s8 + $0x168] sm:$0xff]
    %v1495 = vld [vmem:[%s8 + $0x170] sm:$0xff]
    %v1496 = vld [vmem:[%s8 + $0x178] sm:$0xff]
    %1497 = vmatprep.subr.mxu0 %v1450
    %1498 = vmatpush1.msra.mxu0 %v1449
    %1499 = vmatprep.subr.mxu0 %v1453
    %1500 = vmatpush1.msra.mxu0 %v1452
    %1501 = vmatprep.subr.mxu0 %v1456
    %1502 = vmatpush1.msra.mxu0 %v1455
    %1503 = vmatprep.subr.mxu0 %v1459
    %1504 = vmatpush1.msra.mxu0 %v1458
    %1505 = vmatprep.subr.mxu0 %v1462
    %1506 = vmatpush1.msra.mxu0 %v1461
    %1507 = vmatprep.subr.mxu0 %v1465
    %1508 = vmatpush1.msra.mxu0 %v1464
    %1509 = vmatprep.subr.mxu0 %v1468
    %1510 = vmatpush1.msra.mxu0 %v1467
    %1511 = vmatprep.subr.mxu0 %v1471
    %1512 = vmatpush1.msra.mxu0 %v1470
    %1513 = vmatprep.subr.mxu0 %v1474
    %1514 = vmatpush1.msra.mxu0 %v1473
    %1515 = vmatprep.subr.mxu0 %v1477
    %1516 = vmatpush1.msra.mxu0 %v1476
    %1517 = vmatprep.subr.mxu0 %v1480
    %1518 = vmatpush1.msra.mxu0 %v1479
    %1519 = vmatprep.subr.mxu0 %v1483
    %1520 = vmatpush1.msra.mxu0 %v1482
    %1521 = vmatprep.subr.mxu0 %v1486
    %1522 = vmatpush1.msra.mxu0 %v1485
    %1523 = vmatprep.subr.mxu0 %v1489
    %1524 = vmatpush1.msra.mxu0 %v1488
    %1525 = vmatprep.subr.mxu0 %v1492
    %1526 = vmatpush1.msra.mxu0 %v1491
    %1527 = vmatprep.subr.mxu0 %v1495
    %1528 = vmatpush1.msra.mxu0 %v1494
    %1529 = vmatprep.subr.mxu0 0.0
    %1530 = vmatpush1.msra.mxu0 0.0
    %1531 = vmatprep.subr.mxu0 0.0
    %1532 = vmatpush1.msra.mxu0 0.0
    %1533 = vmatprep.subr.mxu0 0.0
    %1534 = vmatpush1.msra.mxu0 0.0
    %1535 = vmatprep.subr.mxu0 0.0
    %1536 = vmatpush1.msra.mxu0 0.0
    %1537 = vmatprep.subr.mxu0 0.0
    %1538 = vmatpush1.msra.mxu0 0.0
    %1539 = vmatprep.subr.mxu0 0.0
    %1540 = vmatpush1.msra.mxu0 0.0
    %1541 = vmatprep.subr.mxu0 0.0
    %1542 = vmatpush1.msra.mxu0 0.0
    %1543 = vmatprep.subr.mxu0 0.0
    %1544 = vmatpush1.msra.mxu0 0.0
    %1545 = vmatprep.subr.mxu0 0.0
    %1546 = vmatpush1.msra.mxu0 0.0
    %1547 = vmatprep.subr.mxu0 0.0
    %1548 = vmatpush1.msra.mxu0 0.0
    %1549 = vmatprep.subr.mxu0 0.0
    %1550 = vmatpush1.msra.mxu0 0.0
    %1551 = vmatprep.subr.mxu0 0.0
    %1552 = vmatpush1.msra.mxu0 0.0
    %1553 = vmatprep.subr.mxu0 0.0
    %1554 = vmatpush1.msra.mxu0 0.0
    %1555 = vmatprep.subr.mxu0 0.0
    %1556 = vmatpush1.msra.mxu0 0.0
    %1557 = vmatprep.subr.mxu0 0.0
    %1558 = vmatpush1.msra.mxu0 0.0
    %1559 = vmatprep.subr.mxu0 0.0
    %1560 = vmatpush1.msra.mxu0 0.0
    %1561 = vmatprep.mubr.f32.mxu0 0.0
    %1562 = vmatmul.mubr.f32.gmra.mrb[0].mxu0 %v1417
    %v1563 = vpop.f32.mrb[0].mxu0
    %v1564 = vadd.f32 0.0, %v1563
    %v1565 = vpop.f32.mrb[0].mxu0
    %v1566 = vadd.f32 0.0, %v1565
    %1567 = vmatprep.mubr.f32.mxu0 0.0
    %1568 = vmatmul.mubr.f32.gmra.mrb[0].mxu0 %v1418
    %v1569 = vpop.f32.mrb[0].mxu0
    %v1570 = vadd.f32 0.0, %v1569
    %v1571 = vpop.f32.mrb[0].mxu0
    %v1572 = vadd.f32 0.0, %v1571
    %1573 = vmatprep.mubr.f32.mxu0 0.0
    %1574 = vmatmul.mubr.f32.gmra.mrb[0].mxu0 %v1419
    %v1575 = vpop.f32.mrb[0].mxu0
    %v1576 = vadd.f32 0.0, %v1575
    %v1577 = vpop.f32.mrb[0].mxu0
    %v1578 = vadd.f32 0.0, %v1577
    %1579 = vmatprep.mubr.f32.mxu0 0.0
    %1580 = vmatmul.mubr.f32.gmra.mrb[0].mxu0 %v1420
    %v1581 = vpop.f32.mrb[0].mxu0
    %v1582 = vadd.f32 0.0, %v1581
    %v1583 = vpop.f32.mrb[0].mxu0
    %v1584 = vadd.f32 0.0, %v1583
    %1585 = vmatprep.mubr.f32.mxu0 0.0
    %1586 = vmatmul.mubr.f32.gmra.mrb[0].mxu0 %v1421
    %v1587 = vpop.f32.mrb[0].mxu0
    %v1588 = vadd.f32 0.0, %v1587
    %v1589 = vpop.f32.mrb[0].mxu0
    %v1590 = vadd.f32 0.0, %v1589
    %1591 = vmatprep.mubr.f32.mxu0 0.0
    %1592 = vmatmul.mubr.f32.gmra.mrb[0].mxu0 %v1422
    %v1593 = vpop.f32.mrb[0].mxu0
    %v1594 = vadd.f32 0.0, %v1593
    %v1595 = vpop.f32.mrb[0].mxu0
    %v1596 = vadd.f32 0.0, %v1595
    %1597 = vmatprep.mubr.f32.mxu0 0.0
    %1598 = vmatmul.mubr.f32.gmra.mrb[0].mxu0 %v1423
    %v1599 = vpop.f32.mrb[0].mxu0
    %v1600 = vadd.f32 0.0, %v1599
    %v1601 = vpop.f32.mrb[0].mxu0
    %v1602 = vadd.f32 0.0, %v1601
    %1603 = vmatprep.mubr.f32.mxu0 0.0
    %1604 = vmatmul.mubr.f32.gmra.mrb[0].mxu0 %v1424
    %v1605 = vpop.f32.mrb[0].mxu0
    %v1606 = vadd.f32 0.0, %v1605
    %v1607 = vpop.f32.mrb[0].mxu0
    %v1608 = vadd.f32 0.0, %v1607
    %1609 = vmatprep.mubr.f32.mxu0 0.0
    %1610 = vmatmul.mubr.f32.gmra.mrb[0].mxu0 %v1425
    %v1611 = vpop.f32.mrb[0].mxu0
    %v1612 = vadd.f32 0.0, %v1611
    %v1613 = vpop.f32.mrb[0].mxu0
    %v1614 = vadd.f32 0.0, %v1613
    %1615 = vmatprep.mubr.f32.mxu0 0.0
    %1616 = vmatmul.mubr.f32.gmra.mrb[0].mxu0 %v1426
    %v1617 = vpop.f32.mrb[0].mxu0
    %v1618 = vadd.f32 0.0, %v1617
    %v1619 = vpop.f32.mrb[0].mxu0
    %v1620 = vadd.f32 0.0, %v1619
    %1621 = vmatprep.mubr.f32.mxu0 0.0
    %1622 = vmatmul.mubr.f32.gmra.mrb[0].mxu0 %v1427
    %v1623 = vpop.f32.mrb[0].mxu0
    %v1624 = vadd.f32 0.0, %v1623
    %v1625 = vpop.f32.mrb[0].mxu0
    %v1626 = vadd.f32 0.0, %v1625
    %1627 = vmatprep.mubr.f32.mxu0 0.0
    %1628 = vmatmul.mubr.f32.gmra.mrb[0].mxu0 %v1428
    %v1629 = vpop.f32.mrb[0].mxu0
    %v1630 = vadd.f32 0.0, %v1629
    %v1631 = vpop.f32.mrb[0].mxu0
    %v1632 = vadd.f32 0.0, %v1631
    %1633 = vmatprep.mubr.f32.mxu0 0.0
    %1634 = vmatmul.mubr.f32.gmra.mrb[0].mxu0 %v1429
    %v1635 = vpop.f32.mrb[0].mxu0
    %v1636 = vadd.f32 0.0, %v1635
    %v1637 = vpop.f32.mrb[0].mxu0
    %v1638 = vadd.f32 0.0, %v1637
    %1639 = vmatprep.mubr.f32.mxu0 0.0
    %1640 = vmatmul.mubr.f32.gmra.mrb[0].mxu0 %v1430
    %v1641 = vpop.f32.mrb[0].mxu0
    %v1642 = vadd.f32 0.0, %v1641
    %v1643 = vpop.f32.mrb[0].mxu0
    %v1644 = vadd.f32 0.0, %v1643
    %1645 = vmatprep.mubr.f32.mxu0 0.0
    %1646 = vmatmul.mubr.f32.gmra.mrb[0].mxu0 %v1431
    %v1647 = vpop.f32.mrb[0].mxu0
    %v1648 = vadd.f32 0.0, %v1647
    %v1649 = vpop.f32.mrb[0].mxu0
    %v1650 = vadd.f32 0.0, %v1649
    %1651 = vmatprep.mubr.f32.mxu0 0.0
    %1652 = vmatmul.mubr.f32.gmra.mrb[0].mxu0 %v1432
    %v1653 = vpop.f32.mrb[0].mxu0
    %v1654 = vadd.f32 0.0, %v1653
    %v1655 = vpop.f32.mrb[0].mxu0
    %v1656 = vadd.f32 0.0, %v1655
    %1657 = vdwg.mxu0
    %1658 = vmatprep.subr.mxu0 0.0
    %1659 = vmatpush1.msra.mxu0 %v1451
    %1660 = vmatprep.subr.mxu0 0.0
    %1661 = vmatpush1.msra.mxu0 %v1454
    %1662 = vmatprep.subr.mxu0 0.0
    %1663 = vmatpush1.msra.mxu0 %v1457
    %1664 = vmatprep.subr.mxu0 0.0
    %1665 = vmatpush1.msra.mxu0 %v1460
    %1666 = vmatprep.subr.mxu0 0.0
    %1667 = vmatpush1.msra.mxu0 %v1463
    %1668 = vmatprep.subr.mxu0 0.0
    %1669 = vmatpush1.msra.mxu0 %v1466
    %1670 = vmatprep.subr.mxu0 0.0
    %1671 = vmatpush1.msra.mxu0 %v1469
    %1672 = vmatprep.subr.mxu0 0.0
    %1673 = vmatpush1.msra.mxu0 %v1472
    %1674 = vmatprep.subr.mxu0 0.0
    %1675 = vmatpush1.msra.mxu0 %v1475
    %1676 = vmatprep.subr.mxu0 0.0
    %1677 = vmatpush1.msra.mxu0 %v1478
    %1678 = vmatprep.subr.mxu0 0.0
    %1679 = vmatpush1.msra.mxu0 %v1481
    %1680 = vmatprep.subr.mxu0 0.0
    %1681 = vmatpush1.msra.mxu0 %v1484
    %1682 = vmatprep.subr.mxu0 0.0
    %1683 = vmatpush1.msra.mxu0 %v1487
    %1684 = vmatprep.subr.mxu0 0.0
    %1685 = vmatpush1.msra.mxu0 %v1490
    %1686 = vmatprep.subr.mxu0 0.0
    %1687 = vmatpush1.msra.mxu0 %v1493
    %1688 = vmatprep.subr.mxu0 0.0
    %1689 = vmatpush1.msra.mxu0 %v1496
    %1690 = vmatprep.subr.mxu0 0.0
    %1691 = vmatpush1.msra.mxu0 0.0
    %1692 = vmatprep.subr.mxu0 0.0
    %1693 = vmatpush1.msra.mxu0 0.0
    %1694 = vmatprep.subr.mxu0 0.0
    %1695 = vmatpush1.msra.mxu0 0.0
    %1696 = vmatprep.subr.mxu0 0.0
    %1697 = vmatpush1.msra.mxu0 0.0
    %1698 = vmatprep.subr.mxu0 0.0
    %1699 = vmatpush1.msra.mxu0 0.0
    %1700 = vmatprep.subr.mxu0 0.0
    %1701 = vmatpush1.msra.mxu0 0.0
    %1702 = vmatprep.subr.mxu0 0.0
    %1703 = vmatpush1.msra.mxu0 0.0
    %1704 = vmatprep.subr.mxu0 0.0
    %1705 = vmatpush1.msra.mxu0 0.0
    %1706 = vmatprep.subr.mxu0 0.0
    %1707 = vmatpush1.msra.mxu0 0.0
    %1708 = vmatprep.subr.mxu0 0.0
    %1709 = vmatpush1.msra.mxu0 0.0
    %1710 = vmatprep.subr.mxu0 0.0
    %1711 = vmatpush1.msra.mxu0 0.0
    %1712 = vmatprep.subr.mxu0 0.0
    %1713 = vmatpush1.msra.mxu0 0.0
    %1714 = vmatprep.subr.mxu0 0.0
    %1715 = vmatpush1.msra.mxu0 0.0
    %1716 = vmatprep.subr.mxu0 0.0
    %1717 = vmatpush1.msra.mxu0 0.0
    %1718 = vmatprep.subr.mxu0 0.0
    %1719 = vmatpush1.msra.mxu0 0.0
    %1720 = vmatprep.subr.mxu0 0.0
    %1721 = vmatpush1.msra.mxu0 0.0
    %1722 = vmatprep.mubr.f32.mxu0 0.0
    %1723 = vmatmul.mubr.f32.gmra.mrb[0].mxu0 %v1417
    %v1724 = vpop.f32.mrb[0].mxu0
    %v1725 = vadd.f32 0.0, %v1724
    %v1726 = vpop.f32.mrb[0].mxu0
    %1727 = vmatprep.mubr.f32.mxu0 0.0
    %1728 = vmatmul.mubr.f32.gmra.mrb[0].mxu0 %v1418
    %v1729 = vpop.f32.mrb[0].mxu0
    %v1730 = vadd.f32 0.0, %v1729
    %v1731 = vpop.f32.mrb[0].mxu0
    %1732 = vmatprep.mubr.f32.mxu0 0.0
    %1733 = vmatmul.mubr.f32.gmra.mrb[0].mxu0 %v1419
    %v1734 = vpop.f32.mrb[0].mxu0
    %v1735 = vadd.f32 0.0, %v1734
    %v1736 = vpop.f32.mrb[0].mxu0
    %1737 = vmatprep.mubr.f32.mxu0 0.0
    %1738 = vmatmul.mubr.f32.gmra.mrb[0].mxu0 %v1420
    %v1739 = vpop.f32.mrb[0].mxu0
    %v1740 = vadd.f32 0.0, %v1739
    %v1741 = vpop.f32.mrb[0].mxu0
    %1742 = vmatprep.mubr.f32.mxu0 0.0
    %1743 = vmatmul.mubr.f32.gmra.mrb[0].mxu0 %v1421
    %v1744 = vpop.f32.mrb[0].mxu0
    %v1745 = vadd.f32 0.0, %v1744
    %v1746 = vpop.f32.mrb[0].mxu0
    %1747 = vmatprep.mubr.f32.mxu0 0.0
    %1748 = vmatmul.mubr.f32.gmra.mrb[0].mxu0 %v1422
    %v1749 = vpop.f32.mrb[0].mxu0
    %v1750 = vadd.f32 0.0, %v1749
    %v1751 = vpop.f32.mrb[0].mxu0
    %1752 = vmatprep.mubr.f32.mxu0 0.0
    %1753 = vmatmul.mubr.f32.gmra.mrb[0].mxu0 %v1423
    %v1754 = vpop.f32.mrb[0].mxu0
    %v1755 = vadd.f32 0.0, %v1754
    %v1756 = vpop.f32.mrb[0].mxu0
    %1757 = vmatprep.mubr.f32.mxu0 0.0
    %1758 = vmatmul.mubr.f32.gmra.mrb[0].mxu0 %v1424
    %v1759 = vpop.f32.mrb[0].mxu0
    %v1760 = vadd.f32 0.0, %v1759
    %v1761 = vpop.f32.mrb[0].mxu0
    %1762 = vmatprep.mubr.f32.mxu0 0.0
    %1763 = vmatmul.mubr.f32.gmra.mrb[0].mxu0 %v1425
    %v1764 = vpop.f32.mrb[0].mxu0
    %v1765 = vadd.f32 0.0, %v1764
    %v1766 = vpop.f32.mrb[0].mxu0
    %1767 = vmatprep.mubr.f32.mxu0 0.0
    %1768 = vmatmul.mubr.f32.gmra.mrb[0].mxu0 %v1426
    %v1769 = vpop.f32.mrb[0].mxu0
    %v1770 = vadd.f32 0.0, %v1769
    %v1771 = vpop.f32.mrb[0].mxu0
    %1772 = vmatprep.mubr.f32.mxu0 0.0
    %1773 = vmatmul.mubr.f32.gmra.mrb[0].mxu0 %v1427
    %v1774 = vpop.f32.mrb[0].mxu0
    %v1775 = vadd.f32 0.0, %v1774
    %v1776 = vpop.f32.mrb[0].mxu0
    %1777 = vmatprep.mubr.f32.mxu0 0.0
    %1778 = vmatmul.mubr.f32.gmra.mrb[0].mxu0 %v1428
    %v1779 = vpop.f32.mrb[0].mxu0
    %v1780 = vadd.f32 0.0, %v1779
    %v1781 = vpop.f32.mrb[0].mxu0
    %1782 = vmatprep.mubr.f32.mxu0 0.0
    %1783 = vmatmul.mubr.f32.gmra.mrb[0].mxu0 %v1429
    %v1784 = vpop.f32.mrb[0].mxu0
    %v1785 = vadd.f32 0.0, %v1784
    %v1786 = vpop.f32.mrb[0].mxu0
    %1787 = vmatprep.mubr.f32.mxu0 0.0
    %1788 = vmatmul.mubr.f32.gmra.mrb[0].mxu0 %v1430
    %v1789 = vpop.f32.mrb[0].mxu0
    %v1790 = vadd.f32 0.0, %v1789
    %v1791 = vpop.f32.mrb[0].mxu0
    %1792 = vmatprep.mubr.f32.mxu0 0.0
    %1793 = vmatmul.mubr.f32.gmra.mrb[0].mxu0 %v1431
    %v1794 = vpop.f32.mrb[0].mxu0
    %v1795 = vadd.f32 0.0, %v1794
    %v1796 = vpop.f32.mrb[0].mxu0
    %1797 = vmatprep.mubr.f32.mxu0 0.0
    %1798 = vmatmul.mubr.f32.gmra.mrb[0].mxu0 %v1432
    %v1799 = vpop.f32.mrb[0].mxu0
    %v1800 = vadd.f32 0.0, %v1799
    %v1801 = vpop.f32.mrb[0].mxu0
    %1802 = vdwg.mxu0
    %v1803 = vld [vmem:[%s9] sm:$0xff]
    %v1804 = vld [vmem:[%s9 + $0x8] sm:$0xff]
    %v1805 = vld [vmem:[%s9 + $0x10] sm:$0xff]
    %v1806 = vld [vmem:[%s9 + $0x18] sm:$0xff]
    %v1807 = vld [vmem:[%s9 + $0x20] sm:$0xff]
    %v1808 = vld [vmem:[%s9 + $0x28] sm:$0xff]
    %v1809 = vld [vmem:[%s9 + $0x30] sm:$0xff]
    %v1810 = vld [vmem:[%s9 + $0x38] sm:$0xff]
    %v1811 = vld [vmem:[%s9 + $0x40] sm:$0xff]
    %v1812 = vld [vmem:[%s9 + $0x48] sm:$0xff]
    %v1813 = vld [vmem:[%s9 + $0x50] sm:$0xff]
    %v1814 = vld [vmem:[%s9 + $0x58] sm:$0xff]
    %v1815 = vld [vmem:[%s9 + $0x60] sm:$0xff]
    %v1816 = vld [vmem:[%s9 + $0x68] sm:$0xff]
    %v1817 = vld [vmem:[%s9 + $0x70] sm:$0xff]
    %v1818 = vld [vmem:[%s9 + $0x78] sm:$0xff]
    %v1819 = vld [vmem:[%s10] sm:$0x1]
    %v1821 = vlaneseq
    %v1822 = vshrl.u32 %v1821, 7
    %v1823 = vsub.s32 0, %v1822
    %v1824 = vrot.slane %v1819, %v1823
    %1826 = vmatprep.subr.mxu0 0.0
    %1827 = vmatpush1.msra.mxu0 %v1803
    %1828 = vmatprep.subr.mxu0 0.0
    %1829 = vmatpush1.msra.mxu0 %v1804
    %1830 = vmatprep.subr.mxu0 0.0
    %1831 = vmatpush1.msra.mxu0 %v1805
    %1832 = vmatprep.subr.mxu0 0.0
    %1833 = vmatpush1.msra.mxu0 %v1806
    %1834 = vmatprep.subr.mxu0 0.0
    %1835 = vmatpush1.msra.mxu0 %v1807
    %1836 = vmatprep.subr.mxu0 0.0
    %1837 = vmatpush1.msra.mxu0 %v1808
    %1838 = vmatprep.subr.mxu0 0.0
    %1839 = vmatpush1.msra.mxu0 %v1809
    %1840 = vmatprep.subr.mxu0 0.0
    %1841 = vmatpush1.msra.mxu0 %v1810
    %1842 = vmatprep.subr.mxu0 0.0
    %1843 = vmatpush1.msra.mxu0 %v1811
    %1844 = vmatprep.subr.mxu0 0.0
    %1845 = vmatpush1.msra.mxu0 %v1812
    %1846 = vmatprep.subr.mxu0 0.0
    %1847 = vmatpush1.msra.mxu0 %v1813
    %1848 = vmatprep.subr.mxu0 0.0
    %1849 = vmatpush1.msra.mxu0 %v1814
    %1850 = vmatprep.subr.mxu0 0.0
    %1851 = vmatpush1.msra.mxu0 %v1815
    %1852 = vmatprep.subr.mxu0 0.0
    %1853 = vmatpush1.msra.mxu0 %v1816
    %1854 = vmatprep.subr.mxu0 0.0
    %1855 = vmatpush1.msra.mxu0 %v1817
    %1856 = vmatprep.subr.mxu0 0.0
    %1857 = vmatpush1.msra.mxu0 %v1818
    %1858 = vmatprep.subr.mxu0 0.0
    %1859 = vmatpush1.msra.mxu0 0.0
    %1860 = vmatprep.subr.mxu0 0.0
    %1861 = vmatpush1.msra.mxu0 0.0
    %1862 = vmatprep.subr.mxu0 0.0
    %1863 = vmatpush1.msra.mxu0 0.0
    %1864 = vmatprep.subr.mxu0 0.0
    %1865 = vmatpush1.msra.mxu0 0.0
    %1866 = vmatprep.subr.mxu0 0.0
    %1867 = vmatpush1.msra.mxu0 0.0
    %1868 = vmatprep.subr.mxu0 0.0
    %1869 = vmatpush1.msra.mxu0 0.0
    %1870 = vmatprep.subr.mxu0 0.0
    %1871 = vmatpush1.msra.mxu0 0.0
    %1872 = vmatprep.subr.mxu0 0.0
    %1873 = vmatpush1.msra.mxu0 0.0
    %1874 = vmatprep.subr.mxu0 0.0
    %1875 = vmatpush1.msra.mxu0 0.0
    %1876 = vmatprep.subr.mxu0 0.0
    %1877 = vmatpush1.msra.mxu0 0.0
    %1878 = vmatprep.subr.mxu0 0.0
    %1879 = vmatpush1.msra.mxu0 0.0
    %1880 = vmatprep.subr.mxu0 0.0
    %1881 = vmatpush1.msra.mxu0 0.0
    %1882 = vmatprep.subr.mxu0 0.0
    %1883 = vmatpush1.msra.mxu0 0.0
    %1884 = vmatprep.subr.mxu0 0.0
    %1885 = vmatpush1.msra.mxu0 0.0
    %1886 = vmatprep.subr.mxu0 0.0
    %1887 = vmatpush1.msra.mxu0 0.0
    %1888 = vmatprep.subr.mxu0 0.0
    %1889 = vmatpush1.msra.mxu0 0.0
    %1890 = vmatprep.mubr.f32.mxu0 0.0
    %1891 = vmatmul.mubr.f32.gmra.mrb[0].mxu0 %v1564
    %v1892 = vpop.f32.mrb[0].mxu0
    %v1893 = vadd.f32 %v1824, %v1892
    %v1894 = vpop.f32.mrb[0].mxu0
    %1895 = vmatprep.mubr.f32.mxu0 0.0
    %1896 = vmatmul.mubr.f32.gmra.mrb[0].mxu0 %v1570
    %v1897 = vpop.f32.mrb[0].mxu0
    %v1898 = vadd.f32 %v1824, %v1897
    %v1899 = vpop.f32.mrb[0].mxu0
    %1900 = vmatprep.mubr.f32.mxu0 0.0
    %1901 = vmatmul.mubr.f32.gmra.mrb[0].mxu0 %v1576
    %v1902 = vpop.f32.mrb[0].mxu0
    %v1903 = vadd.f32 %v1824, %v1902
    %v1904 = vpop.f32.mrb[0].mxu0
    %1905 = vmatprep.mubr.f32.mxu0 0.0
    %1906 = vmatmul.mubr.f32.gmra.mrb[0].mxu0 %v1582
    %v1907 = vpop.f32.mrb[0].mxu0
    %v1908 = vadd.f32 %v1824, %v1907
    %v1909 = vpop.f32.mrb[0].mxu0
    %1910 = vmatprep.mubr.f32.mxu0 0.0
    %1911 = vmatmul.mubr.f32.gmra.mrb[0].mxu0 %v1588
    %v1912 = vpop.f32.mrb[0].mxu0
    %v1913 = vadd.f32 %v1824, %v1912
    %v1914 = vpop.f32.mrb[0].mxu0
    %1915 = vmatprep.mubr.f32.mxu0 0.0
    %1916 = vmatmul.mubr.f32.gmra.mrb[0].mxu0 %v1594
    %v1917 = vpop.f32.mrb[0].mxu0
    %v1918 = vadd.f32 %v1824, %v1917
    %v1919 = vpop.f32.mrb[0].mxu0
    %1920 = vmatprep.mubr.f32.mxu0 0.0
    %1921 = vmatmul.mubr.f32.gmra.mrb[0].mxu0 %v1600
    %v1922 = vpop.f32.mrb[0].mxu0
    %v1923 = vadd.f32 %v1824, %v1922
    %v1924 = vpop.f32.mrb[0].mxu0
    %1925 = vmatprep.mubr.f32.mxu0 0.0
    %1926 = vmatmul.mubr.f32.gmra.mrb[0].mxu0 %v1606
    %v1927 = vpop.f32.mrb[0].mxu0
    %v1928 = vadd.f32 %v1824, %v1927
    %v1929 = vpop.f32.mrb[0].mxu0
    %1930 = vmatprep.mubr.f32.mxu0 0.0
    %1931 = vmatmul.mubr.f32.gmra.mrb[0].mxu0 %v1612
    %v1932 = vpop.f32.mrb[0].mxu0
    %v1933 = vadd.f32 %v1824, %v1932
    %v1934 = vpop.f32.mrb[0].mxu0
    %1935 = vmatprep.mubr.f32.mxu0 0.0
    %1936 = vmatmul.mubr.f32.gmra.mrb[0].mxu0 %v1618
    %v1937 = vpop.f32.mrb[0].mxu0
    %v1938 = vadd.f32 %v1824, %v1937
    %v1939 = vpop.f32.mrb[0].mxu0
    %1940 = vmatprep.mubr.f32.mxu0 0.0
    %1941 = vmatmul.mubr.f32.gmra.mrb[0].mxu0 %v1624
    %v1942 = vpop.f32.mrb[0].mxu0
    %v1943 = vadd.f32 %v1824, %v1942
    %v1944 = vpop.f32.mrb[0].mxu0
    %1945 = vmatprep.mubr.f32.mxu0 0.0
    %1946 = vmatmul.mubr.f32.gmra.mrb[0].mxu0 %v1630
    %v1947 = vpop.f32.mrb[0].mxu0
    %v1948 = vadd.f32 %v1824, %v1947
    %v1949 = vpop.f32.mrb[0].mxu0
    %1950 = vmatprep.mubr.f32.mxu0 0.0
    %1951 = vmatmul.mubr.f32.gmra.mrb[0].mxu0 %v1636
    %v1952 = vpop.f32.mrb[0].mxu0
    %v1953 = vadd.f32 %v1824, %v1952
    %v1954 = vpop.f32.mrb[0].mxu0
    %1955 = vmatprep.mubr.f32.mxu0 0.0
    %1956 = vmatmul.mubr.f32.gmra.mrb[0].mxu0 %v1642
    %v1957 = vpop.f32.mrb[0].mxu0
    %v1958 = vadd.f32 %v1824, %v1957
    %v1959 = vpop.f32.mrb[0].mxu0
    %1960 = vmatprep.mubr.f32.mxu0 0.0
    %1961 = vmatmul.mubr.f32.gmra.mrb[0].mxu0 %v1648
    %v1962 = vpop.f32.mrb[0].mxu0
    %v1963 = vadd.f32 %v1824, %v1962
    %v1964 = vpop.f32.mrb[0].mxu0
    %1965 = vmatprep.mubr.f32.mxu0 0.0
    %1966 = vmatmul.mubr.f32.gmra.mrb[0].mxu0 %v1654
    %v1967 = vpop.f32.mrb[0].mxu0
    %v1968 = vadd.f32 %v1824, %v1967
    %v1969 = vpop.f32.mrb[0].mxu0
    %1970 = vdwg.mxu0
    %vm1971 = vcmp.gt.f32.partialorder %v1893, 20.0
    %vm1972 = vcmp.gt.f32.partialorder %v1898, 20.0
    %vm1973 = vcmp.gt.f32.partialorder %v1903, 20.0
    %vm1974 = vcmp.gt.f32.partialorder %v1908, 20.0
    %vm1975 = vcmp.gt.f32.partialorder %v1913, 20.0
    %vm1976 = vcmp.gt.f32.partialorder %v1918, 20.0
    %vm1977 = vcmp.gt.f32.partialorder %v1923, 20.0
    %vm1978 = vcmp.gt.f32.partialorder %v1928, 20.0
    %vm1979 = vcmp.gt.f32.partialorder %v1933, 20.0
    %vm1980 = vcmp.gt.f32.partialorder %v1938, 20.0
    %vm1981 = vcmp.gt.f32.partialorder %v1943, 20.0
    %vm1982 = vcmp.gt.f32.partialorder %v1948, 20.0
    %vm1983 = vcmp.gt.f32.partialorder %v1953, 20.0
    %vm1984 = vcmp.gt.f32.partialorder %v1958, 20.0
    %vm1985 = vcmp.gt.f32.partialorder %v1963, 20.0
    %vm1986 = vcmp.gt.f32.partialorder %v1968, 20.0
    %v1987 = vmin.f32 %v1893, 20.0
    %v1988 = vmin.f32 %v1898, 20.0
    %v1989 = vmin.f32 %v1903, 20.0
    %v1990 = vmin.f32 %v1908, 20.0
    %v1991 = vmin.f32 %v1913, 20.0
    %v1992 = vmin.f32 %v1918, 20.0
    %v1993 = vmin.f32 %v1923, 20.0
    %v1994 = vmin.f32 %v1928, 20.0
    %v1995 = vmin.f32 %v1933, 20.0
    %v1996 = vmin.f32 %v1938, 20.0
    %v1997 = vmin.f32 %v1943, 20.0
    %v1998 = vmin.f32 %v1948, 20.0
    %v1999 = vmin.f32 %v1953, 20.0
    %v2000 = vmin.f32 %v1958, 20.0
    %v2001 = vmin.f32 %v1963, 20.0
    %v2002 = vmin.f32 %v1968, 20.0
    %v2003 = vmul.f32 %v1987, 1.442695
    %v2004 = vpow.pop %v2003
    %v2005 = vmul.f32 %v1988, 1.442695
    %v2006 = vpow.pop %v2005
    %v2007 = vmul.f32 %v1989, 1.442695
    %v2008 = vpow.pop %v2007
    %v2009 = vmul.f32 %v1990, 1.442695
    %v2010 = vpow.pop %v2009
    %v2011 = vmul.f32 %v1991, 1.442695
    %v2012 = vpow.pop %v2011
    %v2013 = vmul.f32 %v1992, 1.442695
    %v2014 = vpow.pop %v2013
    %v2015 = vmul.f32 %v1993, 1.442695
    %v2016 = vpow.pop %v2015
    %v2017 = vmul.f32 %v1994, 1.442695
    %v2018 = vpow.pop %v2017
    %v2019 = vmul.f32 %v1995, 1.442695
    %v2020 = vpow.pop %v2019
    %v2021 = vmul.f32 %v1996, 1.442695
    %v2022 = vpow.pop %v2021
    %v2023 = vmul.f32 %v1997, 1.442695
    %v2024 = vpow.pop %v2023
    %v2025 = vmul.f32 %v1998, 1.442695
    %v2026 = vpow.pop %v2025
    %v2027 = vmul.f32 %v1999, 1.442695
    %v2028 = vpow.pop %v2027
    %v2029 = vmul.f32 %v2000, 1.442695
    %v2030 = vpow.pop %v2029
    %v2031 = vmul.f32 %v2001, 1.442695
    %v2032 = vpow.pop %v2031
    %v2033 = vmul.f32 %v2002, 1.442695
    %v2034 = vpow.pop %v2033
    %v2035 = vadd.f32 %v2004, 1.0
    %v2036 = vadd.f32 %v2006, 1.0
    %v2037 = vadd.f32 %v2008, 1.0
    %v2038 = vadd.f32 %v2010, 1.0
    %v2039 = vadd.f32 %v2012, 1.0
    %v2040 = vadd.f32 %v2014, 1.0
    %v2041 = vadd.f32 %v2016, 1.0
    %v2042 = vadd.f32 %v2018, 1.0
    %v2043 = vadd.f32 %v2020, 1.0
    %v2044 = vadd.f32 %v2022, 1.0
    %v2045 = vadd.f32 %v2024, 1.0
    %v2046 = vadd.f32 %v2026, 1.0
    %v2047 = vadd.f32 %v2028, 1.0
    %v2048 = vadd.f32 %v2030, 1.0
    %v2049 = vadd.f32 %v2032, 1.0
    %v2050 = vadd.f32 %v2034, 1.0
    %v2051 = vlog2.pop %v2035
    %v2052 = vmul.f32 %v2051, 0.6931472
    %v2053 = vlog2.pop %v2036
    %v2054 = vmul.f32 %v2053, 0.6931472
    %v2055 = vlog2.pop %v2037
    %v2056 = vmul.f32 %v2055, 0.6931472
    %v2057 = vlog2.pop %v2038
    %v2058 = vmul.f32 %v2057, 0.6931472
    %v2059 = vlog2.pop %v2039
    %v2060 = vmul.f32 %v2059, 0.6931472
    %v2061 = vlog2.pop %v2040
    %v2062 = vmul.f32 %v2061, 0.6931472
    %v2063 = vlog2.pop %v2041
    %v2064 = vmul.f32 %v2063, 0.6931472
    %v2065 = vlog2.pop %v2042
    %v2066 = vmul.f32 %v2065, 0.6931472
    %v2067 = vlog2.pop %v2043
    %v2068 = vmul.f32 %v2067, 0.6931472
    %v2069 = vlog2.pop %v2044
    %v2070 = vmul.f32 %v2069, 0.6931472
    %v2071 = vlog2.pop %v2045
    %v2072 = vmul.f32 %v2071, 0.6931472
    %v2073 = vlog2.pop %v2046
    %v2074 = vmul.f32 %v2073, 0.6931472
    %v2075 = vlog2.pop %v2047
    %v2076 = vmul.f32 %v2075, 0.6931472
    %v2077 = vlog2.pop %v2048
    %v2078 = vmul.f32 %v2077, 0.6931472
    %v2079 = vlog2.pop %v2049
    %v2080 = vmul.f32 %v2079, 0.6931472
    %v2081 = vlog2.pop %v2050
    %v2082 = vmul.f32 %v2081, 0.6931472
    %v2083 = vsel %vm1971, %v1893, %v2052
    %v2084 = vsel %vm1972, %v1898, %v2054
    %v2085 = vsel %vm1973, %v1903, %v2056
    %v2086 = vsel %vm1974, %v1908, %v2058
    %v2087 = vsel %vm1975, %v1913, %v2060
    %v2088 = vsel %vm1976, %v1918, %v2062
    %v2089 = vsel %vm1977, %v1923, %v2064
    %v2090 = vsel %vm1978, %v1928, %v2066
    %v2091 = vsel %vm1979, %v1933, %v2068
    %v2092 = vsel %vm1980, %v1938, %v2070
    %v2093 = vsel %vm1981, %v1943, %v2072
    %v2094 = vsel %vm1982, %v1948, %v2074
    %v2095 = vsel %vm1983, %v1953, %v2076
    %v2096 = vsel %vm1984, %v1958, %v2078
    %v2097 = vsel %vm1985, %v1963, %v2080
    %v2098 = vsel %vm1986, %v1968, %v2082
    %2099 = vst [vmem:[#allocation2] sm:$0xff] %v2083
    %2100 = vst [vmem:[#allocation2 + $0x8] sm:$0xff] %v2084
    %2101 = vst [vmem:[#allocation2 + $0x10] sm:$0xff] %v2085
    %2102 = vst [vmem:[#allocation2 + $0x18] sm:$0xff] %v2086
    %2103 = vst [vmem:[#allocation2 + $0x20] sm:$0xff] %v2087
    %2104 = vst [vmem:[#allocation2 + $0x28] sm:$0xff] %v2088
    %2105 = vst [vmem:[#allocation2 + $0x30] sm:$0xff] %v2089
    %2106 = vst [vmem:[#allocation2 + $0x38] sm:$0xff] %v2090
    %2107 = vst [vmem:[#allocation2 + $0x40] sm:$0xff] %v2091
    %2108 = vst [vmem:[#allocation2 + $0x48] sm:$0xff] %v2092
    %2109 = vst [vmem:[#allocation2 + $0x50] sm:$0xff] %v2093
    %2110 = vst [vmem:[#allocation2 + $0x58] sm:$0xff] %v2094
    %2111 = vst [vmem:[#allocation2 + $0x60] sm:$0xff] %v2095
    %2112 = vst [vmem:[#allocation2 + $0x68] sm:$0xff] %v2096
    %2113 = vst [vmem:[#allocation2 + $0x70] sm:$0xff] %v2097
    %2114 = vst [vmem:[#allocation2 + $0x78] sm:$0xff] %v2098
    %vm2115 = vcmask 130048
    %2116 = vst.msk [vmem:[#allocation3] sm:$0xff] %vm2115, %v1566
    %2117 = vst.msk [vmem:[#allocation3 + $0x8] sm:$0xff] %vm2115, %v1572
    %2118 = vst.msk [vmem:[#allocation3 + $0x10] sm:$0xff] %vm2115, %v1578
    %2119 = vst.msk [vmem:[#allocation3 + $0x18] sm:$0xff] %vm2115, %v1584
    %2120 = vst.msk [vmem:[#allocation3 + $0x20] sm:$0xff] %vm2115, %v1590
    %2121 = vst.msk [vmem:[#allocation3 + $0x28] sm:$0xff] %vm2115, %v1596
    %2122 = vst.msk [vmem:[#allocation3 + $0x30] sm:$0xff] %vm2115, %v1602
    %2123 = vst.msk [vmem:[#allocation3 + $0x38] sm:$0xff] %vm2115, %v1608
    %2124 = vst.msk [vmem:[#allocation3 + $0x40] sm:$0xff] %vm2115, %v1614
    %2125 = vst.msk [vmem:[#allocation3 + $0x48] sm:$0xff] %vm2115, %v1620
    %2126 = vst.msk [vmem:[#allocation3 + $0x50] sm:$0xff] %vm2115, %v1626
    %2127 = vst.msk [vmem:[#allocation3 + $0x58] sm:$0xff] %vm2115, %v1632
    %2128 = vst.msk [vmem:[#allocation3 + $0x60] sm:$0xff] %vm2115, %v1638
    %2129 = vst.msk [vmem:[#allocation3 + $0x68] sm:$0xff] %vm2115, %v1644
    %2130 = vst.msk [vmem:[#allocation3 + $0x70] sm:$0xff] %vm2115, %v1650
    %2131 = vst.msk [vmem:[#allocation3 + $0x78] sm:$0xff] %vm2115, %v1656
    %2132 = vst.msk [vmem:[#allocation4] sm:$0xff] %vm2115, %v1725
    %2133 = vst.msk [vmem:[#allocation4 + $0x8] sm:$0xff] %vm2115, %v1730
    %2134 = vst.msk [vmem:[#allocation4 + $0x10] sm:$0xff] %vm2115, %v1735
    %2135 = vst.msk [vmem:[#allocation4 + $0x18] sm:$0xff] %vm2115, %v1740
    %2136 = vst.msk [vmem:[#allocation4 + $0x20] sm:$0xff] %vm2115, %v1745
    %2137 = vst.msk [vmem:[#allocation4 + $0x28] sm:$0xff] %vm2115, %v1750
    %2138 = vst.msk [vmem:[#allocation4 + $0x30] sm:$0xff] %vm2115, %v1755
    %2139 = vst.msk [vmem:[#allocation4 + $0x38] sm:$0xff] %vm2115, %v1760
    %2140 = vst.msk [vmem:[#allocation4 + $0x40] sm:$0xff] %vm2115, %v1765
    %2141 = vst.msk [vmem:[#allocation4 + $0x48] sm:$0xff] %vm2115, %v1770
    %2142 = vst.msk [vmem:[#allocation4 + $0x50] sm:$0xff] %vm2115, %v1775
    %2143 = vst.msk [vmem:[#allocation4 + $0x58] sm:$0xff] %vm2115, %v1780
    %2144 = vst.msk [vmem:[#allocation4 + $0x60] sm:$0xff] %vm2115, %v1785
    %2145 = vst.msk [vmem:[#allocation4 + $0x68] sm:$0xff] %vm2115, %v1790
    %2146 = vst.msk [vmem:[#allocation4 + $0x70] sm:$0xff] %vm2115, %v1795
    %2147 = vst.msk [vmem:[#allocation4 + $0x78] sm:$0xff] %vm2115, %v1800
    %v2148 = vld [vmem:[%s11] sm:$0xff]
    %v2149 = vld [vmem:[%s11 + $0x8] sm:$0xff]
    %v2150 = vmul.f32 %v2148, 1.442695
    %v2151 = vpow.pop %v2150
    %v2152 = vmul.f32 %v2149, 1.442695
    %v2153 = vpow.pop %v2152
    %v2154 = vsub.f32 0.0, %v2151
    %v2155 = vsub.f32 0.0, %v2153
    %v2156 = vlaneseq
    %v2157 = vshrl.u32 %v2156, 7
    %v2158 = vadd.s32 %v2157, 8
    %v2159 = vlaneseq
    %v2160 = vand.u32 %v2159, 127
    %vm2161 = vcmp.eq.s32.totalorder %v2157, %v2160
    %vm2162 = vcmp.eq.s32.totalorder %v2158, %v2160
    loop: start=0, step=1, limit=16
    $region74: #{_forward.1} parent=1 // loop_pre_header
      _
    $region75: #{_forward.1} parent=1 // loop_header
      %s2164 = sphi 0, %s2168
      %p2165 = scmp.ge.s32.totalorder %s2164, 16
    $region76: #{_forward.1} parent=1 // loop_header_branch
      %2167 = sbr.rel (%p2165) target = $region80
    $region77: #{_forward.1} parent=1 // loop_body
      %s2169 = smul.u32 %s2164, 8
      %s2170 = scalar_lea.vmem [#allocation2], %s2169
      %v2171 = vld [vmem:[%s2170] sm:$0xff]
      %s2172 = scalar_lea.vmem [#allocation9], %s2169
      %v2173 = vld [vmem:[%s2172] sm:$0xff]
      %v2174 = vmul.f32 %v2171, %v2173
      %s2175 = scalar_lea.vmem [#allocation3], %s2169
      %v2176 = vld [vmem:[%s2175] sm:$0xff]
      %s2177 = scalar_lea.vmem [#allocation4], %s2169
      %v2178 = vld [vmem:[%s2177] sm:$0xff]
      %v2179 = vlaneseq
      %v2180 = vshrl.u32 %v2179, 7
      %v2181 = vsub.s32 0, %v2180
      %v2182 = vrot.slane %v2171, %v2181
      %v2183 = vmul.f32 %v2182, %v2154
      %v2184 = vmul.f32 %v2182, %v2155
      %v2185 = vmul.f32 %v2183, 1.442695
      %v2186 = vpow.pop %v2185
      %v2187 = vmul.f32 %v2184, 1.442695
      %v2188 = vpow.pop %v2187
      %s2189 = smul.u32 %s2169, 16
      %s2190 = scalar_lea.vmem [#allocation5], %s2189
      %2191 = vst [vmem:[%s2190] sm:$0xff] %v2186
      %2192 = vst [vmem:[%s2190 + $0x8] sm:$0xff] %v2188
      %v2193 = vlaneseq
      %v2194 = vshrl.u32 %v2193, 7
      %v2195 = vsub.s32 0, %v2194
      %v2196 = vrot.slane %v2176, %v2195
      %v2197 = vsel %vm2161, %v2196, 0.0
      %v2198 = vsel %vm2162, %v2196, 0.0
      %v2199 = vsel %vm2115, %v2197, 0.0
      %2200 = vadd.xlane.f32.xlu0 %v2199
      %v2201 = vpop.xlane.xlu0 %2200
      %v2202 = vsel %vm2115, %v2198, 0.0
      %2203 = vadd.xlane.f32.xlu0 %v2202
      %v2204 = vpop.xlane.xlu0 %2203
      %v2205 = vlaneseq
      %v2206 = vshrl.u32 %v2205, 7
      %v2207 = vsub.s32 0, %v2206
      %v2208 = vrot.slane %v2174, %v2207
      %v2209 = vmul.f32 %v2201, %v2208
      %v2210 = vmul.f32 %v2204, %v2208
      %s2211 = scalar_lea.vmem [#allocation6], %s2189
      %2212 = vst [vmem:[%s2211] sm:$0xff] %v2209
      %2213 = vst [vmem:[%s2211 + $0x8] sm:$0xff] %v2210
      %v2214 = vlaneseq
      %v2215 = vshrl.u32 %v2214, 7
      %v2216 = vsub.s32 0, %v2215
      %v2217 = vrot.slane %v2178, %v2216
      %v2218 = vsel %vm2161, %v2217, 0.0
      %v2219 = vsel %vm2162, %v2217, 0.0
      %v2220 = vsel %vm2115, %v2218, 0.0
      %2221 = vadd.xlane.f32.xlu0 %v2220
      %v2222 = vpop.xlane.xlu0 %2221
      %v2223 = vsel %vm2115, %v2219, 0.0
      %2224 = vadd.xlane.f32.xlu0 %v2223
      %v2225 = vpop.xlane.xlu0 %2224
      %s2226 = sadd.s32 %s2169, 1
      %v2227 = vlaneseq
      %v2228 = vshrl.u32 %v2227, 7
      %v2229 = vsub.s32 1, %v2228
      %v2230 = vrot.slane %v2171, %v2229
      %v2231 = vmul.f32 %v2230, %v2154
      %v2232 = vmul.f32 %v2230, %v2155
      %v2233 = vmul.f32 %v2231, 1.442695
      %v2234 = vpow.pop %v2233
      %v2235 = vmul.f32 %v2232, 1.442695
      %v2236 = vpow.pop %v2235
      %s2237 = smul.u32 %s2226, 16
      %s2238 = scalar_lea.vmem [#allocation5], %s2237
      %2239 = vst [vmem:[%s2238] sm:$0xff] %v2234
      %2240 = vst [vmem:[%s2238 + $0x8] sm:$0xff] %v2236
      %v2241 = vlaneseq
      %v2242 = vshrl.u32 %v2241, 7
      %v2243 = vsub.s32 1, %v2242
      %v2244 = vrot.slane %v2176, %v2243
      %v2245 = vsel %vm2161, %v2244, 0.0
      %v2246 = vsel %vm2162, %v2244, 0.0
      %v2247 = vsel %vm2115, %v2245, 0.0
      %2248 = vadd.xlane.f32.xlu0 %v2247
      %v2249 = vpop.xlane.xlu0 %2248
      %v2250 = vsel %vm2115, %v2246, 0.0
      %2251 = vadd.xlane.f32.xlu0 %v2250
      %v2252 = vpop.xlane.xlu0 %2251
      %v2253 = vlaneseq
      %v2254 = vshrl.u32 %v2253, 7
      %v2255 = vsub.s32 1, %v2254
      %v2256 = vrot.slane %v2174, %v2255
      %v2257 = vmul.f32 %v2249, %v2256
      %v2258 = vmul.f32 %v2252, %v2256
      %s2259 = scalar_lea.vmem [#allocation6], %s2237
      %2260 = vst [vmem:[%s2259] sm:$0xff] %v2257
      %2261 = vst [vmem:[%s2259 + $0x8] sm:$0xff] %v2258
      %v2262 = vlaneseq
      %v2263 = vshrl.u32 %v2262, 7
      %v2264 = vsub.s32 1, %v2263
      %v2265 = vrot.slane %v2178, %v2264
      %v2266 = vsel %vm2161, %v2265, 0.0
      %v2267 = vsel %vm2162, %v2265, 0.0
      %v2268 = vsel %vm2115, %v2266, 0.0
      %2269 = vadd.xlane.f32.xlu0 %v2268
      %v2270 = vpop.xlane.xlu0 %2269
      %v2271 = vsel %vm2115, %v2267, 0.0
      %2272 = vadd.xlane.f32.xlu0 %v2271
      %v2273 = vpop.xlane.xlu0 %2272
      %s2274 = sadd.s32 %s2169, 2
      %v2275 = vlaneseq
      %v2276 = vshrl.u32 %v2275, 7
      %v2277 = vsub.s32 2, %v2276
      %v2278 = vrot.slane %v2171, %v2277
      %v2279 = vmul.f32 %v2278, %v2154
      %v2280 = vmul.f32 %v2278, %v2155
      %v2281 = vmul.f32 %v2279, 1.442695
      %v2282 = vpow.pop %v2281
      %v2283 = vmul.f32 %v2280, 1.442695
      %v2284 = vpow.pop %v2283
      %s2285 = smul.u32 %s2274, 16
      %s2286 = scalar_lea.vmem [#allocation5], %s2285
      %2287 = vst [vmem:[%s2286] sm:$0xff] %v2282
      %2288 = vst [vmem:[%s2286 + $0x8] sm:$0xff] %v2284
      %v2289 = vlaneseq
      %v2290 = vshrl.u32 %v2289, 7
      %v2291 = vsub.s32 2, %v2290
      %v2292 = vrot.slane %v2176, %v2291
      %v2293 = vsel %vm2161, %v2292, 0.0
      %v2294 = vsel %vm2162, %v2292, 0.0
      %v2295 = vsel %vm2115, %v2293, 0.0
      %2296 = vadd.xlane.f32.xlu0 %v2295
      %v2297 = vpop.xlane.xlu0 %2296
      %v2298 = vsel %vm2115, %v2294, 0.0
      %2299 = vadd.xlane.f32.xlu0 %v2298
      %v2300 = vpop.xlane.xlu0 %2299
      %v2301 = vlaneseq
      %v2302 = vshrl.u32 %v2301, 7
      %v2303 = vsub.s32 2, %v2302
      %v2304 = vrot.slane %v2174, %v2303
      %v2305 = vmul.f32 %v2297, %v2304
      %v2306 = vmul.f32 %v2300, %v2304
      %s2307 = scalar_lea.vmem [#allocation6], %s2285
      %2308 = vst [vmem:[%s2307] sm:$0xff] %v2305
      %2309 = vst [vmem:[%s2307 + $0x8] sm:$0xff] %v2306
      %v2310 = vlaneseq
      %v2311 = vshrl.u32 %v2310, 7
      %v2312 = vsub.s32 2, %v2311
      %v2313 = vrot.slane %v2178, %v2312
      %v2314 = vsel %vm2161, %v2313, 0.0
      %v2315 = vsel %vm2162, %v2313, 0.0
      %v2316 = vsel %vm2115, %v2314, 0.0
      %2317 = vadd.xlane.f32.xlu0 %v2316
      %v2318 = vpop.xlane.xlu0 %2317
      %v2319 = vsel %vm2115, %v2315, 0.0
      %2320 = vadd.xlane.f32.xlu0 %v2319
      %v2321 = vpop.xlane.xlu0 %2320
      %s2322 = sadd.s32 %s2169, 3
      %v2323 = vlaneseq
      %v2324 = vshrl.u32 %v2323, 7
      %v2325 = vsub.s32 3, %v2324
      %v2326 = vrot.slane %v2171, %v2325
      %v2327 = vmul.f32 %v2326, %v2154
      %v2328 = vmul.f32 %v2326, %v2155
      %v2329 = vmul.f32 %v2327, 1.442695
      %v2330 = vpow.pop %v2329
      %v2331 = vmul.f32 %v2328, 1.442695
      %v2332 = vpow.pop %v2331
      %s2333 = smul.u32 %s2322, 16
      %s2334 = scalar_lea.vmem [#allocation5], %s2333
      %2335 = vst [vmem:[%s2334] sm:$0xff] %v2330
      %2336 = vst [vmem:[%s2334 + $0x8] sm:$0xff] %v2332
      %v2337 = vlaneseq
      %v2338 = vshrl.u32 %v2337, 7
      %v2339 = vsub.s32 3, %v2338
      %v2340 = vrot.slane %v2176, %v2339
      %v2341 = vsel %vm2161, %v2340, 0.0
      %v2342 = vsel %vm2162, %v2340, 0.0
      %v2343 = vsel %vm2115, %v2341, 0.0
      %2344 = vadd.xlane.f32.xlu0 %v2343
      %v2345 = vpop.xlane.xlu0 %2344
      %v2346 = vsel %vm2115, %v2342, 0.0
      %2347 = vadd.xlane.f32.xlu0 %v2346
      %v2348 = vpop.xlane.xlu0 %2347
      %v2349 = vlaneseq
      %v2350 = vshrl.u32 %v2349, 7
      %v2351 = vsub.s32 3, %v2350
      %v2352 = vrot.slane %v2174, %v2351
      %v2353 = vmul.f32 %v2345, %v2352
      %v2354 = vmul.f32 %v2348, %v2352
      %s2355 = scalar_lea.vmem [#allocation6], %s2333
      %2356 = vst [vmem:[%s2355] sm:$0xff] %v2353
      %2357 = vst [vmem:[%s2355 + $0x8] sm:$0xff] %v2354
      %v2358 = vlaneseq
      %v2359 = vshrl.u32 %v2358, 7
      %v2360 = vsub.s32 3, %v2359
      %v2361 = vrot.slane %v2178, %v2360
      %v2362 = vsel %vm2161, %v2361, 0.0
      %v2363 = vsel %vm2162, %v2361, 0.0
      %v2364 = vsel %vm2115, %v2362, 0.0
      %2365 = vadd.xlane.f32.xlu0 %v2364
      %v2366 = vpop.xlane.xlu0 %2365
      %v2367 = vsel %vm2115, %v2363, 0.0
      %2368 = vadd.xlane.f32.xlu0 %v2367
      %v2369 = vpop.xlane.xlu0 %2368
      %s2370 = sadd.s32 %s2169, 4
      %v2371 = vlaneseq
      %v2372 = vshrl.u32 %v2371, 7
      %v2373 = vsub.s32 4, %v2372
      %v2374 = vrot.slane %v2171, %v2373
      %v2375 = vmul.f32 %v2374, %v2154
      %v2376 = vmul.f32 %v2374, %v2155
      %v2377 = vmul.f32 %v2375, 1.442695
      %v2378 = vpow.pop %v2377
      %v2379 = vmul.f32 %v2376, 1.442695
      %v2380 = vpow.pop %v2379
      %s2381 = smul.u32 %s2370, 16
      %s2382 = scalar_lea.vmem [#allocation5], %s2381
      %2383 = vst [vmem:[%s2382] sm:$0xff] %v2378
      %2384 = vst [vmem:[%s2382 + $0x8] sm:$0xff] %v2380
      %v2385 = vlaneseq
      %v2386 = vshrl.u32 %v2385, 7
      %v2387 = vsub.s32 4, %v2386
      %v2388 = vrot.slane %v2176, %v2387
      %v2389 = vsel %vm2161, %v2388, 0.0
      %v2390 = vsel %vm2162, %v2388, 0.0
      %v2391 = vsel %vm2115, %v2389, 0.0
      %2392 = vadd.xlane.f32.xlu0 %v2391
      %v2393 = vpop.xlane.xlu0 %2392
      %v2394 = vsel %vm2115, %v2390, 0.0
      %2395 = vadd.xlane.f32.xlu0 %v2394
      %v2396 = vpop.xlane.xlu0 %2395
      %v2397 = vlaneseq
      %v2398 = vshrl.u32 %v2397, 7
      %v2399 = vsub.s32 4, %v2398
      %v2400 = vrot.slane %v2174, %v2399
      %v2401 = vmul.f32 %v2393, %v2400
      %v2402 = vmul.f32 %v2396, %v2400
      %s2403 = scalar_lea.vmem [#allocation6], %s2381
      %2404 = vst [vmem:[%s2403] sm:$0xff] %v2401
      %2405 = vst [vmem:[%s2403 + $0x8] sm:$0xff] %v2402
      %v2406 = vlaneseq
      %v2407 = vshrl.u32 %v2406, 7
      %v2408 = vsub.s32 4, %v2407
      %v2409 = vrot.slane %v2178, %v2408
      %v2410 = vsel %vm2161, %v2409, 0.0
      %v2411 = vsel %vm2162, %v2409, 0.0
      %v2412 = vsel %vm2115, %v2410, 0.0
      %2413 = vadd.xlane.f32.xlu0 %v2412
      %v2414 = vpop.xlane.xlu0 %2413
      %v2415 = vsel %vm2115, %v2411, 0.0
      %2416 = vadd.xlane.f32.xlu0 %v2415
      %v2417 = vpop.xlane.xlu0 %2416
      %s2418 = sadd.s32 %s2169, 5
      %v2419 = vlaneseq
      %v2420 = vshrl.u32 %v2419, 7
      %v2421 = vsub.s32 5, %v2420
      %v2422 = vrot.slane %v2171, %v2421
      %v2423 = vmul.f32 %v2422, %v2154
      %v2424 = vmul.f32 %v2422, %v2155
      %v2425 = vmul.f32 %v2423, 1.442695
      %v2426 = vpow.pop %v2425
      %v2427 = vmul.f32 %v2424, 1.442695
      %v2428 = vpow.pop %v2427
      %s2429 = smul.u32 %s2418, 16
      %s2430 = scalar_lea.vmem [#allocation5], %s2429
      %2431 = vst [vmem:[%s2430] sm:$0xff] %v2426
      %2432 = vst [vmem:[%s2430 + $0x8] sm:$0xff] %v2428
      %v2433 = vlaneseq
      %v2434 = vshrl.u32 %v2433, 7
      %v2435 = vsub.s32 5, %v2434
      %v2436 = vrot.slane %v2176, %v2435
      %v2437 = vsel %vm2161, %v2436, 0.0
      %v2438 = vsel %vm2162, %v2436, 0.0
      %v2439 = vsel %vm2115, %v2437, 0.0
      %2440 = vadd.xlane.f32.xlu0 %v2439
      %v2441 = vpop.xlane.xlu0 %2440
      %v2442 = vsel %vm2115, %v2438, 0.0
      %2443 = vadd.xlane.f32.xlu0 %v2442
      %v2444 = vpop.xlane.xlu0 %2443
      %v2445 = vlaneseq
      %v2446 = vshrl.u32 %v2445, 7
      %v2447 = vsub.s32 5, %v2446
      %v2448 = vrot.slane %v2174, %v2447
      %v2449 = vmul.f32 %v2441, %v2448
      %v2450 = vmul.f32 %v2444, %v2448
      %s2451 = scalar_lea.vmem [#allocation6], %s2429
      %2452 = vst [vmem:[%s2451] sm:$0xff] %v2449
      %2453 = vst [vmem:[%s2451 + $0x8] sm:$0xff] %v2450
      %v2454 = vlaneseq
      %v2455 = vshrl.u32 %v2454, 7
      %v2456 = vsub.s32 5, %v2455
      %v2457 = vrot.slane %v2178, %v2456
      %v2458 = vsel %vm2161, %v2457, 0.0
      %v2459 = vsel %vm2162, %v2457, 0.0
      %v2460 = vsel %vm2115, %v2458, 0.0
      %2461 = vadd.xlane.f32.xlu0 %v2460
      %v2462 = vpop.xlane.xlu0 %2461
      %v2463 = vsel %vm2115, %v2459, 0.0
      %2464 = vadd.xlane.f32.xlu0 %v2463
      %v2465 = vpop.xlane.xlu0 %2464
      %s2466 = sadd.s32 %s2169, 6
      %v2467 = vlaneseq
      %v2468 = vshrl.u32 %v2467, 7
      %v2469 = vsub.s32 6, %v2468
      %v2470 = vrot.slane %v2171, %v2469
      %v2471 = vmul.f32 %v2470, %v2154
      %v2472 = vmul.f32 %v2470, %v2155
      %v2473 = vmul.f32 %v2471, 1.442695
      %v2474 = vpow.pop %v2473
      %v2475 = vmul.f32 %v2472, 1.442695
      %v2476 = vpow.pop %v2475
      %s2477 = smul.u32 %s2466, 16
      %s2478 = scalar_lea.vmem [#allocation5], %s2477
      %2479 = vst [vmem:[%s2478] sm:$0xff] %v2474
      %2480 = vst [vmem:[%s2478 + $0x8] sm:$0xff] %v2476
      %v2481 = vlaneseq
      %v2482 = vshrl.u32 %v2481, 7
      %v2483 = vsub.s32 6, %v2482
      %v2484 = vrot.slane %v2176, %v2483
      %v2485 = vsel %vm2161, %v2484, 0.0
      %v2486 = vsel %vm2162, %v2484, 0.0
      %v2487 = vsel %vm2115, %v2485, 0.0
      %2488 = vadd.xlane.f32.xlu0 %v2487
      %v2489 = vpop.xlane.xlu0 %2488
      %v2490 = vsel %vm2115, %v2486, 0.0
      %2491 = vadd.xlane.f32.xlu0 %v2490
      %v2492 = vpop.xlane.xlu0 %2491
      %v2493 = vlaneseq
      %v2494 = vshrl.u32 %v2493, 7
      %v2495 = vsub.s32 6, %v2494
      %v2496 = vrot.slane %v2174, %v2495
      %v2497 = vmul.f32 %v2489, %v2496
      %v2498 = vmul.f32 %v2492, %v2496
      %s2499 = scalar_lea.vmem [#allocation6], %s2477
      %2500 = vst [vmem:[%s2499] sm:$0xff] %v2497
      %2501 = vst [vmem:[%s2499 + $0x8] sm:$0xff] %v2498
      %v2502 = vlaneseq
      %v2503 = vshrl.u32 %v2502, 7
      %v2504 = vsub.s32 6, %v2503
      %v2505 = vrot.slane %v2178, %v2504
      %v2506 = vsel %vm2161, %v2505, 0.0
      %v2507 = vsel %vm2162, %v2505, 0.0
      %v2508 = vsel %vm2115, %v2506, 0.0
      %2509 = vadd.xlane.f32.xlu0 %v2508
      %v2510 = vpop.xlane.xlu0 %2509
      %v2511 = vsel %vm2115, %v2507, 0.0
      %2512 = vadd.xlane.f32.xlu0 %v2511
      %v2513 = vpop.xlane.xlu0 %2512
      %s2514 = sadd.s32 %s2169, 7
      %v2515 = vlaneseq
      %v2516 = vshrl.u32 %v2515, 7
      %v2517 = vsub.s32 7, %v2516
      %v2518 = vrot.slane %v2171, %v2517
      %v2519 = vmul.f32 %v2518, %v2154
      %v2520 = vmul.f32 %v2518, %v2155
      %v2521 = vmul.f32 %v2519, 1.442695
      %v2522 = vpow.pop %v2521
      %v2523 = vmul.f32 %v2520, 1.442695
      %v2524 = vpow.pop %v2523
      %s2525 = smul.u32 %s2514, 16
      %s2526 = scalar_lea.vmem [#allocation5], %s2525
      %2527 = vst [vmem:[%s2526] sm:$0xff] %v2522
      %2528 = vst [vmem:[%s2526 + $0x8] sm:$0xff] %v2524
      %v2529 = vlaneseq
      %v2530 = vshrl.u32 %v2529, 7
      %v2531 = vsub.s32 7, %v2530
      %v2532 = vrot.slane %v2176, %v2531
      %v2533 = vsel %vm2161, %v2532, 0.0
      %v2534 = vsel %vm2162, %v2532, 0.0
      %v2535 = vsel %vm2115, %v2533, 0.0
      %2536 = vadd.xlane.f32.xlu0 %v2535
      %v2537 = vpop.xlane.xlu0 %2536
      %v2538 = vsel %vm2115, %v2534, 0.0
      %2539 = vadd.xlane.f32.xlu0 %v2538
      %v2540 = vpop.xlane.xlu0 %2539
      %v2541 = vlaneseq
      %v2542 = vshrl.u32 %v2541, 7
      %v2543 = vsub.s32 7, %v2542
      %v2544 = vrot.slane %v2174, %v2543
      %v2545 = vmul.f32 %v2537, %v2544
      %v2546 = vmul.f32 %v2540, %v2544
      %s2547 = scalar_lea.vmem [#allocation6], %s2525
      %2548 = vst [vmem:[%s2547] sm:$0xff] %v2545
      %2549 = vst [vmem:[%s2547 + $0x8] sm:$0xff] %v2546
      %v2550 = vlaneseq
      %v2551 = vshrl.u32 %v2550, 7
      %v2552 = vsub.s32 7, %v2551
      %v2553 = vrot.slane %v2178, %v2552
      %v2554 = vsel %vm2161, %v2553, 0.0
      %v2555 = vsel %vm2162, %v2553, 0.0
      %v2556 = vsel %vm2115, %v2554, 0.0
      %2557 = vadd.xlane.f32.xlu0 %v2556
      %v2558 = vpop.xlane.xlu0 %2557
      %v2559 = vsel %vm2115, %v2555, 0.0
      %2560 = vadd.xlane.f32.xlu0 %v2559
      %v2561 = vpop.xlane.xlu0 %2560
      %vm2562 = vcmask 7168
      %v2563 = vsel %vm2562, %v2222, %v2270
      %v2564 = vsel %vm2562, %v2225, %v2273
      %vm2565 = vcmask 15360
      %v2566 = vsel %vm2565, %v2563, %v2318
      %v2567 = vsel %vm2565, %v2564, %v2321
      %vm2568 = vcmask 23552
      %v2569 = vsel %vm2568, %v2566, %v2366
      %v2570 = vsel %vm2568, %v2567, %v2369
      %vm2571 = vcmask 31744
      %v2572 = vsel %vm2571, %v2569, %v2414
      %v2573 = vsel %vm2571, %v2570, %v2417
      %vm2574 = vcmask 39936
      %v2575 = vsel %vm2574, %v2572, %v2462
      %v2576 = vsel %vm2574, %v2573, %v2465
      %vm2577 = vcmask 48128
      %v2578 = vsel %vm2577, %v2575, %v2510
      %v2579 = vsel %vm2577, %v2576, %v2513
      %vm2580 = vcmask 56320
      %v2581 = vsel %vm2580, %v2578, %v2558
      %v2582 = vsel %vm2580, %v2579, %v2561
      %s2583 = smul.u32 %s2164, 16
      %s2584 = scalar_lea.vmem [#allocation7], %s2583
      %vm2585 = vcmask 64512
      %2586 = vst.msk [vmem:[%s2584] sm:$0xff] %vm2585, %v2581
      %2587 = vst.msk [vmem:[%s2584 + $0x8] sm:$0xff] %vm2585, %v2582
    $region78: #{_forward.1} parent=1 // loop_footer
      %s2168 = sadd.s32 1, %s2164
    $region79: #{_forward.1} parent=1 // loop_footer_branch
      %2163 = sbr.rel target = $region75
    $region80: #{_forward.1} parent=1 // loop_exit
      _
    loop: start=0, step=1, limit=16
    $region81: #{_forward.1} parent=1 // loop_pre_header
      _
    $region82: #{_forward.1} parent=1 // loop_header
      %s2589 = sphi 0, %s2593
      %p2590 = scmp.ge.s32.totalorder %s2589, 16
      %v2594 = vphi 0.0, %v2815
      %v2595 = vphi 0.0, %v2816
    $region83: #{_forward.1} parent=1 // loop_header_branch
      %2592 = sbr.rel (%p2590) target = $region87
    $region84: #{_forward.1} parent=1 // loop_body
      %s2596 = smul.u32 %s2589, 8
      %s2597 = smul.u32 %s2589, 16
      %s2598 = scalar_lea.vmem [#allocation7], %s2597
      %v2599 = vld [vmem:[%s2598] sm:$0xff]
      %v2600 = vld [vmem:[%s2598 + $0x8] sm:$0xff]
      %s2601 = smul.u32 %s2596, 16
      %s2602 = scalar_lea.vmem [#allocation5], %s2601
      %v2603 = vld [vmem:[%s2602] sm:$0xff]
      %v2604 = vld [vmem:[%s2602 + $0x8] sm:$0xff]
      %v2605 = vmul.f32 %v2603, %v2594
      %v2606 = vmul.f32 %v2604, %v2595
      %s2607 = scalar_lea.vmem [#allocation6], %s2601
      %v2608 = vld [vmem:[%s2607] sm:$0xff]
      %v2609 = vld [vmem:[%s2607 + $0x8] sm:$0xff]
      %v2610 = vadd.f32 %v2605, %v2608
      %v2611 = vadd.f32 %v2606, %v2609
      %2613 = vset.pattern.permute.xlu0 0
      %2614 = vperm.xlu0 %2613, %v2599
      %v2615 = vpop.permute.xlu0 %2614
      %2618 = vset.pattern.permute.xlu0 0
      %2619 = vperm.xlu0 %2618, %v2600
      %v2620 = vpop.permute.xlu0 %2619
      %v2622 = vmul.f32 %v2615, %v2610
      %v2623 = vmul.f32 %v2620, %v2611
      %v2624 = vadd.f32 %v2622, %v2623
      %v2625 = vrot.slane %v2624, 4
      %v2626 = vadd.f32 %v2624, %v2625
      %v2627 = vrot.slane %v2626, 2
      %v2628 = vadd.f32 %v2626, %v2627
      %v2629 = vrot.slane %v2628, 1
      %v2630 = vadd.f32 %v2628, %v2629
      %s2631 = sadd.s32 %s2596, 1
      %s2632 = smul.u32 %s2631, 16
      %s2633 = scalar_lea.vmem [#allocation5], %s2632
      %v2634 = vld [vmem:[%s2633] sm:$0xff]
      %v2635 = vld [vmem:[%s2633 + $0x8] sm:$0xff]
      %v2636 = vmul.f32 %v2634, %v2610
      %v2637 = vmul.f32 %v2635, %v2611
      %s2638 = scalar_lea.vmem [#allocation6], %s2632
      %v2639 = vld [vmem:[%s2638] sm:$0xff]
      %v2640 = vld [vmem:[%s2638 + $0x8] sm:$0xff]
      %v2641 = vadd.f32 %v2636, %v2639
      %v2642 = vadd.f32 %v2637, %v2640
      %2643 = vset.pattern.permute.xlu0 1
      %2644 = vperm.xlu0 %2643, %v2599
      %v2645 = vpop.permute.xlu0 %2644
      %2647 = vset.pattern.permute.xlu0 1
      %2648 = vperm.xlu0 %2647, %v2600
      %v2649 = vpop.permute.xlu0 %2648
      %v2651 = vmul.f32 %v2645, %v2641
      %v2652 = vmul.f32 %v2649, %v2642
      %v2653 = vadd.f32 %v2651, %v2652
      %v2654 = vrot.slane %v2653, 4
      %v2655 = vadd.f32 %v2653, %v2654
      %v2656 = vrot.slane %v2655, 2
      %v2657 = vadd.f32 %v2655, %v2656
      %v2658 = vrot.slane %v2657, 1
      %v2659 = vadd.f32 %v2657, %v2658
      %s2660 = sadd.s32 %s2596, 2
      %s2661 = smul.u32 %s2660, 16
      %s2662 = scalar_lea.vmem [#allocation5], %s2661
      %v2663 = vld [vmem:[%s2662] sm:$0xff]
      %v2664 = vld [vmem:[%s2662 + $0x8] sm:$0xff]
      %v2665 = vmul.f32 %v2663, %v2641
      %v2666 = vmul.f32 %v2664, %v2642
      %s2667 = scalar_lea.vmem [#allocation6], %s2661
      %v2668 = vld [vmem:[%s2667] sm:$0xff]
      %v2669 = vld [vmem:[%s2667 + $0x8] sm:$0xff]
      %v2670 = vadd.f32 %v2665, %v2668
      %v2671 = vadd.f32 %v2666, %v2669
      %2672 = vset.pattern.permute.xlu0 2
      %2673 = vperm.xlu0 %2672, %v2599
      %v2674 = vpop.permute.xlu0 %2673
      %2676 = vset.pattern.permute.xlu0 2
      %2677 = vperm.xlu0 %2676, %v2600
      %v2678 = vpop.permute.xlu0 %2677
      %v2680 = vmul.f32 %v2674, %v2670
      %v2681 = vmul.f32 %v2678, %v2671
      %v2682 = vadd.f32 %v2680, %v2681
      %v2683 = vrot.slane %v2682, 4
      %v2684 = vadd.f32 %v2682, %v2683
      %v2685 = vrot.slane %v2684, 2
      %v2686 = vadd.f32 %v2684, %v2685
      %v2687 = vrot.slane %v2686, 1
      %v2688 = vadd.f32 %v2686, %v2687
      %s2689 = sadd.s32 %s2596, 3
      %s2690 = smul.u32 %s2689, 16
      %s2691 = scalar_lea.vmem [#allocation5], %s2690
      %v2692 = vld [vmem:[%s2691] sm:$0xff]
      %v2693 = vld [vmem:[%s2691 + $0x8] sm:$0xff]
      %v2694 = vmul.f32 %v2692, %v2670
      %v2695 = vmul.f32 %v2693, %v2671
      %s2696 = scalar_lea.vmem [#allocation6], %s2690
      %v2697 = vld [vmem:[%s2696] sm:$0xff]
      %v2698 = vld [vmem:[%s2696 + $0x8] sm:$0xff]
      %v2699 = vadd.f32 %v2694, %v2697
      %v2700 = vadd.f32 %v2695, %v2698
      %2701 = vset.pattern.permute.xlu0 3
      %2702 = vperm.xlu0 %2701, %v2599
      %v2703 = vpop.permute.xlu0 %2702
      %2705 = vset.pattern.permute.xlu0 3
      %2706 = vperm.xlu0 %2705, %v2600
      %v2707 = vpop.permute.xlu0 %2706
      %v2709 = vmul.f32 %v2703, %v2699
      %v2710 = vmul.f32 %v2707, %v2700
      %v2711 = vadd.f32 %v2709, %v2710
      %v2712 = vrot.slane %v2711, 4
      %v2713 = vadd.f32 %v2711, %v2712
      %v2714 = vrot.slane %v2713, 2
      %v2715 = vadd.f32 %v2713, %v2714
      %v2716 = vrot.slane %v2715, 1
      %v2717 = vadd.f32 %v2715, %v2716
      %s2718 = sadd.s32 %s2596, 4
      %s2719 = smul.u32 %s2718, 16
      %s2720 = scalar_lea.vmem [#allocation5], %s2719
      %v2721 = vld [vmem:[%s2720] sm:$0xff]
      %v2722 = vld [vmem:[%s2720 + $0x8] sm:$0xff]
      %v2723 = vmul.f32 %v2721, %v2699
      %v2724 = vmul.f32 %v2722, %v2700
      %s2725 = scalar_lea.vmem [#allocation6], %s2719
      %v2726 = vld [vmem:[%s2725] sm:$0xff]
      %v2727 = vld [vmem:[%s2725 + $0x8] sm:$0xff]
      %v2728 = vadd.f32 %v2723, %v2726
      %v2729 = vadd.f32 %v2724, %v2727
      %2730 = vset.pattern.permute.xlu0 4
      %2731 = vperm.xlu0 %2730, %v2599
      %v2732 = vpop.permute.xlu0 %2731
      %2734 = vset.pattern.permute.xlu0 4
      %2735 = vperm.xlu0 %2734, %v2600
      %v2736 = vpop.permute.xlu0 %2735
      %v2738 = vmul.f32 %v2732, %v2728
      %v2739 = vmul.f32 %v2736, %v2729
      %v2740 = vadd.f32 %v2738, %v2739
      %v2741 = vrot.slane %v2740, 4
      %v2742 = vadd.f32 %v2740, %v2741
      %v2743 = vrot.slane %v2742, 2
      %v2744 = vadd.f32 %v2742, %v2743
      %v2745 = vrot.slane %v2744, 1
      %v2746 = vadd.f32 %v2744, %v2745
      %s2747 = sadd.s32 %s2596, 5
      %s2748 = smul.u32 %s2747, 16
      %s2749 = scalar_lea.vmem [#allocation5], %s2748
      %v2750 = vld [vmem:[%s2749] sm:$0xff]
      %v2751 = vld [vmem:[%s2749 + $0x8] sm:$0xff]
      %v2752 = vmul.f32 %v2750, %v2728
      %v2753 = vmul.f32 %v2751, %v2729
      %s2754 = scalar_lea.vmem [#allocation6], %s2748
      %v2755 = vld [vmem:[%s2754] sm:$0xff]
      %v2756 = vld [vmem:[%s2754 + $0x8] sm:$0xff]
      %v2757 = vadd.f32 %v2752, %v2755
      %v2758 = vadd.f32 %v2753, %v2756
      %2759 = vset.pattern.permute.xlu0 5
      %2760 = vperm.xlu0 %2759, %v2599
      %v2761 = vpop.permute.xlu0 %2760
      %2763 = vset.pattern.permute.xlu0 5
      %2764 = vperm.xlu0 %2763, %v2600
      %v2765 = vpop.permute.xlu0 %2764
      %v2767 = vmul.f32 %v2761, %v2757
      %v2768 = vmul.f32 %v2765, %v2758
      %v2769 = vadd.f32 %v2767, %v2768
      %v2770 = vrot.slane %v2769, 4
      %v2771 = vadd.f32 %v2769, %v2770
      %v2772 = vrot.slane %v2771, 2
      %v2773 = vadd.f32 %v2771, %v2772
      %v2774 = vrot.slane %v2773, 1
      %v2775 = vadd.f32 %v2773, %v2774
      %s2776 = sadd.s32 %s2596, 6
      %s2777 = smul.u32 %s2776, 16
      %s2778 = scalar_lea.vmem [#allocation5], %s2777
      %v2779 = vld [vmem:[%s2778] sm:$0xff]
      %v2780 = vld [vmem:[%s2778 + $0x8] sm:$0xff]
      %v2781 = vmul.f32 %v2779, %v2757
      %v2782 = vmul.f32 %v2780, %v2758
      %s2783 = scalar_lea.vmem [#allocation6], %s2777
      %v2784 = vld [vmem:[%s2783] sm:$0xff]
      %v2785 = vld [vmem:[%s2783 + $0x8] sm:$0xff]
      %v2786 = vadd.f32 %v2781, %v2784
      %v2787 = vadd.f32 %v2782, %v2785
      %2788 = vset.pattern.permute.xlu0 6
      %2789 = vperm.xlu0 %2788, %v2599
      %v2790 = vpop.permute.xlu0 %2789
      %2792 = vset.pattern.permute.xlu0 6
      %2793 = vperm.xlu0 %2792, %v2600
      %v2794 = vpop.permute.xlu0 %2793
      %v2796 = vmul.f32 %v2790, %v2786
      %v2797 = vmul.f32 %v2794, %v2787
      %v2798 = vadd.f32 %v2796, %v2797
      %v2799 = vrot.slane %v2798, 4
      %v2800 = vadd.f32 %v2798, %v2799
      %v2801 = vrot.slane %v2800, 2
      %v2802 = vadd.f32 %v2800, %v2801
      %v2803 = vrot.slane %v2802, 1
      %v2804 = vadd.f32 %v2802, %v2803
      %s2805 = sadd.s32 %s2596, 7
      %s2806 = smul.u32 %s2805, 16
      %s2807 = scalar_lea.vmem [#allocation5], %s2806
      %v2808 = vld [vmem:[%s2807] sm:$0xff]
      %v2809 = vld [vmem:[%s2807 + $0x8] sm:$0xff]
      %v2810 = vmul.f32 %v2808, %v2786
      %v2811 = vmul.f32 %v2809, %v2787
      %s2812 = scalar_lea.vmem [#allocation6], %s2806
      %v2813 = vld [vmem:[%s2812] sm:$0xff]
      %v2814 = vld [vmem:[%s2812 + $0x8] sm:$0xff]
      %v2815 = vadd.f32 %v2810, %v2813
      %v2816 = vadd.f32 %v2811, %v2814
      %2817 = vset.pattern.permute.xlu0 7
      %2818 = vperm.xlu0 %2817, %v2599
      %v2819 = vpop.permute.xlu0 %2818
      %2821 = vset.pattern.permute.xlu0 7
      %2822 = vperm.xlu0 %2821, %v2600
      %v2823 = vpop.permute.xlu0 %2822
      %v2825 = vmul.f32 %v2819, %v2815
      %v2826 = vmul.f32 %v2823, %v2816
      %v2827 = vadd.f32 %v2825, %v2826
      %v2828 = vrot.slane %v2827, 4
      %v2829 = vadd.f32 %v2827, %v2828
      %v2830 = vrot.slane %v2829, 2
      %v2831 = vadd.f32 %v2829, %v2830
      %v2832 = vrot.slane %v2831, 1
      %v2833 = vadd.f32 %v2831, %v2832
      %v2834 = vsel %vm291, %v2630, %v2659
      %v2835 = vsel %vm1113, %v2834, %v2688
      %v2836 = vsel %vm1027, %v2835, %v2717
      %vm2837 = vcmask 1043456
      %v2838 = vsel %vm2837, %v2836, %v2746
      %vm2839 = vcmask 1044480
      %v2840 = vsel %vm2839, %v2838, %v2775
      %vm2841 = vcmask 1045504
      %v2842 = vsel %vm2841, %v2840, %v2804
      %v2843 = vsel %vm420, %v2842, %v2833
      %s2844 = scalar_lea.vmem [#allocation8], %s2596
      %2845 = vst [vmem:[%s2844] sm:$0xff] %v2843
    $region85: #{_forward.1} parent=1 // loop_footer
      %s2593 = sadd.s32 1, %s2589
    $region86: #{_forward.1} parent=1 // loop_footer_branch
      %2588 = sbr.rel target = $region82
    $region87: #{_forward.1} parent=1 // loop_exit
      _
    %v2846 = vld [vmem:[#allocation8] sm:$0xff]
    %v2847 = vld [vmem:[#allocation8 + $0x8] sm:$0xff]
    %v2848 = vld [vmem:[#allocation8 + $0x10] sm:$0xff]
    %v2849 = vld [vmem:[#allocation8 + $0x18] sm:$0xff]
    %v2850 = vld [vmem:[#allocation8 + $0x20] sm:$0xff]
    %v2851 = vld [vmem:[#allocation8 + $0x28] sm:$0xff]
    %v2852 = vld [vmem:[#allocation8 + $0x30] sm:$0xff]
    %v2853 = vld [vmem:[#allocation8 + $0x38] sm:$0xff]
    %v2854 = vld [vmem:[#allocation8 + $0x40] sm:$0xff]
    %v2855 = vld [vmem:[#allocation8 + $0x48] sm:$0xff]
    %v2856 = vld [vmem:[#allocation8 + $0x50] sm:$0xff]
    %v2857 = vld [vmem:[#allocation8 + $0x58] sm:$0xff]
    %v2858 = vld [vmem:[#allocation8 + $0x60] sm:$0xff]
    %v2859 = vld [vmem:[#allocation8 + $0x68] sm:$0xff]
    %v2860 = vld [vmem:[#allocation8 + $0x70] sm:$0xff]
    %v2861 = vld [vmem:[#allocation8 + $0x78] sm:$0xff]
    %v2862 = vld [vmem:[#allocation9] sm:$0xff]
    %v2863 = vld [vmem:[#allocation9 + $0x8] sm:$0xff]
    %v2864 = vld [vmem:[#allocation9 + $0x10] sm:$0xff]
    %v2865 = vld [vmem:[#allocation9 + $0x18] sm:$0xff]
    %v2866 = vld [vmem:[#allocation9 + $0x20] sm:$0xff]
    %v2867 = vld [vmem:[#allocation9 + $0x28] sm:$0xff]
    %v2868 = vld [vmem:[#allocation9 + $0x30] sm:$0xff]
    %v2869 = vld [vmem:[#allocation9 + $0x38] sm:$0xff]
    %v2870 = vld [vmem:[#allocation9 + $0x40] sm:$0xff]
    %v2871 = vld [vmem:[#allocation9 + $0x48] sm:$0xff]
    %v2872 = vld [vmem:[#allocation9 + $0x50] sm:$0xff]
    %v2873 = vld [vmem:[#allocation9 + $0x58] sm:$0xff]
    %v2874 = vld [vmem:[#allocation9 + $0x60] sm:$0xff]
    %v2875 = vld [vmem:[#allocation9 + $0x68] sm:$0xff]
    %v2876 = vld [vmem:[#allocation9 + $0x70] sm:$0xff]
    %v2877 = vld [vmem:[#allocation9 + $0x78] sm:$0xff]
    %v2878 = vld [vmem:[%s12] sm:$0x1]
    %v2880 = vlaneseq
    %v2881 = vshrl.u32 %v2880, 7
    %v2882 = vsub.s32 0, %v2881
    %v2883 = vrot.slane %v2878, %v2882
    %v2885 = vmul.f32 %v2862, %v2883
    %v2886 = vmul.f32 %v2863, %v2883
    %v2887 = vmul.f32 %v2864, %v2883
    %v2888 = vmul.f32 %v2865, %v2883
    %v2889 = vmul.f32 %v2866, %v2883
    %v2890 = vmul.f32 %v2867, %v2883
    %v2891 = vmul.f32 %v2868, %v2883
    %v2892 = vmul.f32 %v2869, %v2883
    %v2893 = vmul.f32 %v2870, %v2883
    %v2894 = vmul.f32 %v2871, %v2883
    %v2895 = vmul.f32 %v2872, %v2883
    %v2896 = vmul.f32 %v2873, %v2883
    %v2897 = vmul.f32 %v2874, %v2883
    %v2898 = vmul.f32 %v2875, %v2883
    %v2899 = vmul.f32 %v2876, %v2883
    %v2900 = vmul.f32 %v2877, %v2883
    %v2901 = vadd.f32 %v2846, %v2885
    %v2902 = vadd.f32 %v2847, %v2886
    %v2903 = vadd.f32 %v2848, %v2887
    %v2904 = vadd.f32 %v2849, %v2888
    %v2905 = vadd.f32 %v2850, %v2889
    %v2906 = vadd.f32 %v2851, %v2890
    %v2907 = vadd.f32 %v2852, %v2891
    %v2908 = vadd.f32 %v2853, %v2892
    %v2909 = vadd.f32 %v2854, %v2893
    %v2910 = vadd.f32 %v2855, %v2894
    %v2911 = vadd.f32 %v2856, %v2895
    %v2912 = vadd.f32 %v2857, %v2896
    %v2913 = vadd.f32 %v2858, %v2897
    %v2914 = vadd.f32 %v2859, %v2898
    %v2915 = vadd.f32 %v2860, %v2899
    %v2916 = vadd.f32 %v2861, %v2900
    %v2917 = vld [vmem:[#allocation10] sm:$0xff]
    %v2918 = vld [vmem:[#allocation10 + $0x8] sm:$0xff]
    %v2919 = vld [vmem:[#allocation10 + $0x10] sm:$0xff]
    %v2920 = vld [vmem:[#allocation10 + $0x18] sm:$0xff]
    %v2921 = vld [vmem:[#allocation10 + $0x20] sm:$0xff]
    %v2922 = vld [vmem:[#allocation10 + $0x28] sm:$0xff]
    %v2923 = vld [vmem:[#allocation10 + $0x30] sm:$0xff]
    %v2924 = vld [vmem:[#allocation10 + $0x38] sm:$0xff]
    %v2925 = vld [vmem:[#allocation10 + $0x40] sm:$0xff]
    %v2926 = vld [vmem:[#allocation10 + $0x48] sm:$0xff]
    %v2927 = vld [vmem:[#allocation10 + $0x50] sm:$0xff]
    %v2928 = vld [vmem:[#allocation10 + $0x58] sm:$0xff]
    %v2929 = vld [vmem:[#allocation10 + $0x60] sm:$0xff]
    %v2930 = vld [vmem:[#allocation10 + $0x68] sm:$0xff]
    %v2931 = vld [vmem:[#allocation10 + $0x70] sm:$0xff]
    %v2932 = vld [vmem:[#allocation10 + $0x78] sm:$0xff]
    %v2933 = vsub.f32 0.0, %v2917
    %v2934 = vsub.f32 0.0, %v2918
    %v2935 = vsub.f32 0.0, %v2919
    %v2936 = vsub.f32 0.0, %v2920
    %v2937 = vsub.f32 0.0, %v2921
    %v2938 = vsub.f32 0.0, %v2922
    %v2939 = vsub.f32 0.0, %v2923
    %v2940 = vsub.f32 0.0, %v2924
    %v2941 = vsub.f32 0.0, %v2925
    %v2942 = vsub.f32 0.0, %v2926
    %v2943 = vsub.f32 0.0, %v2927
    %v2944 = vsub.f32 0.0, %v2928
    %v2945 = vsub.f32 0.0, %v2929
    %v2946 = vsub.f32 0.0, %v2930
    %v2947 = vsub.f32 0.0, %v2931
    %v2948 = vsub.f32 0.0, %v2932
    %v2949 = vmul.f32 %v2933, 1.442695
    %v2950 = vpow.pop %v2949
    %v2951 = vmul.f32 %v2934, 1.442695
    %v2952 = vpow.pop %v2951
    %v2953 = vmul.f32 %v2935, 1.442695
    %v2954 = vpow.pop %v2953
    %v2955 = vmul.f32 %v2936, 1.442695
    %v2956 = vpow.pop %v2955
    %v2957 = vmul.f32 %v2937, 1.442695
    %v2958 = vpow.pop %v2957
    %v2959 = vmul.f32 %v2938, 1.442695
    %v2960 = vpow.pop %v2959
    %v2961 = vmul.f32 %v2939, 1.442695
    %v2962 = vpow.pop %v2961
    %v2963 = vmul.f32 %v2940, 1.442695
    %v2964 = vpow.pop %v2963
    %v2965 = vmul.f32 %v2941, 1.442695
    %v2966 = vpow.pop %v2965
    %v2967 = vmul.f32 %v2942, 1.442695
    %v2968 = vpow.pop %v2967
    %v2969 = vmul.f32 %v2943, 1.442695
    %v2970 = vpow.pop %v2969
    %v2971 = vmul.f32 %v2944, 1.442695
    %v2972 = vpow.pop %v2971
    %v2973 = vmul.f32 %v2945, 1.442695
    %v2974 = vpow.pop %v2973
    %v2975 = vmul.f32 %v2946, 1.442695
    %v2976 = vpow.pop %v2975
    %v2977 = vmul.f32 %v2947, 1.442695
    %v2978 = vpow.pop %v2977
    %v2979 = vmul.f32 %v2948, 1.442695
    %v2980 = vpow.pop %v2979
    %v2981 = vadd.f32 %v2950, 1.0
    %v2982 = vadd.f32 %v2952, 1.0
    %v2983 = vadd.f32 %v2954, 1.0
    %v2984 = vadd.f32 %v2956, 1.0
    %v2985 = vadd.f32 %v2958, 1.0
    %v2986 = vadd.f32 %v2960, 1.0
    %v2987 = vadd.f32 %v2962, 1.0
    %v2988 = vadd.f32 %v2964, 1.0
    %v2989 = vadd.f32 %v2966, 1.0
    %v2990 = vadd.f32 %v2968, 1.0
    %v2991 = vadd.f32 %v2970, 1.0
    %v2992 = vadd.f32 %v2972, 1.0
    %v2993 = vadd.f32 %v2974, 1.0
    %v2994 = vadd.f32 %v2976, 1.0
    %v2995 = vadd.f32 %v2978, 1.0
    %v2996 = vadd.f32 %v2980, 1.0
    %v2997 = vrcp.pop %v2981
    %v2998 = vmul.f32 1.0, %v2997
    %v2999 = vrcp.pop %v2982
    %v3000 = vmul.f32 1.0, %v2999
    %v3001 = vrcp.pop %v2983
    %v3002 = vmul.f32 1.0, %v3001
    %v3003 = vrcp.pop %v2984
    %v3004 = vmul.f32 1.0, %v3003
    %v3005 = vrcp.pop %v2985
    %v3006 = vmul.f32 1.0, %v3005
    %v3007 = vrcp.pop %v2986
    %v3008 = vmul.f32 1.0, %v3007
    %v3009 = vrcp.pop %v2987
    %v3010 = vmul.f32 1.0, %v3009
    %v3011 = vrcp.pop %v2988
    %v3012 = vmul.f32 1.0, %v3011
    %v3013 = vrcp.pop %v2989
    %v3014 = vmul.f32 1.0, %v3013
    %v3015 = vrcp.pop %v2990
    %v3016 = vmul.f32 1.0, %v3015
    %v3017 = vrcp.pop %v2991
    %v3018 = vmul.f32 1.0, %v3017
    %v3019 = vrcp.pop %v2992
    %v3020 = vmul.f32 1.0, %v3019
    %v3021 = vrcp.pop %v2993
    %v3022 = vmul.f32 1.0, %v3021
    %v3023 = vrcp.pop %v2994
    %v3024 = vmul.f32 1.0, %v3023
    %v3025 = vrcp.pop %v2995
    %v3026 = vmul.f32 1.0, %v3025
    %v3027 = vrcp.pop %v2996
    %v3028 = vmul.f32 1.0, %v3027
    %v3029 = vmul.f32 %v2917, %v2998
    %v3030 = vmul.f32 %v2918, %v3000
    %v3031 = vmul.f32 %v2919, %v3002
    %v3032 = vmul.f32 %v2920, %v3004
    %v3033 = vmul.f32 %v2921, %v3006
    %v3034 = vmul.f32 %v2922, %v3008
    %v3035 = vmul.f32 %v2923, %v3010
    %v3036 = vmul.f32 %v2924, %v3012
    %v3037 = vmul.f32 %v2925, %v3014
    %v3038 = vmul.f32 %v2926, %v3016
    %v3039 = vmul.f32 %v2927, %v3018
    %v3040 = vmul.f32 %v2928, %v3020
    %v3041 = vmul.f32 %v2929, %v3022
    %v3042 = vmul.f32 %v2930, %v3024
    %v3043 = vmul.f32 %v2931, %v3026
    %v3044 = vmul.f32 %v2932, %v3028
    %v3045 = vmul.f32 %v2901, %v3029
    %v3046 = vmul.f32 %v2902, %v3030
    %v3047 = vmul.f32 %v2903, %v3031
    %v3048 = vmul.f32 %v2904, %v3032
    %v3049 = vmul.f32 %v2905, %v3033
    %v3050 = vmul.f32 %v2906, %v3034
    %v3051 = vmul.f32 %v2907, %v3035
    %v3052 = vmul.f32 %v2908, %v3036
    %v3053 = vmul.f32 %v2909, %v3037
    %v3054 = vmul.f32 %v2910, %v3038
    %v3055 = vmul.f32 %v2911, %v3039
    %v3056 = vmul.f32 %v2912, %v3040
    %v3057 = vmul.f32 %v2913, %v3041
    %v3058 = vmul.f32 %v2914, %v3042
    %v3059 = vmul.f32 %v2915, %v3043
    %v3060 = vmul.f32 %v2916, %v3044
    %v3061 = vld [vmem:[%s13] sm:$0xf]
    %v3062 = vld [vmem:[%s13 + $0x4] sm:$0xf]
    %v3063 = vld [vmem:[%s13 + $0x8] sm:$0xf]
    %v3064 = vld [vmem:[%s13 + $0xc] sm:$0xf]
    %v3065 = vld [vmem:[%s13 + $0x10] sm:$0xf]
    %v3066 = vld [vmem:[%s13 + $0x14] sm:$0xf]
    %v3067 = vld [vmem:[%s13 + $0x18] sm:$0xf]
    %v3068 = vld [vmem:[%s13 + $0x1c] sm:$0xf]
    %v3069 = vld [vmem:[%s13 + $0x20] sm:$0xf]
    %v3070 = vld [vmem:[%s13 + $0x24] sm:$0xf]
    %v3071 = vld [vmem:[%s13 + $0x28] sm:$0xf]
    %v3072 = vld [vmem:[%s13 + $0x2c] sm:$0xf]
    %v3073 = vld [vmem:[%s13 + $0x30] sm:$0xf]
    %v3074 = vld [vmem:[%s13 + $0x34] sm:$0xf]
    %v3075 = vld [vmem:[%s13 + $0x38] sm:$0xf]
    %v3076 = vld [vmem:[%s13 + $0x3c] sm:$0xf]
    %v3077 = vpack.c.bf16 %v3046, %v3045
    %v3078 = vpack.c.bf16 %v3048, %v3047
    %v3079 = vpack.c.bf16 %v3050, %v3049
    %v3080 = vpack.c.bf16 %v3052, %v3051
    %v3081 = vpack.c.bf16 %v3054, %v3053
    %v3082 = vpack.c.bf16 %v3056, %v3055
    %v3083 = vpack.c.bf16 %v3058, %v3057
    %v3084 = vpack.c.bf16 %v3060, %v3059
    %v3085 = vld [vmem:[#allocation11] sm:$0xff]
    %v3086 = vld [vmem:[#allocation11 + $0x8] sm:$0xff]
    %v3087 = vld [vmem:[#allocation11 + $0x10] sm:$0xff]
    %v3088 = vld [vmem:[#allocation11 + $0x18] sm:$0xff]
    %v3089 = vld [vmem:[#allocation11 + $0x20] sm:$0xff]
    %v3090 = vld [vmem:[#allocation11 + $0x28] sm:$0xff]
    %v3091 = vld [vmem:[#allocation11 + $0x30] sm:$0xff]
    %v3092 = vld [vmem:[#allocation11 + $0x38] sm:$0xff]
    %v3093 = vld [vmem:[#allocation11 + $0x40] sm:$0xff]
    %v3094 = vld [vmem:[#allocation11 + $0x48] sm:$0xff]
    %v3095 = vld [vmem:[#allocation11 + $0x50] sm:$0xff]
    %v3096 = vld [vmem:[#allocation11 + $0x58] sm:$0xff]
    %v3097 = vld [vmem:[#allocation11 + $0x60] sm:$0xff]
    %v3098 = vld [vmem:[#allocation11 + $0x68] sm:$0xff]
    %v3099 = vld [vmem:[#allocation11 + $0x70] sm:$0xff]
    %v3100 = vld [vmem:[#allocation11 + $0x78] sm:$0xff]
    %v3117 = vunpack.c.l.b16 %v3061
    %v3118 = vunpack.c.l.b16 %v3062
    %v3119 = vunpack.c.l.b16 %v3063
    %v3120 = vunpack.c.l.b16 %v3064
    %v3121 = vunpack.c.l.b16 %v3065
    %v3122 = vunpack.c.l.b16 %v3066
    %v3123 = vunpack.c.l.b16 %v3067
    %v3124 = vunpack.c.l.b16 %v3068
    %v3125 = vunpack.c.l.b16 %v3069
    %v3126 = vunpack.c.l.b16 %v3070
    %v3127 = vunpack.c.l.b16 %v3071
    %v3128 = vunpack.c.l.b16 %v3072
    %v3129 = vunpack.c.l.b16 %v3073
    %v3130 = vunpack.c.l.b16 %v3074
    %v3131 = vunpack.c.l.b16 %v3075
    %v3132 = vunpack.c.l.b16 %v3076
    %v3133 = vpack.c.b16 %v3118, %v3117
    %v3134 = vpack.c.b16 %v3120, %v3119
    %v3135 = vpack.c.b16 %v3122, %v3121
    %v3136 = vpack.c.b16 %v3124, %v3123
    %v3137 = vpack.c.b16 %v3126, %v3125
    %v3138 = vpack.c.b16 %v3128, %v3127
    %v3139 = vpack.c.b16 %v3130, %v3129
    %v3140 = vpack.c.b16 %v3132, %v3131
    %3149 = vmatprep.subr.bf16.mxu0 0
    %3150 = vmatpush1.bf16.msra.mxu0 %v3133
    %3151 = vmatprep.subr.bf16.mxu0 0
    %3152 = vmatpush1.bf16.msra.mxu0 %v3134
    %3153 = vmatprep.subr.bf16.mxu0 0
    %3154 = vmatpush1.bf16.msra.mxu0 %v3135
    %3155 = vmatprep.subr.bf16.mxu0 0
    %3156 = vmatpush1.bf16.msra.mxu0 %v3136
    %3157 = vmatprep.subr.bf16.mxu0 0
    %3158 = vmatpush1.bf16.msra.mxu0 %v3137
    %3159 = vmatprep.subr.bf16.mxu0 0
    %3160 = vmatpush1.bf16.msra.mxu0 %v3138
    %3161 = vmatprep.subr.bf16.mxu0 0
    %3162 = vmatpush1.bf16.msra.mxu0 %v3139
    %3163 = vmatprep.subr.bf16.mxu0 0
    %3164 = vmatpush1.bf16.msra.mxu0 %v3140
    %3165 = vmatprep.subr.bf16.mxu0 0
    %3166 = vmatpush1.bf16.msra.mxu0 0
    %3167 = vmatprep.subr.bf16.mxu0 0
    %3168 = vmatpush1.bf16.msra.mxu0 0
    %3169 = vmatprep.subr.bf16.mxu0 0
    %3170 = vmatpush1.bf16.msra.mxu0 0
    %3171 = vmatprep.subr.bf16.mxu0 0
    %3172 = vmatpush1.bf16.msra.mxu0 0
    %3173 = vmatprep.subr.bf16.mxu0 0
    %3174 = vmatpush1.bf16.msra.mxu0 0
    %3175 = vmatprep.subr.bf16.mxu0 0
    %3176 = vmatpush1.bf16.msra.mxu0 0
    %3177 = vmatprep.subr.bf16.mxu0 0
    %3178 = vmatpush1.bf16.msra.mxu0 0
    %3179 = vmatprep.subr.bf16.mxu0 0
    %3180 = vmatpush1.bf16.msra.mxu0 0
    %3181 = vmatprep.mubr.bf16.mxu0 0
    %3182 = vmatmul.mubr.bf16.gmra.mrb[0].mxu0 %v3077
    %v3183 = vpop.f32.mrb[0].mxu0
    %v3184 = vadd.f32 %v3085, %v3183
    %v3185 = vpop.f32.mrb[0].mxu0
    %v3186 = vpop.f32.mrb[0].mxu0
    %v3187 = vadd.f32 %v3086, %v3186
    %v3188 = vpop.f32.mrb[0].mxu0
    %3189 = vmatprep.mubr.bf16.mxu0 0
    %3190 = vmatmul.mubr.bf16.gmra.mrb[0].mxu0 %v3078
    %v3191 = vpop.f32.mrb[0].mxu0
    %v3192 = vadd.f32 %v3087, %v3191
    %v3193 = vpop.f32.mrb[0].mxu0
    %v3194 = vpop.f32.mrb[0].mxu0
    %v3195 = vadd.f32 %v3088, %v3194
    %v3196 = vpop.f32.mrb[0].mxu0
    %3197 = vmatprep.mubr.bf16.mxu0 0
    %3198 = vmatmul.mubr.bf16.gmra.mrb[0].mxu0 %v3079
    %v3199 = vpop.f32.mrb[0].mxu0
    %v3200 = vadd.f32 %v3089, %v3199
    %v3201 = vpop.f32.mrb[0].mxu0
    %v3202 = vpop.f32.mrb[0].mxu0
    %v3203 = vadd.f32 %v3090, %v3202
    %v3204 = vpop.f32.mrb[0].mxu0
    %3205 = vmatprep.mubr.bf16.mxu0 0
    %3206 = vmatmul.mubr.bf16.gmra.mrb[0].mxu0 %v3080
    %v3207 = vpop.f32.mrb[0].mxu0
    %v3208 = vadd.f32 %v3091, %v3207
    %v3209 = vpop.f32.mrb[0].mxu0
    %v3210 = vpop.f32.mrb[0].mxu0
    %v3211 = vadd.f32 %v3092, %v3210
    %v3212 = vpop.f32.mrb[0].mxu0
    %3213 = vmatprep.mubr.bf16.mxu0 0
    %3214 = vmatmul.mubr.bf16.gmra.mrb[0].mxu0 %v3081
    %v3215 = vpop.f32.mrb[0].mxu0
    %v3216 = vadd.f32 %v3093, %v3215
    %v3217 = vpop.f32.mrb[0].mxu0
    %v3218 = vpop.f32.mrb[0].mxu0
    %v3219 = vadd.f32 %v3094, %v3218
    %v3220 = vpop.f32.mrb[0].mxu0
    %3221 = vmatprep.mubr.bf16.mxu0 0
    %3222 = vmatmul.mubr.bf16.gmra.mrb[0].mxu0 %v3082
    %v3223 = vpop.f32.mrb[0].mxu0
    %v3224 = vadd.f32 %v3095, %v3223
    %v3225 = vpop.f32.mrb[0].mxu0
    %v3226 = vpop.f32.mrb[0].mxu0
    %v3227 = vadd.f32 %v3096, %v3226
    %v3228 = vpop.f32.mrb[0].mxu0
    %3229 = vmatprep.mubr.bf16.mxu0 0
    %3230 = vmatmul.mubr.bf16.gmra.mrb[0].mxu0 %v3083
    %v3231 = vpop.f32.mrb[0].mxu0
    %v3232 = vadd.f32 %v3097, %v3231
    %v3233 = vpop.f32.mrb[0].mxu0
    %v3234 = vpop.f32.mrb[0].mxu0
    %v3235 = vadd.f32 %v3098, %v3234
    %v3236 = vpop.f32.mrb[0].mxu0
    %3237 = vmatprep.mubr.bf16.mxu0 0
    %3238 = vmatmul.mubr.bf16.gmra.mrb[0].mxu0 %v3084
    %v3239 = vpop.f32.mrb[0].mxu0
    %v3240 = vadd.f32 %v3099, %v3239
    %v3241 = vpop.f32.mrb[0].mxu0
    %v3242 = vpop.f32.mrb[0].mxu0
    %v3243 = vadd.f32 %v3100, %v3242
    %v3244 = vpop.f32.mrb[0].mxu0
    %3245 = vdwg.mxu0
    %v3246 = vld [vmem:[%s3] sm:$0x1]
    %v3247 = vld [vmem:[%s4] sm:$0x1]
    %v3248 = vsel %vm137, %v3184, 0.0
    %3249 = vadd.xlane.f32.xlu0 %v3248
    %v3250 = vpop.xlane.xlu0 %3249
    %v3251 = vsel %vm137, %v3187, 0.0
    %3252 = vadd.xlane.f32.xlu0 %v3251
    %v3253 = vpop.xlane.xlu0 %3252
    %v3254 = vsel %vm137, %v3192, 0.0
    %3255 = vadd.xlane.f32.xlu0 %v3254
    %v3256 = vpop.xlane.xlu0 %3255
    %v3257 = vsel %vm137, %v3195, 0.0
    %3258 = vadd.xlane.f32.xlu0 %v3257
    %v3259 = vpop.xlane.xlu0 %3258
    %v3260 = vsel %vm137, %v3200, 0.0
    %3261 = vadd.xlane.f32.xlu0 %v3260
    %v3262 = vpop.xlane.xlu0 %3261
    %v3263 = vsel %vm137, %v3203, 0.0
    %3264 = vadd.xlane.f32.xlu0 %v3263
    %v3265 = vpop.xlane.xlu0 %3264
    %v3266 = vsel %vm137, %v3208, 0.0
    %3267 = vadd.xlane.f32.xlu0 %v3266
    %v3268 = vpop.xlane.xlu0 %3267
    %v3269 = vsel %vm137, %v3211, 0.0
    %3270 = vadd.xlane.f32.xlu0 %v3269
    %v3271 = vpop.xlane.xlu0 %3270
    %v3272 = vsel %vm137, %v3216, 0.0
    %3273 = vadd.xlane.f32.xlu0 %v3272
    %v3274 = vpop.xlane.xlu0 %3273
    %v3275 = vsel %vm137, %v3219, 0.0
    %3276 = vadd.xlane.f32.xlu0 %v3275
    %v3277 = vpop.xlane.xlu0 %3276
    %v3278 = vsel %vm137, %v3224, 0.0
    %3279 = vadd.xlane.f32.xlu0 %v3278
    %v3280 = vpop.xlane.xlu0 %3279
    %v3281 = vsel %vm137, %v3227, 0.0
    %3282 = vadd.xlane.f32.xlu0 %v3281
    %v3283 = vpop.xlane.xlu0 %3282
    %v3284 = vsel %vm137, %v3232, 0.0
    %3285 = vadd.xlane.f32.xlu0 %v3284
    %v3286 = vpop.xlane.xlu0 %3285
    %v3287 = vsel %vm137, %v3235, 0.0
    %3288 = vadd.xlane.f32.xlu0 %v3287
    %v3289 = vpop.xlane.xlu0 %3288
    %v3290 = vsel %vm137, %v3240, 0.0
    %3291 = vadd.xlane.f32.xlu0 %v3290
    %v3292 = vpop.xlane.xlu0 %3291
    %v3293 = vsel %vm137, %v3243, 0.0
    %3294 = vadd.xlane.f32.xlu0 %v3293
    %v3295 = vpop.xlane.xlu0 %3294
    %v3296 = vmul.f32 %v3250, %v558
    %v3297 = vmul.f32 %v3253, %v558
    %v3298 = vmul.f32 %v3256, %v558
    %v3299 = vmul.f32 %v3259, %v558
    %v3300 = vmul.f32 %v3262, %v558
    %v3301 = vmul.f32 %v3265, %v558
    %v3302 = vmul.f32 %v3268, %v558
    %v3303 = vmul.f32 %v3271, %v558
    %v3304 = vmul.f32 %v3274, %v558
    %v3305 = vmul.f32 %v3277, %v558
    %v3306 = vmul.f32 %v3280, %v558
    %v3307 = vmul.f32 %v3283, %v558
    %v3308 = vmul.f32 %v3286, %v558
    %v3309 = vmul.f32 %v3289, %v558
    %v3310 = vmul.f32 %v3292, %v558
    %v3311 = vmul.f32 %v3295, %v558
    %v3312 = vsub.f32 %v3184, %v3296
    %v3313 = vsub.f32 %v3187, %v3297
    %v3314 = vsub.f32 %v3192, %v3298
    %v3315 = vsub.f32 %v3195, %v3299
    %v3316 = vsub.f32 %v3200, %v3300
    %v3317 = vsub.f32 %v3203, %v3301
    %v3318 = vsub.f32 %v3208, %v3302
    %v3319 = vsub.f32 %v3211, %v3303
    %v3320 = vsub.f32 %v3216, %v3304
    %v3321 = vsub.f32 %v3219, %v3305
    %v3322 = vsub.f32 %v3224, %v3306
    %v3323 = vsub.f32 %v3227, %v3307
    %v3324 = vsub.f32 %v3232, %v3308
    %v3325 = vsub.f32 %v3235, %v3309
    %v3326 = vsub.f32 %v3240, %v3310
    %v3327 = vsub.f32 %v3243, %v3311
    %v3328 = vmul.f32 %v3312, %v3312
    %v3329 = vmul.f32 %v3313, %v3313
    %v3330 = vmul.f32 %v3314, %v3314
    %v3331 = vmul.f32 %v3315, %v3315
    %v3332 = vmul.f32 %v3316, %v3316
    %v3333 = vmul.f32 %v3317, %v3317
    %v3334 = vmul.f32 %v3318, %v3318
    %v3335 = vmul.f32 %v3319, %v3319
    %v3336 = vmul.f32 %v3320, %v3320
    %v3337 = vmul.f32 %v3321, %v3321
    %v3338 = vmul.f32 %v3322, %v3322
    %v3339 = vmul.f32 %v3323, %v3323
    %v3340 = vmul.f32 %v3324, %v3324
    %v3341 = vmul.f32 %v3325, %v3325
    %v3342 = vmul.f32 %v3326, %v3326
    %v3343 = vmul.f32 %v3327, %v3327
    %v3344 = vsel %vm137, %v3328, 0.0
    %3345 = vadd.xlane.f32.xlu0 %v3344
    %v3346 = vpop.xlane.xlu0 %3345
    %v3347 = vsel %vm137, %v3329, 0.0
    %3348 = vadd.xlane.f32.xlu0 %v3347
    %v3349 = vpop.xlane.xlu0 %3348
    %v3350 = vsel %vm137, %v3330, 0.0
    %3351 = vadd.xlane.f32.xlu0 %v3350
    %v3352 = vpop.xlane.xlu0 %3351
    %v3353 = vsel %vm137, %v3331, 0.0
    %3354 = vadd.xlane.f32.xlu0 %v3353
    %v3355 = vpop.xlane.xlu0 %3354
    %v3356 = vsel %vm137, %v3332, 0.0
    %3357 = vadd.xlane.f32.xlu0 %v3356
    %v3358 = vpop.xlane.xlu0 %3357
    %v3359 = vsel %vm137, %v3333, 0.0
    %3360 = vadd.xlane.f32.xlu0 %v3359
    %v3361 = vpop.xlane.xlu0 %3360
    %v3362 = vsel %vm137, %v3334, 0.0
    %3363 = vadd.xlane.f32.xlu0 %v3362
    %v3364 = vpop.xlane.xlu0 %3363
    %v3365 = vsel %vm137, %v3335, 0.0
    %3366 = vadd.xlane.f32.xlu0 %v3365
    %v3367 = vpop.xlane.xlu0 %3366
    %v3368 = vsel %vm137, %v3336, 0.0
    %3369 = vadd.xlane.f32.xlu0 %v3368
    %v3370 = vpop.xlane.xlu0 %3369
    %v3371 = vsel %vm137, %v3337, 0.0
    %3372 = vadd.xlane.f32.xlu0 %v3371
    %v3373 = vpop.xlane.xlu0 %3372
    %v3374 = vsel %vm137, %v3338, 0.0
    %3375 = vadd.xlane.f32.xlu0 %v3374
    %v3376 = vpop.xlane.xlu0 %3375
    %v3377 = vsel %vm137, %v3339, 0.0
    %3378 = vadd.xlane.f32.xlu0 %v3377
    %v3379 = vpop.xlane.xlu0 %3378
    %v3380 = vsel %vm137, %v3340, 0.0
    %3381 = vadd.xlane.f32.xlu0 %v3380
    %v3382 = vpop.xlane.xlu0 %3381
    %v3383 = vsel %vm137, %v3341, 0.0
    %3384 = vadd.xlane.f32.xlu0 %v3383
    %v3385 = vpop.xlane.xlu0 %3384
    %v3386 = vsel %vm137, %v3342, 0.0
    %3387 = vadd.xlane.f32.xlu0 %v3386
    %v3388 = vpop.xlane.xlu0 %3387
    %v3389 = vsel %vm137, %v3343, 0.0
    %3390 = vadd.xlane.f32.xlu0 %v3389
    %v3391 = vpop.xlane.xlu0 %3390
    %v3392 = vmul.f32 %v3346, %v558
    %v3393 = vmul.f32 %v3349, %v558
    %v3394 = vmul.f32 %v3352, %v558
    %v3395 = vmul.f32 %v3355, %v558
    %v3396 = vmul.f32 %v3358, %v558
    %v3397 = vmul.f32 %v3361, %v558
    %v3398 = vmul.f32 %v3364, %v558
    %v3399 = vmul.f32 %v3367, %v558
    %v3400 = vmul.f32 %v3370, %v558
    %v3401 = vmul.f32 %v3373, %v558
    %v3402 = vmul.f32 %v3376, %v558
    %v3403 = vmul.f32 %v3379, %v558
    %v3404 = vmul.f32 %v3382, %v558
    %v3405 = vmul.f32 %v3385, %v558
    %v3406 = vmul.f32 %v3388, %v558
    %v3407 = vmul.f32 %v3391, %v558
    %v3408 = vadd.f32 %v3392, 1e-05
    %v3409 = vadd.f32 %v3393, 1e-05
    %v3410 = vadd.f32 %v3394, 1e-05
    %v3411 = vadd.f32 %v3395, 1e-05
    %v3412 = vadd.f32 %v3396, 1e-05
    %v3413 = vadd.f32 %v3397, 1e-05
    %v3414 = vadd.f32 %v3398, 1e-05
    %v3415 = vadd.f32 %v3399, 1e-05
    %v3416 = vadd.f32 %v3400, 1e-05
    %v3417 = vadd.f32 %v3401, 1e-05
    %v3418 = vadd.f32 %v3402, 1e-05
    %v3419 = vadd.f32 %v3403, 1e-05
    %v3420 = vadd.f32 %v3404, 1e-05
    %v3421 = vadd.f32 %v3405, 1e-05
    %v3422 = vadd.f32 %v3406, 1e-05
    %v3423 = vadd.f32 %v3407, 1e-05
    %v3424 = vrsqrt.pop %v3408
    %v3425 = vrsqrt.pop %v3409
    %v3426 = vrsqrt.pop %v3410
    %v3427 = vrsqrt.pop %v3411
    %v3428 = vrsqrt.pop %v3412
    %v3429 = vrsqrt.pop %v3413
    %v3430 = vrsqrt.pop %v3414
    %v3431 = vrsqrt.pop %v3415
    %v3432 = vrsqrt.pop %v3416
    %v3433 = vrsqrt.pop %v3417
    %v3434 = vrsqrt.pop %v3418
    %v3435 = vrsqrt.pop %v3419
    %v3436 = vrsqrt.pop %v3420
    %v3437 = vrsqrt.pop %v3421
    %v3438 = vrsqrt.pop %v3422
    %v3439 = vrsqrt.pop %v3423
    %v3440 = vmul.f32 %v3312, %v3424
    %v3441 = vmul.f32 %v3313, %v3425
    %v3442 = vmul.f32 %v3314, %v3426
    %v3443 = vmul.f32 %v3315, %v3427
    %v3444 = vmul.f32 %v3316, %v3428
    %v3445 = vmul.f32 %v3317, %v3429
    %v3446 = vmul.f32 %v3318, %v3430
    %v3447 = vmul.f32 %v3319, %v3431
    %v3448 = vmul.f32 %v3320, %v3432
    %v3449 = vmul.f32 %v3321, %v3433
    %v3450 = vmul.f32 %v3322, %v3434
    %v3451 = vmul.f32 %v3323, %v3435
    %v3452 = vmul.f32 %v3324, %v3436
    %v3453 = vmul.f32 %v3325, %v3437
    %v3454 = vmul.f32 %v3326, %v3438
    %v3455 = vmul.f32 %v3327, %v3439
    %v3457 = vlaneseq
    %v3458 = vshrl.u32 %v3457, 7
    %v3459 = vsub.s32 0, %v3458
    %v3460 = vrot.slane %v3246, %v3459
    %v3462 = vmul.f32 %v3440, %v3460
    %v3463 = vmul.f32 %v3441, %v3460
    %v3464 = vmul.f32 %v3442, %v3460
    %v3465 = vmul.f32 %v3443, %v3460
    %v3466 = vmul.f32 %v3444, %v3460
    %v3467 = vmul.f32 %v3445, %v3460
    %v3468 = vmul.f32 %v3446, %v3460
    %v3469 = vmul.f32 %v3447, %v3460
    %v3470 = vmul.f32 %v3448, %v3460
    %v3471 = vmul.f32 %v3449, %v3460
    %v3472 = vmul.f32 %v3450, %v3460
    %v3473 = vmul.f32 %v3451, %v3460
    %v3474 = vmul.f32 %v3452, %v3460
    %v3475 = vmul.f32 %v3453, %v3460
    %v3476 = vmul.f32 %v3454, %v3460
    %v3477 = vmul.f32 %v3455, %v3460
    %v3479 = vlaneseq
    %v3480 = vshrl.u32 %v3479, 7
    %v3481 = vsub.s32 0, %v3480
    %v3482 = vrot.slane %v3247, %v3481
    %v3484 = vadd.f32 %v3462, %v3482
    %v3485 = vadd.f32 %v3463, %v3482
    %v3486 = vadd.f32 %v3464, %v3482
    %v3487 = vadd.f32 %v3465, %v3482
    %v3488 = vadd.f32 %v3466, %v3482
    %v3489 = vadd.f32 %v3467, %v3482
    %v3490 = vadd.f32 %v3468, %v3482
    %v3491 = vadd.f32 %v3469, %v3482
    %v3492 = vadd.f32 %v3470, %v3482
    %v3493 = vadd.f32 %v3471, %v3482
    %v3494 = vadd.f32 %v3472, %v3482
    %v3495 = vadd.f32 %v3473, %v3482
    %v3496 = vadd.f32 %v3474, %v3482
    %v3497 = vadd.f32 %v3475, %v3482
    %v3498 = vadd.f32 %v3476, %v3482
    %v3499 = vadd.f32 %v3477, %v3482
    %v3500 = vld [vmem:[%s16] sm:$0xff]
    %v3501 = vld [vmem:[%s16 + $0x8] sm:$0xff]
    %v3502 = vld [vmem:[%s16 + $0x10] sm:$0xff]
    %v3503 = vld [vmem:[%s16 + $0x18] sm:$0xff]
    %v3504 = vld [vmem:[%s16 + $0x20] sm:$0xff]
    %v3505 = vld [vmem:[%s16 + $0x28] sm:$0xff]
    %v3506 = vld [vmem:[%s16 + $0x30] sm:$0xff]
    %v3507 = vld [vmem:[%s16 + $0x38] sm:$0xff]
    %v3508 = vld [vmem:[%s16 + $0x40] sm:$0xff]
    %v3509 = vld [vmem:[%s16 + $0x48] sm:$0xff]
    %v3510 = vld [vmem:[%s16 + $0x50] sm:$0xff]
    %v3511 = vld [vmem:[%s16 + $0x58] sm:$0xff]
    %v3512 = vld [vmem:[%s16 + $0x60] sm:$0xff]
    %v3513 = vld [vmem:[%s16 + $0x68] sm:$0xff]
    %v3514 = vld [vmem:[%s16 + $0x70] sm:$0xff]
    %v3515 = vld [vmem:[%s16 + $0x78] sm:$0xff]
    %3517 = vset.pattern.permute.xlu0 0
    %3518 = vperm.xlu0 %3517, %v3500
    %v3519 = vpop.permute.xlu0 %3518
    %3522 = vset.pattern.permute.xlu0 0
    %3523 = vperm.xlu0 %3522, %v3501
    %v3524 = vpop.permute.xlu0 %3523
    %3527 = vset.pattern.permute.xlu0 0
    %3528 = vperm.xlu0 %3527, %v3502
    %v3529 = vpop.permute.xlu0 %3528
    %3532 = vset.pattern.permute.xlu0 0
    %3533 = vperm.xlu0 %3532, %v3503
    %v3534 = vpop.permute.xlu0 %3533
    %3537 = vset.pattern.permute.xlu0 0
    %3538 = vperm.xlu0 %3537, %v3504
    %v3539 = vpop.permute.xlu0 %3538
    %3542 = vset.pattern.permute.xlu0 0
    %3543 = vperm.xlu0 %3542, %v3505
    %v3544 = vpop.permute.xlu0 %3543
    %3547 = vset.pattern.permute.xlu0 0
    %3548 = vperm.xlu0 %3547, %v3506
    %v3549 = vpop.permute.xlu0 %3548
    %3552 = vset.pattern.permute.xlu0 0
    %3553 = vperm.xlu0 %3552, %v3507
    %v3554 = vpop.permute.xlu0 %3553
    %3557 = vset.pattern.permute.xlu0 0
    %3558 = vperm.xlu0 %3557, %v3508
    %v3559 = vpop.permute.xlu0 %3558
    %3562 = vset.pattern.permute.xlu0 0
    %3563 = vperm.xlu0 %3562, %v3509
    %v3564 = vpop.permute.xlu0 %3563
    %3567 = vset.pattern.permute.xlu0 0
    %3568 = vperm.xlu0 %3567, %v3510
    %v3569 = vpop.permute.xlu0 %3568
    %3572 = vset.pattern.permute.xlu0 0
    %3573 = vperm.xlu0 %3572, %v3511
    %v3574 = vpop.permute.xlu0 %3573
    %3577 = vset.pattern.permute.xlu0 0
    %3578 = vperm.xlu0 %3577, %v3512
    %v3579 = vpop.permute.xlu0 %3578
    %3582 = vset.pattern.permute.xlu0 0
    %3583 = vperm.xlu0 %3582, %v3513
    %v3584 = vpop.permute.xlu0 %3583
    %3587 = vset.pattern.permute.xlu0 0
    %3588 = vperm.xlu0 %3587, %v3514
    %v3589 = vpop.permute.xlu0 %3588
    %3592 = vset.pattern.permute.xlu0 0
    %3593 = vperm.xlu0 %3592, %v3515
    %v3594 = vpop.permute.xlu0 %3593
    %v3596 = vmul.f32 %v3484, %v3519
    %v3597 = vmul.f32 %v3485, %v3524
    %v3598 = vmul.f32 %v3486, %v3529
    %v3599 = vmul.f32 %v3487, %v3534
    %v3600 = vmul.f32 %v3488, %v3539
    %v3601 = vmul.f32 %v3489, %v3544
    %v3602 = vmul.f32 %v3490, %v3549
    %v3603 = vmul.f32 %v3491, %v3554
    %v3604 = vmul.f32 %v3492, %v3559
    %v3605 = vmul.f32 %v3493, %v3564
    %v3606 = vmul.f32 %v3494, %v3569
    %v3607 = vmul.f32 %v3495, %v3574
    %v3608 = vmul.f32 %v3496, %v3579
    %v3609 = vmul.f32 %v3497, %v3584
    %v3610 = vmul.f32 %v3498, %v3589
    %v3611 = vmul.f32 %v3499, %v3594
    %v3612 = vsel %vm137, %v3596, 0.0
    %v3613 = vsel %vm137, %v3597, 0.0
    %v3614 = vadd.f32 %v3612, %v3613
    %v3615 = vsel %vm137, %v3598, 0.0
    %v3616 = vadd.f32 %v3614, %v3615
    %v3617 = vsel %vm137, %v3599, 0.0
    %v3618 = vadd.f32 %v3616, %v3617
    %v3619 = vsel %vm137, %v3600, 0.0
    %v3620 = vadd.f32 %v3618, %v3619
    %v3621 = vsel %vm137, %v3601, 0.0
    %v3622 = vadd.f32 %v3620, %v3621
    %v3623 = vsel %vm137, %v3602, 0.0
    %v3624 = vadd.f32 %v3622, %v3623
    %v3625 = vsel %vm137, %v3603, 0.0
    %v3626 = vadd.f32 %v3624, %v3625
    %v3627 = vsel %vm137, %v3604, 0.0
    %v3628 = vadd.f32 %v3626, %v3627
    %v3629 = vsel %vm137, %v3605, 0.0
    %v3630 = vadd.f32 %v3628, %v3629
    %v3631 = vsel %vm137, %v3606, 0.0
    %v3632 = vadd.f32 %v3630, %v3631
    %v3633 = vsel %vm137, %v3607, 0.0
    %v3634 = vadd.f32 %v3632, %v3633
    %v3635 = vsel %vm137, %v3608, 0.0
    %v3636 = vadd.f32 %v3634, %v3635
    %v3637 = vsel %vm137, %v3609, 0.0
    %v3638 = vadd.f32 %v3636, %v3637
    %v3639 = vsel %vm137, %v3610, 0.0
    %v3640 = vadd.f32 %v3638, %v3639
    %v3641 = vsel %vm137, %v3611, 0.0
    %v3642 = vadd.f32 %v3640, %v3641
    %v3643 = vrot.slane %v3642, 4
    %v3644 = vadd.f32 %v3642, %v3643
    %v3645 = vrot.slane %v3644, 2
    %v3646 = vadd.f32 %v3644, %v3645
    %v3647 = vrot.slane %v3646, 1
    %v3648 = vadd.f32 %v3646, %v3647
    %vm3649 = vcmask 7168
    %v3650 = vsel %vm3649, %v3500, 0.0
    %v3651 = vsel %vm3649, %v3501, 0.0
    %v3652 = vadd.f32 %v3650, %v3651
    %v3653 = vsel %vm3649, %v3502, 0.0
    %v3654 = vadd.f32 %v3652, %v3653
    %v3655 = vsel %vm3649, %v3503, 0.0
    %v3656 = vadd.f32 %v3654, %v3655
    %v3657 = vsel %vm3649, %v3504, 0.0
    %v3658 = vadd.f32 %v3656, %v3657
    %v3659 = vsel %vm3649, %v3505, 0.0
    %v3660 = vadd.f32 %v3658, %v3659
    %v3661 = vsel %vm3649, %v3506, 0.0
    %v3662 = vadd.f32 %v3660, %v3661
    %v3663 = vsel %vm3649, %v3507, 0.0
    %v3664 = vadd.f32 %v3662, %v3663
    %v3665 = vsel %vm3649, %v3508, 0.0
    %v3666 = vadd.f32 %v3664, %v3665
    %v3667 = vsel %vm3649, %v3509, 0.0
    %v3668 = vadd.f32 %v3666, %v3667
    %v3669 = vsel %vm3649, %v3510, 0.0
    %v3670 = vadd.f32 %v3668, %v3669
    %v3671 = vsel %vm3649, %v3511, 0.0
    %v3672 = vadd.f32 %v3670, %v3671
    %v3673 = vsel %vm3649, %v3512, 0.0
    %v3674 = vadd.f32 %v3672, %v3673
    %v3675 = vsel %vm3649, %v3513, 0.0
    %v3676 = vadd.f32 %v3674, %v3675
    %v3677 = vsel %vm3649, %v3514, 0.0
    %v3678 = vadd.f32 %v3676, %v3677
    %v3679 = vsel %vm3649, %v3515, 0.0
    %v3680 = vadd.f32 %v3678, %v3679
    %v3681 = vrot.slane %v3680, 4
    %v3682 = vadd.f32 %v3680, %v3681
    %v3683 = vrot.slane %v3682, 2
    %v3684 = vadd.f32 %v3682, %v3683
    %v3685 = vrot.slane %v3684, 1
    %v3686 = vadd.f32 %v3684, %v3685
    %v3687 = vld [vmem:[%s14] sm:$0x1]
    %v3688 = vmul.f32 %v3648, %v3687
    %vm3689 = vcmask 516096
    %v3690 = vsel %vm3689, %v3688, 0.0
    %3691 = vadd.xlane.f32.xlu0 %v3690
    %v3692 = vpop.xlane.xlu0 %3691
    %v3693 = vld [vmem:[#allocation12] sm:$0x1]
    %v3694 = vmul.f32 %v3693, %v3686
    %v3695 = vadd.f32 %v3692, %v3694
    %v3696 = vld [vmem:[#allocation13] sm:$0x1]
    %v3697 = vadd.f32 %v3695, %v3696
    %v3698 = vsub.f32 0.0, %v3697
    %v3699 = vmul.f32 %v3698, 1.442695
    %v3700 = vpow.pop %v3699
    %v3701 = vadd.f32 %v3700, 1.0
    %v3702 = vrcp.pop %v3701
    %v3703 = vmul.f32 1.0, %v3702
    %vm3704 = vcmask 0
    %3705 = vst.msk [vmem:[#allocation14] sm:$0x1] %vm3704, %v3703
    // Predicated region
    $region88: #{_forward.1} parent=1 // pred_check
      _
    $region89: #{_forward.1} parent=1 // pred_check_branch
      %3707 = sbr.rel (0) target = $region91
    $region90: #{_forward.1} parent=1 // pred_region
      %s3709 = ssub.s32 16, 16
      %3710 = vsyncadd [#allocation15], %s3709
      %s3712 = sshll.u32 [#allocation14], 4
      %s3713 = int_to_ptr.vmem [resolvable:$true] %s3712
      %3715 = dma.vmem_to_hbm [thread:$0]  %s3713, 16, %s18, [#allocation15]
    $region91: #{_forward.1} parent=1 // pred_fallthru
      _
    // Predicated region
    $region92: #{_forward.1} parent=1 // pred_check
      _
    $region93: #{_forward.1} parent=1 // pred_check_branch
      %3717 = sbr.rel (0) target = $region95
    $region94: #{_forward.1} parent=1 // pred_region
      %3718 = dma.done [#allocation15], 16
    $region95: #{_forward.1} parent=1 // pred_fallthru
      _
    %3719 = vsyncpa [#allocation15], 1

</llo_original>
